<compile_context>
chip_gen: v7x
topology: tpu7x:2x2x1
jax: 0.10.0
libtpu: 0.0.40
codegen_flags: <defaults>
</compile_context>

<pallas_src>
import functools

import jax
import jax.numpy as jnp
from jax import lax
from jax.experimental import pallas as pl
from jax.experimental.pallas import tpu as pltpu


_PAD = 128  # lane halo for shifted conv taps; must be >= W + 1


# ----------------------------------------------------------------------------
# Fused kernel (one grid step == BLK samples, everything stays in VMEM):
#   conv(3x3, pad=1) + bias + ReLU -> avgpool(2) -> flatten -> FC
# ----------------------------------------------------------------------------
def _fused_kernel(x_ref, wc_ref, bc_ref, pm_ref, wf_ref, bf_ref,
                  feat_ref, flat_ref, preds_ref,
                  xpad_ref, taps_ref, *, H, W):
    BLK, CIN, HW = x_ref.shape                 # (BLK, 4, 256)
    COUT = feat_ref.shape[1]                   # 8
    P2 = (H // 2) * (W // 2)                   # 64

    # ---- per-block constants, hoisted out of the per-sample loop -----------
    wc = wc_ref[...]                           # (COUT, 9*CIN)
    bc = bc_ref[...]                           # (COUT, 1)
    pm = pm_ref[...]                           # (HW, P2) resident pooling matrix
    wf = wf_ref[...]                           # (COUT*P2, NC)
    bf = bf_ref[...]                           # (1, NC)

    # width-boundary masks for the dw = -1 / +1 taps, built once per block
    wcol = lax.broadcasted_iota(jnp.int32, (CIN, HW), 1) % W
    mask_l = wcol > 0
    mask_r = wcol < (W - 1)

    # zero ONLY the two halo regions of the padded scratch; the centre HW lanes
    # are overwritten for every sample.  (No program_id guard: unsafe with
    # dimension_semantics=("parallel",) on megacore.)
    xpad_ref[:, :_PAD] = jnp.zeros((CIN, _PAD), jnp.float32)
    xpad_ref[:, _PAD + HW:] = jnp.zeros((CIN, _PAD), jnp.float32)

    # ---- stage 1: conv(3x3,pad=1)+bias+ReLU, one K=9*CIN matmul per sample --
    for b in range(BLK):
        xpad_ref[:, _PAD:_PAD + HW] = x_ref[b]                 # (CIN, HW)
        for kh in range(3):
            for kw in range(3):
                dh, dw = kh - 1, kw - 1
                start = _PAD + dh * W + dw
                xs = xpad_ref[:, start:start + HW]             # static lane-offset slice
                if dw == -1:
                    xs = jnp.where(mask_l, xs, 0.0)
                elif dw == 1:
                    xs = jnp.where(mask_r, xs, 0.0)
                t = kh * 3 + kw
                taps_ref[t * CIN:(t + 1) * CIN, :] = xs        # stack tap t
        conv = jnp.dot(wc, taps_ref[...],                      # (COUT, HW), single push
                       preferred_element_type=jnp.float32)
        feat_ref[b] = jnp.maximum(conv + bc, 0.0).astype(feat_ref.dtype)

    # ---- stage 2+3: AvgPool2d(2) + flatten (PyTorch (C,H2,W2) order) --------
    pooled = []
    for c in range(COUT):
        fc_c = feat_ref[:, c, :]                               # (BLK, HW) dense slice
        pooled.append(jnp.dot(fc_c, pm,                        # (BLK, P2), M=BLK matmul
                              preferred_element_type=jnp.float32))
    flat_val = jnp.concatenate(pooled, axis=-1)                # (BLK, COUT*P2) lane-dense
    flat_ref[:, 0, :] = flat_val.astype(flat_ref.dtype)        # one dense store

    # ---- stage 4: Dropout(0.5)==identity (eval); Linear as (BLK,512)x(512,NC)
    preds = jnp.dot(flat_val, wf, preferred_element_type=jnp.float32) + bf
    preds_ref[:, 0, :] = preds.astype(preds_ref.dtype)


# ----------------------------------------------------------------------------
# Block-size heuristic: amortize per-step overhead, keep grid >= 2 for v7x.
# ----------------------------------------------------------------------------
def _pick_block_b(n, max_b=8):
    divs = [b for b in range(1, min(n, max_b) + 1) if n % b == 0]
    pref = [b for b in divs if n // b >= 2]
    return max(pref) if pref else max(divs)


# ----------------------------------------------------------------------------
# Deterministic parameter init (replaces the lazy "is_initialized" path).
# ----------------------------------------------------------------------------
def init_params(key, in_ch, mid_ch, num_classes, h, w):
    k1, k2, k3, k4 = jax.random.split(key, 4)
    conv_w = jax.random.normal(k1, (mid_ch, in_ch, 3, 3), jnp.float32) * 0.1
    conv_b = jax.random.normal(k2, (mid_ch,), jnp.float32) * 0.1
    flat = mid_ch * (h // 2) * (w // 2)
    fc_w = jax.random.normal(k3, (num_classes, flat), jnp.float32) * 0.05
    fc_b = jax.random.normal(k4, (num_classes,), jnp.float32) * 0.05
    return dict(conv_w=conv_w, conv_b=conv_b, fc_w=fc_w, fc_b=fc_b)


# ----------------------------------------------------------------------------
# EarlyExitLayer.forward (initialized path): returns (feature, flatten, preds)
# ----------------------------------------------------------------------------
def early_exit_forward(params, x):
    n, cin, h, w = x.shape
    conv_w, conv_b = params["conv_w"], params["conv_b"]
    fc_w, fc_b = params["fc_w"], params["fc_b"]
    cout = conv_w.shape[0]
    hw = h * w
    h2, w2 = h // 2, w // 2
    p2 = h2 * w2
    nc = fc_b.shape[0]

    blk = _pick_block_b(n)
    grid = (n // blk,)

    # Only free metadata reshapes / tiny weight re-layouts outside the kernel.
    x_flat = x.reshape(n, cin, hw).astype(jnp.float32)                        # NCHW-flat
    w_mat = jnp.transpose(conv_w, (0, 2, 3, 1)).reshape(cout, 9 * cin).astype(jnp.float32)
    b_col = conv_b.reshape(cout, 1).astype(jnp.float32)
    wf = jnp.transpose(fc_w).astype(jnp.float32)                              # (cout*p2, nc)
    bf = fc_b.reshape(1, nc).astype(jnp.float32)

    # Resident pooling matrix (DMA'd once; constant index_map -> stays in VMEM).
    pi = jnp.arange(hw, dtype=jnp.int32)[:, None]
    qi = jnp.arange(p2, dtype=jnp.int32)[None, :]
    sel = ((pi // w) // 2 == qi // w2) & ((pi % w) // 2 == qi % w2)
    pool_mat = jnp.where(sel, 0.25, 0.0).astype(jnp.float32)

    kernel = functools.partial(_fused_kernel, H=h, W=w)

    feat3, flat3, preds3 = pl.pallas_call(
        kernel,
        out_shape=(
            jax.ShapeDtypeStruct((n, cout, hw), jnp.float32),
            jax.ShapeDtypeStruct((n, 1, cout * p2), jnp.float32),
            jax.ShapeDtypeStruct((n, 1, nc), jnp.float32),
        ),
        grid_spec=pltpu.PrefetchScalarGridSpec(
            num_scalar_prefetch=0,
            grid=grid,
            in_specs=[
                pl.BlockSpec((blk, cin, hw), lambda i: (i, 0, 0)),
                pl.BlockSpec((cout, 9 * cin), lambda i: (0, 0)),
                pl.BlockSpec((cout, 1), lambda i: (0, 0)),
                pl.BlockSpec((hw, p2), lambda i: (0, 0)),
                pl.BlockSpec((cout * p2, nc), lambda i: (0, 0)),
                pl.BlockSpec((1, nc), lambda i: (0, 0)),
            ],
            out_specs=(
                pl.BlockSpec((blk, cout, hw), lambda i: (i, 0, 0)),
                pl.BlockSpec((blk, 1, cout * p2), lambda i: (i, 0, 0)),
                pl.BlockSpec((blk, 1, nc), lambda i: (i, 0, 0)),
            ),
            scratch_shapes=[
                pltpu.VMEM((cin, hw + 2 * _PAD), jnp.float32),   # padded input (halo)
                pltpu.VMEM((9 * cin, hw), jnp.float32),          # stacked conv taps
            ],
        ),
        compiler_params=pltpu.CompilerParams(
            dimension_semantics=("parallel",)),
    )(x_flat, w_mat, b_col, pool_mat, wf, bf)

    feature = feat3.reshape(n, cout, h, w)
    flatten_feature = flat3.reshape(n, cout * p2)
    preds = preds3.reshape(n, nc)
    return feature, flatten_feature, preds


# ----------------------------------------------------------------------------
# Pure-JAX reference for a numerical sanity check (no Pallas).
# ----------------------------------------------------------------------------
def _reference(params, x):
    conv = jax.lax.conv_general_dilated(
        x, params["conv_w"], (1, 1), ((1, 1), (1, 1)),
        dimension_numbers=("NCHW", "OIHW", "NCHW"))
    feature = jnp.maximum(conv + params["conv_b"][None, :, None, None], 0.0)
    n, c, h, w = feature.shape
    pooled = feature.reshape(n, c, h // 2, 2, w // 2, 2).mean(axis=(3, 5))
    flat = pooled.reshape(n, -1)
    preds = flat @ params["fc_w"].T + params["fc_b"]
    return feature, flat, preds


if __name__ == "__main__":
    key = jax.random.PRNGKey(0)
    kx, kp = jax.random.split(key)

    N, CIN, H, W = 16, 4, 16, 16            # 16 samples -> BLK=8, grid=(2,)
    COUT, NUM_CLASSES = 8, 10

    x = jax.random.normal(kx, (N, CIN, H, W), jnp.float32)
    params = init_params(kp, CIN, COUT, NUM_CLASSES, H, W)

    forward = jax.jit(early_exit_forward)
    feature, flatten_feature, preds = forward(params, x)
    jax.block_until_ready((feature, flatten_feature, preds))

    # shape + numeric sanity checks vs. plain-JAX reference
    rf, rff, rp = _reference(params, x)
    assert feature.shape == (N, COUT, H, W)
    assert flatten_feature.shape == (N, COUT * (H // 2) * (W // 2))
    assert preds.shape == (N, NUM_CLASSES)
    assert jnp.allclose(feature, rf, atol=1e-2, rtol=1e-2)
    assert jnp.allclose(flatten_feature, rff, atol=1e-2, rtol=1e-2)
    assert jnp.allclose(preds, rp, atol=1e-2, rtol=1e-2)

    print("KERNEL_OK")
</pallas_src>

<mosaic_0001>
module attributes {stable_mosaic.version = 11 : i64} {
  func.func @_fused_kernel(%arg0: i32, %arg1: memref<8x4x256xf32, #tpu.memory_space<vmem>>, %arg2: memref<8x36xf32, #tpu.memory_space<vmem>>, %arg3: memref<8x1xf32, #tpu.memory_space<vmem>>, %arg4: memref<256x64xf32, #tpu.memory_space<vmem>>, %arg5: memref<512x10xf32, #tpu.memory_space<vmem>>, %arg6: memref<1x10xf32, #tpu.memory_space<vmem>>, %arg7: memref<8x8x256xf32, #tpu.memory_space<vmem>>, %arg8: memref<8x1x512xf32, #tpu.memory_space<vmem>>, %arg9: memref<8x1x10xf32, #tpu.memory_space<vmem>>, %arg10: memref<4x512xf32, #tpu.memory_space<vmem>>, %arg11: memref<36x256xf32, #tpu.memory_space<vmem>>) attributes {dimension_semantics = [#tpu.dimension_semantics<parallel>], iteration_bounds = array<i64: 2>, scalar_prefetch = 0 : i64, scratch_operands = 2 : i64, tpu.core_type = #tpu.core_type<tc>, window_params = [{transform_indices = @transform_0, window_bounds = array<i64: 8, 4, 256>}, {pipeline_mode = #tpu.pipeline_mode<synchronous>, transform_indices = @transform_1, window_bounds = array<i64: 8, 36>}, {pipeline_mode = #tpu.pipeline_mode<synchronous>, transform_indices = @transform_2, window_bounds = array<i64: 8, 1>}, {pipeline_mode = #tpu.pipeline_mode<synchronous>, transform_indices = @transform_3, window_bounds = array<i64: 256, 64>}, {pipeline_mode = #tpu.pipeline_mode<synchronous>, transform_indices = @transform_4, window_bounds = array<i64: 512, 10>}, {pipeline_mode = #tpu.pipeline_mode<synchronous>, transform_indices = @transform_5, window_bounds = array<i64: 1, 10>}, {transform_indices = @transform_6, window_bounds = array<i64: 8, 8, 256>}, {transform_indices = @transform_7, window_bounds = array<i64: 8, 1, 512>}, {transform_indices = @transform_8, window_bounds = array<i64: 8, 1, 10>}]} {
    %c0 = arith.constant 0 : index
    %c0_0 = arith.constant 0 : index
    %0 = vector.load %arg2[%c0, %c0_0] : memref<8x36xf32, #tpu.memory_space<vmem>>, vector<8x36xf32>
    %c0_1 = arith.constant 0 : index
    %c0_2 = arith.constant 0 : index
    %1 = vector.load %arg3[%c0_1, %c0_2] : memref<8x1xf32, #tpu.memory_space<vmem>>, vector<8x1xf32>
    %c0_3 = arith.constant 0 : index
    %c0_4 = arith.constant 0 : index
    %2 = vector.load %arg4[%c0_3, %c0_4] : memref<256x64xf32, #tpu.memory_space<vmem>>, vector<256x64xf32>
    %c0_5 = arith.constant 0 : index
    %c0_6 = arith.constant 0 : index
    %3 = vector.load %arg5[%c0_5, %c0_6] : memref<512x10xf32, #tpu.memory_space<vmem>>, vector<512x10xf32>
    %c0_7 = arith.constant 0 : index
    %c0_8 = arith.constant 0 : index
    %4 = vector.load %arg6[%c0_7, %c0_8] : memref<1x10xf32, #tpu.memory_space<vmem>>, vector<1x10xf32>
    %5 = tpu.iota {dimensions = array<i32: 1>} : vector<4x256xi32>
    %c16_i32 = arith.constant 16 : i32
    %c0_i32 = arith.constant 0 : i32
    %6 = arith.cmpi eq, %c16_i32, %c0_i32 : i32
    %c1_i32 = arith.constant 1 : i32
    %7 = arith.select %6, %c1_i32, %c16_i32 : i32
    %8 = vector.broadcast %7 : i32 to vector<4x256xi32>
    %9 = arith.remsi %5, %8 : vector<4x256xi32>
    %c0_i32_9 = arith.constant 0 : i32
    %10 = vector.broadcast %c0_i32_9 : i32 to vector<4x256xi32>
    %11 = arith.cmpi ne, %9, %10 : vector<4x256xi32>
    %c0_i32_10 = arith.constant 0 : i32
    %12 = vector.broadcast %c0_i32_10 : i32 to vector<4x256xi32>
    %13 = arith.cmpi slt, %9, %12 : vector<4x256xi32>
    %c0_i32_11 = arith.constant 0 : i32
    %14 = arith.cmpi slt, %7, %c0_i32_11 : i32
    %15 = vector.broadcast %14 : i1 to vector<4x256xi1>
    %16 = vector.broadcast %15 : vector<4x256xi1> to vector<4x256xi1>
    %17 = arith.xori %13, %16 : vector<4x256xi1>
    %18 = arith.andi %17, %11 : vector<4x256xi1>
    %19 = vector.broadcast %7 : i32 to vector<4x256xi32>
    %20 = arith.addi %9, %19 : vector<4x256xi32>
    %21 = arith.select %18, %20, %9 : vector<4x256xi1>, vector<4x256xi32>
    %c0_i32_12 = arith.constant 0 : i32
    %22 = vector.broadcast %c0_i32_12 : i32 to vector<4x256xi32>
    %23 = arith.cmpi sgt, %21, %22 : vector<4x256xi32>
    %c15_i32 = arith.constant 15 : i32
    %24 = vector.broadcast %c15_i32 : i32 to vector<4x256xi32>
    %25 = arith.cmpi slt, %21, %24 : vector<4x256xi32>
    %cst = arith.constant 0.000000e+00 : f32
    %26 = vector.broadcast %cst : f32 to vector<4x128xf32>
    %c0_13 = arith.constant 0 : index
    %c0_14 = arith.constant 0 : index
    %27 = vector.load %arg10[%c0_13, %c0_14] : memref<4x512xf32, #tpu.memory_space<vmem>>, vector<4x128xf32>
    tpu.vector_store %arg10[%c0_13, %c0_14], %26 {strides = array<i32>} : memref<4x512xf32, #tpu.memory_space<vmem>>, vector<4x128xf32>,
    %cst_15 = arith.constant 0.000000e+00 : f32
    %28 = vector.broadcast %cst_15 : f32 to vector<4x128xf32>
    %c0_16 = arith.constant 0 : index
    %c384 = arith.constant 384 : index
    %29 = vector.load %arg10[%c0_16, %c384] : memref<4x512xf32, #tpu.memory_space<vmem>>, vector<4x128xf32>
    tpu.vector_store %arg10[%c0_16, %c384], %28 {strides = array<i32>} : memref<4x512xf32, #tpu.memory_space<vmem>>, vector<4x128xf32>,
    %c0_17 = arith.constant 0 : index
    %c0_18 = arith.constant 0 : index
    %c0_19 = arith.constant 0 : index
    %30 = vector.load %arg1[%c0_17, %c0_18, %c0_19] : memref<8x4x256xf32, #tpu.memory_space<vmem>>, vector<1x4x256xf32>
    %31 = vector.shape_cast %30 : vector<1x4x256xf32> to vector<4x256xf32>
    %c0_20 = arith.constant 0 : index
    %c128 = arith.constant 128 : index
    %32 = vector.load %arg10[%c0_20, %c128] : memref<4x512xf32, #tpu.memory_space<vmem>>, vector<4x256xf32>
    tpu.vector_store %arg10[%c0_20, %c128], %31 {strides = array<i32>} : memref<4x512xf32, #tpu.memory_space<vmem>>, vector<4x256xf32>,
    %c0_21 = arith.constant 0 : index
    %c111 = arith.constant 111 : index
    %33 = vector.load %arg10[%c0_21, %c111] : memref<4x512xf32, #tpu.memory_space<vmem>>, vector<4x256xf32>
    %cst_22 = arith.constant 0.000000e+00 : f32
    %34 = vector.broadcast %cst_22 : f32 to vector<4x256xf32>
    %35 = arith.select %23, %33, %34 : vector<4x256xi1>, vector<4x256xf32>
    %c0_23 = arith.constant 0 : index
    %c0_24 = arith.constant 0 : index
    %36 = vector.load %arg11[%c0_23, %c0_24] : memref<36x256xf32, #tpu.memory_space<vmem>>, vector<4x256xf32>
    tpu.vector_store %arg11[%c0_23, %c0_24], %35 {strides = array<i32>} : memref<36x256xf32, #tpu.memory_space<vmem>>, vector<4x256xf32>,
    %c0_25 = arith.constant 0 : index
    %c112 = arith.constant 112 : index
    %37 = vector.load %arg10[%c0_25, %c112] : memref<4x512xf32, #tpu.memory_space<vmem>>, vector<4x256xf32>
    %c4 = arith.constant 4 : index
    %c0_26 = arith.constant 0 : index
    %38 = vector.load %arg11[%c4, %c0_26] : memref<36x256xf32, #tpu.memory_space<vmem>>, vector<4x256xf32>
    tpu.vector_store %arg11[%c4, %c0_26], %37 {strides = array<i32>} : memref<36x256xf32, #tpu.memory_space<vmem>>, vector<4x256xf32>,
    %c0_27 = arith.constant 0 : index
    %c113 = arith.constant 113 : index
    %39 = vector.load %arg10[%c0_27, %c113] : memref<4x512xf32, #tpu.memory_space<vmem>>, vector<4x256xf32>
    %cst_28 = arith.constant 0.000000e+00 : f32
    %40 = vector.broadcast %cst_28 : f32 to vector<4x256xf32>
    %41 = arith.select %25, %39, %40 : vector<4x256xi1>, vector<4x256xf32>
    %c8 = arith.constant 8 : index
    %c0_29 = arith.constant 0 : index
    %42 = vector.load %arg11[%c8, %c0_29] : memref<36x256xf32, #tpu.memory_space<vmem>>, vector<4x256xf32>
    tpu.vector_store %arg11[%c8, %c0_29], %41 {strides = array<i32>} : memref<36x256xf32, #tpu.memory_space<vmem>>, vector<4x256xf32>,
    %c0_30 = arith.constant 0 : index
    %c127 = arith.constant 127 : index
    %43 = vector.load %arg10[%c0_30, %c127] : memref<4x512xf32, #tpu.memory_space<vmem>>, vector<4x256xf32>
    %cst_31 = arith.constant 0.000000e+00 : f32
    %44 = vector.broadcast %cst_31 : f32 to vector<4x256xf32>
    %45 = arith.select %23, %43, %44 : vector<4x256xi1>, vector<4x256xf32>
    %c12 = arith.constant 12 : index
    %c0_32 = arith.constant 0 : index
    %46 = vector.load %arg11[%c12, %c0_32] : memref<36x256xf32, #tpu.memory_space<vmem>>, vector<4x256xf32>
    tpu.vector_store %arg11[%c12, %c0_32], %45 {strides = array<i32>} : memref<36x256xf32, #tpu.memory_space<vmem>>, vector<4x256xf32>,
    %c0_33 = arith.constant 0 : index
    %c128_34 = arith.constant 128 : index
    %47 = vector.load %arg10[%c0_33, %c128_34] : memref<4x512xf32, #tpu.memory_space<vmem>>, vector<4x256xf32>
    %c16 = arith.constant 16 : index
    %c0_35 = arith.constant 0 : index
    %48 = vector.load %arg11[%c16, %c0_35] : memref<36x256xf32, #tpu.memory_space<vmem>>, vector<4x256xf32>
    tpu.vector_store %arg11[%c16, %c0_35], %47 {strides = array<i32>} : memref<36x256xf32, #tpu.memory_space<vmem>>, vector<4x256xf32>,
    %c0_36 = arith.constant 0 : index
    %c129 = arith.constant 129 : index
    %49 = vector.load %arg10[%c0_36, %c129] : memref<4x512xf32, #tpu.memory_space<vmem>>, vector<4x256xf32>
    %cst_37 = arith.constant 0.000000e+00 : f32
    %50 = vector.broadcast %cst_37 : f32 to vector<4x256xf32>
    %51 = arith.select %25, %49, %50 : vector<4x256xi1>, vector<4x256xf32>
    %c20 = arith.constant 20 : index
    %c0_38 = arith.constant 0 : index
    %52 = vector.load %arg11[%c20, %c0_38] : memref<36x256xf32, #tpu.memory_space<vmem>>, vector<4x256xf32>
    tpu.vector_store %arg11[%c20, %c0_38], %51 {strides = array<i32>} : memref<36x256xf32, #tpu.memory_space<vmem>>, vector<4x256xf32>,
    %c0_39 = arith.constant 0 : index
    %c143 = arith.constant 143 : index
    %53 = vector.load %arg10[%c0_39, %c143] : memref<4x512xf32, #tpu.memory_space<vmem>>, vector<4x256xf32>
    %cst_40 = arith.constant 0.000000e+00 : f32
    %54 = vector.broadcast %cst_40 : f32 to vector<4x256xf32>
    %55 = arith.select %23, %53, %54 : vector<4x256xi1>, vector<4x256xf32>
    %c24 = arith.constant 24 : index
    %c0_41 = arith.constant 0 : index
    %56 = vector.load %arg11[%c24, %c0_41] : memref<36x256xf32, #tpu.memory_space<vmem>>, vector<4x256xf32>
    tpu.vector_store %arg11[%c24, %c0_41], %55 {strides = array<i32>} : memref<36x256xf32, #tpu.memory_space<vmem>>, vector<4x256xf32>,
    %c0_42 = arith.constant 0 : index
    %c144 = arith.constant 144 : index
    %57 = vector.load %arg10[%c0_42, %c144] : memref<4x512xf32, #tpu.memory_space<vmem>>, vector<4x256xf32>
    %c28 = arith.constant 28 : index
    %c0_43 = arith.constant 0 : index
    %58 = vector.load %arg11[%c28, %c0_43] : memref<36x256xf32, #tpu.memory_space<vmem>>, vector<4x256xf32>
    tpu.vector_store %arg11[%c28, %c0_43], %57 {strides = array<i32>} : memref<36x256xf32, #tpu.memory_space<vmem>>, vector<4x256xf32>,
    %c0_44 = arith.constant 0 : index
    %c145 = arith.constant 145 : index
    %59 = vector.load %arg10[%c0_44, %c145] : memref<4x512xf32, #tpu.memory_space<vmem>>, vector<4x256xf32>
    %cst_45 = arith.constant 0.000000e+00 : f32
    %60 = vector.broadcast %cst_45 : f32 to vector<4x256xf32>
    %61 = arith.select %25, %59, %60 : vector<4x256xi1>, vector<4x256xf32>
    %c32 = arith.constant 32 : index
    %c0_46 = arith.constant 0 : index
    %62 = vector.load %arg11[%c32, %c0_46] : memref<36x256xf32, #tpu.memory_space<vmem>>, vector<4x256xf32>
    tpu.vector_store %arg11[%c32, %c0_46], %61 {strides = array<i32>} : memref<36x256xf32, #tpu.memory_space<vmem>>, vector<4x256xf32>,
    %c0_47 = arith.constant 0 : index
    %c0_48 = arith.constant 0 : index
    %63 = vector.load %arg11[%c0_47, %c0_48] : memref<36x256xf32, #tpu.memory_space<vmem>>, vector<36x256xf32>
    %cst_49 = arith.constant dense<0.000000e+00> : vector<8x256xf32>
    %64 = tpu.matmul %0, %63, %cst_49 {dimension_numbers = #tpu.dot_dimension_numbers<[1], [0], [0], [1], [0, 0, 1, 1], [], []>} : vector<8x36xf32>, vector<36x256xf32>, vector<8x256xf32> -> vector<8x256xf32>
    %65 = vector.broadcast %1 : vector<8x1xf32> to vector<8x256xf32>
    %66 = arith.addf %64, %65 : vector<8x256xf32>
    %cst_50 = arith.constant 0.000000e+00 : f32
    %67 = vector.broadcast %cst_50 : f32 to vector<8x256xf32>
    %68 = arith.maximumf %66, %67 : vector<8x256xf32>
    %c0_51 = arith.constant 0 : index
    %c0_52 = arith.constant 0 : index
    %c0_53 = arith.constant 0 : index
    %69 = vector.load %arg7[%c0_51, %c0_52, %c0_53] : memref<8x8x256xf32, #tpu.memory_space<vmem>>, vector<1x8x256xf32>
    %70 = vector.shape_cast %69 : vector<1x8x256xf32> to vector<8x256xf32>
    %71 = vector.shape_cast %68 : vector<8x256xf32> to vector<1x8x256xf32>
    tpu.vector_store %arg7[%c0_51, %c0_52, %c0_53], %71 {strides = array<i32>} : memref<8x8x256xf32, #tpu.memory_space<vmem>>, vector<1x8x256xf32>,
    %c1 = arith.constant 1 : index
    %c0_54 = arith.constant 0 : index
    %c0_55 = arith.constant 0 : index
    %72 = vector.load %arg1[%c1, %c0_54, %c0_55] : memref<8x4x256xf32, #tpu.memory_space<vmem>>, vector<1x4x256xf32>
    %73 = vector.shape_cast %72 : vector<1x4x256xf32> to vector<4x256xf32>
    %c0_56 = arith.constant 0 : index
    %c128_57 = arith.constant 128 : index
    %74 = vector.load %arg10[%c0_56, %c128_57] : memref<4x512xf32, #tpu.memory_space<vmem>>, vector<4x256xf32>
    tpu.vector_store %arg10[%c0_56, %c128_57], %73 {strides = array<i32>} : memref<4x512xf32, #tpu.memory_space<vmem>>, vector<4x256xf32>,
    %c0_58 = arith.constant 0 : index
    %c111_59 = arith.constant 111 : index
    %75 = vector.load %arg10[%c0_58, %c111_59] : memref<4x512xf32, #tpu.memory_space<vmem>>, vector<4x256xf32>
    %cst_60 = arith.constant 0.000000e+00 : f32
    %76 = vector.broadcast %cst_60 : f32 to vector<4x256xf32>
    %77 = arith.select %23, %75, %76 : vector<4x256xi1>, vector<4x256xf32>
    %c0_61 = arith.constant 0 : index
    %c0_62 = arith.constant 0 : index
    %78 = vector.load %arg11[%c0_61, %c0_62] : memref<36x256xf32, #tpu.memory_space<vmem>>, vector<4x256xf32>
    tpu.vector_store %arg11[%c0_61, %c0_62], %77 {strides = array<i32>} : memref<36x256xf32, #tpu.memory_space<vmem>>, vector<4x256xf32>,
    %c0_63 = arith.constant 0 : index
    %c112_64 = arith.constant 112 : index
    %79 = vector.load %arg10[%c0_63, %c112_64] : memref<4x512xf32, #tpu.memory_space<vmem>>, vector<4x256xf32>
    %c4_65 = arith.constant 4 : index
    %c0_66 = arith.constant 0 : index
    %80 = vector.load %arg11[%c4_65, %c0_66] : memref<36x256xf32, #tpu.memory_space<vmem>>, vector<4x256xf32>
    tpu.vector_store %arg11[%c4_65, %c0_66], %79 {strides = array<i32>} : memref<36x256xf32, #tpu.memory_space<vmem>>, vector<4x256xf32>,
    %c0_67 = arith.constant 0 : index
    %c113_68 = arith.constant 113 : index
    %81 = vector.load %arg10[%c0_67, %c113_68] : memref<4x512xf32, #tpu.memory_space<vmem>>, vector<4x256xf32>
    %cst_69 = arith.constant 0.000000e+00 : f32
    %82 = vector.broadcast %cst_69 : f32 to vector<4x256xf32>
    %83 = arith.select %25, %81, %82 : vector<4x256xi1>, vector<4x256xf32>
    %c8_70 = arith.constant 8 : index
    %c0_71 = arith.constant 0 : index
    %84 = vector.load %arg11[%c8_70, %c0_71] : memref<36x256xf32, #tpu.memory_space<vmem>>, vector<4x256xf32>
    tpu.vector_store %arg11[%c8_70, %c0_71], %83 {strides = array<i32>} : memref<36x256xf32, #tpu.memory_space<vmem>>, vector<4x256xf32>,
    %c0_72 = arith.constant 0 : index
    %c127_73 = arith.constant 127 : index
    %85 = vector.load %arg10[%c0_72, %c127_73] : memref<4x512xf32, #tpu.memory_space<vmem>>, vector<4x256xf32>
    %cst_74 = arith.constant 0.000000e+00 : f32
    %86 = vector.broadcast %cst_74 : f32 to vector<4x256xf32>
    %87 = arith.select %23, %85, %86 : vector<4x256xi1>, vector<4x256xf32>
    %c12_75 = arith.constant 12 : index
    %c0_76 = arith.constant 0 : index
    %88 = vector.load %arg11[%c12_75, %c0_76] : memref<36x256xf32, #tpu.memory_space<vmem>>, vector<4x256xf32>
    tpu.vector_store %arg11[%c12_75, %c0_76], %87 {strides = array<i32>} : memref<36x256xf32, #tpu.memory_space<vmem>>, vector<4x256xf32>,
    %c0_77 = arith.constant 0 : index
    %c128_78 = arith.constant 128 : index
    %89 = vector.load %arg10[%c0_77, %c128_78] : memref<4x512xf32, #tpu.memory_space<vmem>>, vector<4x256xf32>
    %c16_79 = arith.constant 16 : index
    %c0_80 = arith.constant 0 : index
    %90 = vector.load %arg11[%c16_79, %c0_80] : memref<36x256xf32, #tpu.memory_space<vmem>>, vector<4x256xf32>
    tpu.vector_store %arg11[%c16_79, %c0_80], %89 {strides = array<i32>} : memref<36x256xf32, #tpu.memory_space<vmem>>, vector<4x256xf32>,
    %c0_81 = arith.constant 0 : index
    %c129_82 = arith.constant 129 : index
    %91 = vector.load %arg10[%c0_81, %c129_82] : memref<4x512xf32, #tpu.memory_space<vmem>>, vector<4x256xf32>
    %cst_83 = arith.constant 0.000000e+00 : f32
    %92 = vector.broadcast %cst_83 : f32 to vector<4x256xf32>
    %93 = arith.select %25, %91, %92 : vector<4x256xi1>, vector<4x256xf32>
    %c20_84 = arith.constant 20 : index
    %c0_85 = arith.constant 0 : index
    %94 = vector.load %arg11[%c20_84, %c0_85] : memref<36x256xf32, #tpu.memory_space<vmem>>, vector<4x256xf32>
    tpu.vector_store %arg11[%c20_84, %c0_85], %93 {strides = array<i32>} : memref<36x256xf32, #tpu.memory_space<vmem>>, vector<4x256xf32>,
    %c0_86 = arith.constant 0 : index
    %c143_87 = arith.constant 143 : index
    %95 = vector.load %arg10[%c0_86, %c143_87] : memref<4x512xf32, #tpu.memory_space<vmem>>, vector<4x256xf32>
    %cst_88 = arith.constant 0.000000e+00 : f32
    %96 = vector.broadcast %cst_88 : f32 to vector<4x256xf32>
    %97 = arith.select %23, %95, %96 : vector<4x256xi1>, vector<4x256xf32>
    %c24_89 = arith.constant 24 : index
    %c0_90 = arith.constant 0 : index
    %98 = vector.load %arg11[%c24_89, %c0_90] : memref<36x256xf32, #tpu.memory_space<vmem>>, vector<4x256xf32>
    tpu.vector_store %arg11[%c24_89, %c0_90], %97 {strides = array<i32>} : memref<36x256xf32, #tpu.memory_space<vmem>>, vector<4x256xf32>,
    %c0_91 = arith.constant 0 : index
    %c144_92 = arith.constant 144 : index
    %99 = vector.load %arg10[%c0_91, %c144_92] : memref<4x512xf32, #tpu.memory_space<vmem>>, vector<4x256xf32>
    %c28_93 = arith.constant 28 : index
    %c0_94 = arith.constant 0 : index
    %100 = vector.load %arg11[%c28_93, %c0_94] : memref<36x256xf32, #tpu.memory_space<vmem>>, vector<4x256xf32>
    tpu.vector_store %arg11[%c28_93, %c0_94], %99 {strides = array<i32>} : memref<36x256xf32, #tpu.memory_space<vmem>>, vector<4x256xf32>,
    %c0_95 = arith.constant 0 : index
    %c145_96 = arith.constant 145 : index
    %101 = vector.load %arg10[%c0_95, %c145_96] : memref<4x512xf32, #tpu.memory_space<vmem>>, vector<4x256xf32>
    %cst_97 = arith.constant 0.000000e+00 : f32
    %102 = vector.broadcast %cst_97 : f32 to vector<4x256xf32>
    %103 = arith.select %25, %101, %102 : vector<4x256xi1>, vector<4x256xf32>
    %c32_98 = arith.constant 32 : index
    %c0_99 = arith.constant 0 : index
    %104 = vector.load %arg11[%c32_98, %c0_99] : memref<36x256xf32, #tpu.memory_space<vmem>>, vector<4x256xf32>
    tpu.vector_store %arg11[%c32_98, %c0_99], %103 {strides = array<i32>} : memref<36x256xf32, #tpu.memory_space<vmem>>, vector<4x256xf32>,
    %c0_100 = arith.constant 0 : index
    %c0_101 = arith.constant 0 : index
    %105 = vector.load %arg11[%c0_100, %c0_101] : memref<36x256xf32, #tpu.memory_space<vmem>>, vector<36x256xf32>
    %cst_102 = arith.constant dense<0.000000e+00> : vector<8x256xf32>
    %106 = tpu.matmul %0, %105, %cst_102 {dimension_numbers = #tpu.dot_dimension_numbers<[1], [0], [0], [1], [0, 0, 1, 1], [], []>} : vector<8x36xf32>, vector<36x256xf32>, vector<8x256xf32> -> vector<8x256xf32>
    %107 = vector.broadcast %1 : vector<8x1xf32> to vector<8x256xf32>
    %108 = arith.addf %106, %107 : vector<8x256xf32>
    %cst_103 = arith.constant 0.000000e+00 : f32
    %109 = vector.broadcast %cst_103 : f32 to vector<8x256xf32>
    %110 = arith.maximumf %108, %109 : vector<8x256xf32>
    %c1_104 = arith.constant 1 : index
    %c0_105 = arith.constant 0 : index
    %c0_106 = arith.constant 0 : index
    %111 = vector.load %arg7[%c1_104, %c0_105, %c0_106] : memref<8x8x256xf32, #tpu.memory_space<vmem>>, vector<1x8x256xf32>
    %112 = vector.shape_cast %111 : vector<1x8x256xf32> to vector<8x256xf32>
    %113 = vector.shape_cast %110 : vector<8x256xf32> to vector<1x8x256xf32>
    tpu.vector_store %arg7[%c1_104, %c0_105, %c0_106], %113 {strides = array<i32>} : memref<8x8x256xf32, #tpu.memory_space<vmem>>, vector<1x8x256xf32>,
    %c2 = arith.constant 2 : index
    %c0_107 = arith.constant 0 : index
    %c0_108 = arith.constant 0 : index
    %114 = vector.load %arg1[%c2, %c0_107, %c0_108] : memref<8x4x256xf32, #tpu.memory_space<vmem>>, vector<1x4x256xf32>
    %115 = vector.shape_cast %114 : vector<1x4x256xf32> to vector<4x256xf32>
    %c0_109 = arith.constant 0 : index
    %c128_110 = arith.constant 128 : index
    %116 = vector.load %arg10[%c0_109, %c128_110] : memref<4x512xf32, #tpu.memory_space<vmem>>, vector<4x256xf32>
    tpu.vector_store %arg10[%c0_109, %c128_110], %115 {strides = array<i32>} : memref<4x512xf32, #tpu.memory_space<vmem>>, vector<4x256xf32>,
    %c0_111 = arith.constant 0 : index
    %c111_112 = arith.constant 111 : index
    %117 = vector.load %arg10[%c0_111, %c111_112] : memref<4x512xf32, #tpu.memory_space<vmem>>, vector<4x256xf32>
    %cst_113 = arith.constant 0.000000e+00 : f32
    %118 = vector.broadcast %cst_113 : f32 to vector<4x256xf32>
    %119 = arith.select %23, %117, %118 : vector<4x256xi1>, vector<4x256xf32>
    %c0_114 = arith.constant 0 : index
    %c0_115 = arith.constant 0 : index
    %120 = vector.load %arg11[%c0_114, %c0_115] : memref<36x256xf32, #tpu.memory_space<vmem>>, vector<4x256xf32>
    tpu.vector_store %arg11[%c0_114, %c0_115], %119 {strides = array<i32>} : memref<36x256xf32, #tpu.memory_space<vmem>>, vector<4x256xf32>,
    %c0_116 = arith.constant 0 : index
    %c112_117 = arith.constant 112 : index
    %121 = vector.load %arg10[%c0_116, %c112_117] : memref<4x512xf32, #tpu.memory_space<vmem>>, vector<4x256xf32>
    %c4_118 = arith.constant 4 : index
    %c0_119 = arith.constant 0 : index
    %122 = vector.load %arg11[%c4_118, %c0_119] : memref<36x256xf32, #tpu.memory_space<vmem>>, vector<4x256xf32>
    tpu.vector_store %arg11[%c4_118, %c0_119], %121 {strides = array<i32>} : memref<36x256xf32, #tpu.memory_space<vmem>>, vector<4x256xf32>,
    %c0_120 = arith.constant 0 : index
    %c113_121 = arith.constant 113 : index
    %123 = vector.load %arg10[%c0_120, %c113_121] : memref<4x512xf32, #tpu.memory_space<vmem>>, vector<4x256xf32>
    %cst_122 = arith.constant 0.000000e+00 : f32
    %124 = vector.broadcast %cst_122 : f32 to vector<4x256xf32>
    %125 = arith.select %25, %123, %124 : vector<4x256xi1>, vector<4x256xf32>
    %c8_123 = arith.constant 8 : index
    %c0_124 = arith.constant 0 : index
    %126 = vector.load %arg11[%c8_123, %c0_124] : memref<36x256xf32, #tpu.memory_space<vmem>>, vector<4x256xf32>
    tpu.vector_store %arg11[%c8_123, %c0_124], %125 {strides = array<i32>} : memref<36x256xf32, #tpu.memory_space<vmem>>, vector<4x256xf32>,
    %c0_125 = arith.constant 0 : index
    %c127_126 = arith.constant 127 : index
    %127 = vector.load %arg10[%c0_125, %c127_126] : memref<4x512xf32, #tpu.memory_space<vmem>>, vector<4x256xf32>
    %cst_127 = arith.constant 0.000000e+00 : f32
    %128 = vector.broadcast %cst_127 : f32 to vector<4x256xf32>
    %129 = arith.select %23, %127, %128 : vector<4x256xi1>, vector<4x256xf32>
    %c12_128 = arith.constant 12 : index
    %c0_129 = arith.constant 0 : index
    %130 = vector.load %arg11[%c12_128, %c0_129] : memref<36x256xf32, #tpu.memory_space<vmem>>, vector<4x256xf32>
    tpu.vector_store %arg11[%c12_128, %c0_129], %129 {strides = array<i32>} : memref<36x256xf32, #tpu.memory_space<vmem>>, vector<4x256xf32>,
    %c0_130 = arith.constant 0 : index
    %c128_131 = arith.constant 128 : index
    %131 = vector.load %arg10[%c0_130, %c128_131] : memref<4x512xf32, #tpu.memory_space<vmem>>, vector<4x256xf32>
    %c16_132 = arith.constant 16 : index
    %c0_133 = arith.constant 0 : index
    %132 = vector.load %arg11[%c16_132, %c0_133] : memref<36x256xf32, #tpu.memory_space<vmem>>, vector<4x256xf32>
    tpu.vector_store %arg11[%c16_132, %c0_133], %131 {strides = array<i32>} : memref<36x256xf32, #tpu.memory_space<vmem>>, vector<4x256xf32>,
    %c0_134 = arith.constant 0 : index
    %c129_135 = arith.constant 129 : index
    %133 = vector.load %arg10[%c0_134, %c129_135] : memref<4x512xf32, #tpu.memory_space<vmem>>, vector<4x256xf32>
    %cst_136 = arith.constant 0.000000e+00 : f32
    %134 = vector.broadcast %cst_136 : f32 to vector<4x256xf32>
    %135 = arith.select %25, %133, %134 : vector<4x256xi1>, vector<4x256xf32>
    %c20_137 = arith.constant 20 : index
    %c0_138 = arith.constant 0 : index
    %136 = vector.load %arg11[%c20_137, %c0_138] : memref<36x256xf32, #tpu.memory_space<vmem>>, vector<4x256xf32>
    tpu.vector_store %arg11[%c20_137, %c0_138], %135 {strides = array<i32>} : memref<36x256xf32, #tpu.memory_space<vmem>>, vector<4x256xf32>,
    %c0_139 = arith.constant 0 : index
    %c143_140 = arith.constant 143 : index
    %137 = vector.load %arg10[%c0_139, %c143_140] : memref<4x512xf32, #tpu.memory_space<vmem>>, vector<4x256xf32>
    %cst_141 = arith.constant 0.000000e+00 : f32
    %138 = vector.broadcast %cst_141 : f32 to vector<4x256xf32>
    %139 = arith.select %23, %137, %138 : vector<4x256xi1>, vector<4x256xf32>
    %c24_142 = arith.constant 24 : index
    %c0_143 = arith.constant 0 : index
    %140 = vector.load %arg11[%c24_142, %c0_143] : memref<36x256xf32, #tpu.memory_space<vmem>>, vector<4x256xf32>
    tpu.vector_store %arg11[%c24_142, %c0_143], %139 {strides = array<i32>} : memref<36x256xf32, #tpu.memory_space<vmem>>, vector<4x256xf32>,
    %c0_144 = arith.constant 0 : index
    %c144_145 = arith.constant 144 : index
    %141 = vector.load %arg10[%c0_144, %c144_145] : memref<4x512xf32, #tpu.memory_space<vmem>>, vector<4x256xf32>
    %c28_146 = arith.constant 28 : index
    %c0_147 = arith.constant 0 : index
    %142 = vector.load %arg11[%c28_146, %c0_147] : memref<36x256xf32, #tpu.memory_space<vmem>>, vector<4x256xf32>
    tpu.vector_store %arg11[%c28_146, %c0_147], %141 {strides = array<i32>} : memref<36x256xf32, #tpu.memory_space<vmem>>, vector<4x256xf32>,
    %c0_148 = arith.constant 0 : index
    %c145_149 = arith.constant 145 : index
    %143 = vector.load %arg10[%c0_148, %c145_149] : memref<4x512xf32, #tpu.memory_space<vmem>>, vector<4x256xf32>
    %cst_150 = arith.constant 0.000000e+00 : f32
    %144 = vector.broadcast %cst_150 : f32 to vector<4x256xf32>
    %145 = arith.select %25, %143, %144 : vector<4x256xi1>, vector<4x256xf32>
    %c32_151 = arith.constant 32 : index
    %c0_152 = arith.constant 0 : index
    %146 = vector.load %arg11[%c32_151, %c0_152] : memref<36x256xf32, #tpu.memory_space<vmem>>, vector<4x256xf32>
    tpu.vector_store %arg11[%c32_151, %c0_152], %145 {strides = array<i32>} : memref<36x256xf32, #tpu.memory_space<vmem>>, vector<4x256xf32>,
    %c0_153 = arith.constant 0 : index
    %c0_154 = arith.constant 0 : index
    %147 = vector.load %arg11[%c0_153, %c0_154] : memref<36x256xf32, #tpu.memory_space<vmem>>, vector<36x256xf32>
    %cst_155 = arith.constant dense<0.000000e+00> : vector<8x256xf32>
    %148 = tpu.matmul %0, %147, %cst_155 {dimension_numbers = #tpu.dot_dimension_numbers<[1], [0], [0], [1], [0, 0, 1, 1], [], []>} : vector<8x36xf32>, vector<36x256xf32>, vector<8x256xf32> -> vector<8x256xf32>
    %149 = vector.broadcast %1 : vector<8x1xf32> to vector<8x256xf32>
    %150 = arith.addf %148, %149 : vector<8x256xf32>
    %cst_156 = arith.constant 0.000000e+00 : f32
    %151 = vector.broadcast %cst_156 : f32 to vector<8x256xf32>
    %152 = arith.maximumf %150, %151 : vector<8x256xf32>
    %c2_157 = arith.constant 2 : index
    %c0_158 = arith.constant 0 : index
    %c0_159 = arith.constant 0 : index
    %153 = vector.load %arg7[%c2_157, %c0_158, %c0_159] : memref<8x8x256xf32, #tpu.memory_space<vmem>>, vector<1x8x256xf32>
    %154 = vector.shape_cast %153 : vector<1x8x256xf32> to vector<8x256xf32>
    %155 = vector.shape_cast %152 : vector<8x256xf32> to vector<1x8x256xf32>
    tpu.vector_store %arg7[%c2_157, %c0_158, %c0_159], %155 {strides = array<i32>} : memref<8x8x256xf32, #tpu.memory_space<vmem>>, vector<1x8x256xf32>,
    %c3 = arith.constant 3 : index
    %c0_160 = arith.constant 0 : index
    %c0_161 = arith.constant 0 : index
    %156 = vector.load %arg1[%c3, %c0_160, %c0_161] : memref<8x4x256xf32, #tpu.memory_space<vmem>>, vector<1x4x256xf32>
    %157 = vector.shape_cast %156 : vector<1x4x256xf32> to vector<4x256xf32>
    %c0_162 = arith.constant 0 : index
    %c128_163 = arith.constant 128 : index
    %158 = vector.load %arg10[%c0_162, %c128_163] : memref<4x512xf32, #tpu.memory_space<vmem>>, vector<4x256xf32>
    tpu.vector_store %arg10[%c0_162, %c128_163], %157 {strides = array<i32>} : memref<4x512xf32, #tpu.memory_space<vmem>>, vector<4x256xf32>,
    %c0_164 = arith.constant 0 : index
    %c111_165 = arith.constant 111 : index
    %159 = vector.load %arg10[%c0_164, %c111_165] : memref<4x512xf32, #tpu.memory_space<vmem>>, vector<4x256xf32>
    %cst_166 = arith.constant 0.000000e+00 : f32
    %160 = vector.broadcast %cst_166 : f32 to vector<4x256xf32>
    %161 = arith.select %23, %159, %160 : vector<4x256xi1>, vector<4x256xf32>
    %c0_167 = arith.constant 0 : index
    %c0_168 = arith.constant 0 : index
    %162 = vector.load %arg11[%c0_167, %c0_168] : memref<36x256xf32, #tpu.memory_space<vmem>>, vector<4x256xf32>
    tpu.vector_store %arg11[%c0_167, %c0_168], %161 {strides = array<i32>} : memref<36x256xf32, #tpu.memory_space<vmem>>, vector<4x256xf32>,
    %c0_169 = arith.constant 0 : index
    %c112_170 = arith.constant 112 : index
    %163 = vector.load %arg10[%c0_169, %c112_170] : memref<4x512xf32, #tpu.memory_space<vmem>>, vector<4x256xf32>
    %c4_171 = arith.constant 4 : index
    %c0_172 = arith.constant 0 : index
    %164 = vector.load %arg11[%c4_171, %c0_172] : memref<36x256xf32, #tpu.memory_space<vmem>>, vector<4x256xf32>
    tpu.vector_store %arg11[%c4_171, %c0_172], %163 {strides = array<i32>} : memref<36x256xf32, #tpu.memory_space<vmem>>, vector<4x256xf32>,
    %c0_173 = arith.constant 0 : index
    %c113_174 = arith.constant 113 : index
    %165 = vector.load %arg10[%c0_173, %c113_174] : memref<4x512xf32, #tpu.memory_space<vmem>>, vector<4x256xf32>
    %cst_175 = arith.constant 0.000000e+00 : f32
    %166 = vector.broadcast %cst_175 : f32 to vector<4x256xf32>
    %167 = arith.select %25, %165, %166 : vector<4x256xi1>, vector<4x256xf32>
    %c8_176 = arith.constant 8 : index
    %c0_177 = arith.constant 0 : index
    %168 = vector.load %arg11[%c8_176, %c0_177] : memref<36x256xf32, #tpu.memory_space<vmem>>, vector<4x256xf32>
    tpu.vector_store %arg11[%c8_176, %c0_177], %167 {strides = array<i32>} : memref<36x256xf32, #tpu.memory_space<vmem>>, vector<4x256xf32>,
    %c0_178 = arith.constant 0 : index
    %c127_179 = arith.constant 127 : index
    %169 = vector.load %arg10[%c0_178, %c127_179] : memref<4x512xf32, #tpu.memory_space<vmem>>, vector<4x256xf32>
    %cst_180 = arith.constant 0.000000e+00 : f32
    %170 = vector.broadcast %cst_180 : f32 to vector<4x256xf32>
    %171 = arith.select %23, %169, %170 : vector<4x256xi1>, vector<4x256xf32>
    %c12_181 = arith.constant 12 : index
    %c0_182 = arith.constant 0 : index
    %172 = vector.load %arg11[%c12_181, %c0_182] : memref<36x256xf32, #tpu.memory_space<vmem>>, vector<4x256xf32>
    tpu.vector_store %arg11[%c12_181, %c0_182], %171 {strides = array<i32>} : memref<36x256xf32, #tpu.memory_space<vmem>>, vector<4x256xf32>,
    %c0_183 = arith.constant 0 : index
    %c128_184 = arith.constant 128 : index
    %173 = vector.load %arg10[%c0_183, %c128_184] : memref<4x512xf32, #tpu.memory_space<vmem>>, vector<4x256xf32>
    %c16_185 = arith.constant 16 : index
    %c0_186 = arith.constant 0 : index
    %174 = vector.load %arg11[%c16_185, %c0_186] : memref<36x256xf32, #tpu.memory_space<vmem>>, vector<4x256xf32>
    tpu.vector_store %arg11[%c16_185, %c0_186], %173 {strides = array<i32>} : memref<36x256xf32, #tpu.memory_space<vmem>>, vector<4x256xf32>,
    %c0_187 = arith.constant 0 : index
    %c129_188 = arith.constant 129 : index
    %175 = vector.load %arg10[%c0_187, %c129_188] : memref<4x512xf32, #tpu.memory_space<vmem>>, vector<4x256xf32>
    %cst_189 = arith.constant 0.000000e+00 : f32
    %176 = vector.broadcast %cst_189 : f32 to vector<4x256xf32>
    %177 = arith.select %25, %175, %176 : vector<4x256xi1>, vector<4x256xf32>
    %c20_190 = arith.constant 20 : index
    %c0_191 = arith.constant 0 : index
    %178 = vector.load %arg11[%c20_190, %c0_191] : memref<36x256xf32, #tpu.memory_space<vmem>>, vector<4x256xf32>
    tpu.vector_store %arg11[%c20_190, %c0_191], %177 {strides = array<i32>} : memref<36x256xf32, #tpu.memory_space<vmem>>, vector<4x256xf32>,
    %c0_192 = arith.constant 0 : index
    %c143_193 = arith.constant 143 : index
    %179 = vector.load %arg10[%c0_192, %c143_193] : memref<4x512xf32, #tpu.memory_space<vmem>>, vector<4x256xf32>
    %cst_194 = arith.constant 0.000000e+00 : f32
    %180 = vector.broadcast %cst_194 : f32 to vector<4x256xf32>
    %181 = arith.select %23, %179, %180 : vector<4x256xi1>, vector<4x256xf32>
    %c24_195 = arith.constant 24 : index
    %c0_196 = arith.constant 0 : index
    %182 = vector.load %arg11[%c24_195, %c0_196] : memref<36x256xf32, #tpu.memory_space<vmem>>, vector<4x256xf32>
    tpu.vector_store %arg11[%c24_195, %c0_196], %181 {strides = array<i32>} : memref<36x256xf32, #tpu.memory_space<vmem>>, vector<4x256xf32>,
    %c0_197 = arith.constant 0 : index
    %c144_198 = arith.constant 144 : index
    %183 = vector.load %arg10[%c0_197, %c144_198] : memref<4x512xf32, #tpu.memory_space<vmem>>, vector<4x256xf32>
    %c28_199 = arith.constant 28 : index
    %c0_200 = arith.constant 0 : index
    %184 = vector.load %arg11[%c28_199, %c0_200] : memref<36x256xf32, #tpu.memory_space<vmem>>, vector<4x256xf32>
    tpu.vector_store %arg11[%c28_199, %c0_200], %183 {strides = array<i32>} : memref<36x256xf32, #tpu.memory_space<vmem>>, vector<4x256xf32>,
    %c0_201 = arith.constant 0 : index
    %c145_202 = arith.constant 145 : index
    %185 = vector.load %arg10[%c0_201, %c145_202] : memref<4x512xf32, #tpu.memory_space<vmem>>, vector<4x256xf32>
    %cst_203 = arith.constant 0.000000e+00 : f32
    %186 = vector.broadcast %cst_203 : f32 to vector<4x256xf32>
    %187 = arith.select %25, %185, %186 : vector<4x256xi1>, vector<4x256xf32>
    %c32_204 = arith.constant 32 : index
    %c0_205 = arith.constant 0 : index
    %188 = vector.load %arg11[%c32_204, %c0_205] : memref<36x256xf32, #tpu.memory_space<vmem>>, vector<4x256xf32>
    tpu.vector_store %arg11[%c32_204, %c0_205], %187 {strides = array<i32>} : memref<36x256xf32, #tpu.memory_space<vmem>>, vector<4x256xf32>,
    %c0_206 = arith.constant 0 : index
    %c0_207 = arith.constant 0 : index
    %189 = vector.load %arg11[%c0_206, %c0_207] : memref<36x256xf32, #tpu.memory_space<vmem>>, vector<36x256xf32>
    %cst_208 = arith.constant dense<0.000000e+00> : vector<8x256xf32>
    %190 = tpu.matmul %0, %189, %cst_208 {dimension_numbers = #tpu.dot_dimension_numbers<[1], [0], [0], [1], [0, 0, 1, 1], [], []>} : vector<8x36xf32>, vector<36x256xf32>, vector<8x256xf32> -> vector<8x256xf32>
    %191 = vector.broadcast %1 : vector<8x1xf32> to vector<8x256xf32>
    %192 = arith.addf %190, %191 : vector<8x256xf32>
    %cst_209 = arith.constant 0.000000e+00 : f32
    %193 = vector.broadcast %cst_209 : f32 to vector<8x256xf32>
    %194 = arith.maximumf %192, %193 : vector<8x256xf32>
    %c3_210 = arith.constant 3 : index
    %c0_211 = arith.constant 0 : index
    %c0_212 = arith.constant 0 : index
    %195 = vector.load %arg7[%c3_210, %c0_211, %c0_212] : memref<8x8x256xf32, #tpu.memory_space<vmem>>, vector<1x8x256xf32>
    %196 = vector.shape_cast %195 : vector<1x8x256xf32> to vector<8x256xf32>
    %197 = vector.shape_cast %194 : vector<8x256xf32> to vector<1x8x256xf32>
    tpu.vector_store %arg7[%c3_210, %c0_211, %c0_212], %197 {strides = array<i32>} : memref<8x8x256xf32, #tpu.memory_space<vmem>>, vector<1x8x256xf32>,
    %c4_213 = arith.constant 4 : index
    %c0_214 = arith.constant 0 : index
    %c0_215 = arith.constant 0 : index
    %198 = vector.load %arg1[%c4_213, %c0_214, %c0_215] : memref<8x4x256xf32, #tpu.memory_space<vmem>>, vector<1x4x256xf32>
    %199 = vector.shape_cast %198 : vector<1x4x256xf32> to vector<4x256xf32>
    %c0_216 = arith.constant 0 : index
    %c128_217 = arith.constant 128 : index
    %200 = vector.load %arg10[%c0_216, %c128_217] : memref<4x512xf32, #tpu.memory_space<vmem>>, vector<4x256xf32>
    tpu.vector_store %arg10[%c0_216, %c128_217], %199 {strides = array<i32>} : memref<4x512xf32, #tpu.memory_space<vmem>>, vector<4x256xf32>,
    %c0_218 = arith.constant 0 : index
    %c111_219 = arith.constant 111 : index
    %201 = vector.load %arg10[%c0_218, %c111_219] : memref<4x512xf32, #tpu.memory_space<vmem>>, vector<4x256xf32>
    %cst_220 = arith.constant 0.000000e+00 : f32
    %202 = vector.broadcast %cst_220 : f32 to vector<4x256xf32>
    %203 = arith.select %23, %201, %202 : vector<4x256xi1>, vector<4x256xf32>
    %c0_221 = arith.constant 0 : index
    %c0_222 = arith.constant 0 : index
    %204 = vector.load %arg11[%c0_221, %c0_222] : memref<36x256xf32, #tpu.memory_space<vmem>>, vector<4x256xf32>
    tpu.vector_store %arg11[%c0_221, %c0_222], %203 {strides = array<i32>} : memref<36x256xf32, #tpu.memory_space<vmem>>, vector<4x256xf32>,
    %c0_223 = arith.constant 0 : index
    %c112_224 = arith.constant 112 : index
    %205 = vector.load %arg10[%c0_223, %c112_224] : memref<4x512xf32, #tpu.memory_space<vmem>>, vector<4x256xf32>
    %c4_225 = arith.constant 4 : index
    %c0_226 = arith.constant 0 : index
    %206 = vector.load %arg11[%c4_225, %c0_226] : memref<36x256xf32, #tpu.memory_space<vmem>>, vector<4x256xf32>
    tpu.vector_store %arg11[%c4_225, %c0_226], %205 {strides = array<i32>} : memref<36x256xf32, #tpu.memory_space<vmem>>, vector<4x256xf32>,
    %c0_227 = arith.constant 0 : index
    %c113_228 = arith.constant 113 : index
    %207 = vector.load %arg10[%c0_227, %c113_228] : memref<4x512xf32, #tpu.memory_space<vmem>>, vector<4x256xf32>
    %cst_229 = arith.constant 0.000000e+00 : f32
    %208 = vector.broadcast %cst_229 : f32 to vector<4x256xf32>
    %209 = arith.select %25, %207, %208 : vector<4x256xi1>, vector<4x256xf32>
    %c8_230 = arith.constant 8 : index
    %c0_231 = arith.constant 0 : index
    %210 = vector.load %arg11[%c8_230, %c0_231] : memref<36x256xf32, #tpu.memory_space<vmem>>, vector<4x256xf32>
    tpu.vector_store %arg11[%c8_230, %c0_231], %209 {strides = array<i32>} : memref<36x256xf32, #tpu.memory_space<vmem>>, vector<4x256xf32>,
    %c0_232 = arith.constant 0 : index
    %c127_233 = arith.constant 127 : index
    %211 = vector.load %arg10[%c0_232, %c127_233] : memref<4x512xf32, #tpu.memory_space<vmem>>, vector<4x256xf32>
    %cst_234 = arith.constant 0.000000e+00 : f32
    %212 = vector.broadcast %cst_234 : f32 to vector<4x256xf32>
    %213 = arith.select %23, %211, %212 : vector<4x256xi1>, vector<4x256xf32>
    %c12_235 = arith.constant 12 : index
    %c0_236 = arith.constant 0 : index
    %214 = vector.load %arg11[%c12_235, %c0_236] : memref<36x256xf32, #tpu.memory_space<vmem>>, vector<4x256xf32>
    tpu.vector_store %arg11[%c12_235, %c0_236], %213 {strides = array<i32>} : memref<36x256xf32, #tpu.memory_space<vmem>>, vector<4x256xf32>,
    %c0_237 = arith.constant 0 : index
    %c128_238 = arith.constant 128 : index
    %215 = vector.load %arg10[%c0_237, %c128_238] : memref<4x512xf32, #tpu.memory_space<vmem>>, vector<4x256xf32>
    %c16_239 = arith.constant 16 : index
    %c0_240 = arith.constant 0 : index
    %216 = vector.load %arg11[%c16_239, %c0_240] : memref<36x256xf32, #tpu.memory_space<vmem>>, vector<4x256xf32>
    tpu.vector_store %arg11[%c16_239, %c0_240], %215 {strides = array<i32>} : memref<36x256xf32, #tpu.memory_space<vmem>>, vector<4x256xf32>,
    %c0_241 = arith.constant 0 : index
    %c129_242 = arith.constant 129 : index
    %217 = vector.load %arg10[%c0_241, %c129_242] : memref<4x512xf32, #tpu.memory_space<vmem>>, vector<4x256xf32>
    %cst_243 = arith.constant 0.000000e+00 : f32
    %218 = vector.broadcast %cst_243 : f32 to vector<4x256xf32>
    %219 = arith.select %25, %217, %218 : vector<4x256xi1>, vector<4x256xf32>
    %c20_244 = arith.constant 20 : index
    %c0_245 = arith.constant 0 : index
    %220 = vector.load %arg11[%c20_244, %c0_245] : memref<36x256xf32, #tpu.memory_space<vmem>>, vector<4x256xf32>
    tpu.vector_store %arg11[%c20_244, %c0_245], %219 {strides = array<i32>} : memref<36x256xf32, #tpu.memory_space<vmem>>, vector<4x256xf32>,
    %c0_246 = arith.constant 0 : index
    %c143_247 = arith.constant 143 : index
    %221 = vector.load %arg10[%c0_246, %c143_247] : memref<4x512xf32, #tpu.memory_space<vmem>>, vector<4x256xf32>
    %cst_248 = arith.constant 0.000000e+00 : f32
    %222 = vector.broadcast %cst_248 : f32 to vector<4x256xf32>
    %223 = arith.select %23, %221, %222 : vector<4x256xi1>, vector<4x256xf32>
    %c24_249 = arith.constant 24 : index
    %c0_250 = arith.constant 0 : index
    %224 = vector.load %arg11[%c24_249, %c0_250] : memref<36x256xf32, #tpu.memory_space<vmem>>, vector<4x256xf32>
    tpu.vector_store %arg11[%c24_249, %c0_250], %223 {strides = array<i32>} : memref<36x256xf32, #tpu.memory_space<vmem>>, vector<4x256xf32>,
    %c0_251 = arith.constant 0 : index
    %c144_252 = arith.constant 144 : index
    %225 = vector.load %arg10[%c0_251, %c144_252] : memref<4x512xf32, #tpu.memory_space<vmem>>, vector<4x256xf32>
    %c28_253 = arith.constant 28 : index
    %c0_254 = arith.constant 0 : index
    %226 = vector.load %arg11[%c28_253, %c0_254] : memref<36x256xf32, #tpu.memory_space<vmem>>, vector<4x256xf32>
    tpu.vector_store %arg11[%c28_253, %c0_254], %225 {strides = array<i32>} : memref<36x256xf32, #tpu.memory_space<vmem>>, vector<4x256xf32>,
    %c0_255 = arith.constant 0 : index
    %c145_256 = arith.constant 145 : index
    %227 = vector.load %arg10[%c0_255, %c145_256] : memref<4x512xf32, #tpu.memory_space<vmem>>, vector<4x256xf32>
    %cst_257 = arith.constant 0.000000e+00 : f32
    %228 = vector.broadcast %cst_257 : f32 to vector<4x256xf32>
    %229 = arith.select %25, %227, %228 : vector<4x256xi1>, vector<4x256xf32>
    %c32_258 = arith.constant 32 : index
    %c0_259 = arith.constant 0 : index
    %230 = vector.load %arg11[%c32_258, %c0_259] : memref<36x256xf32, #tpu.memory_space<vmem>>, vector<4x256xf32>
    tpu.vector_store %arg11[%c32_258, %c0_259], %229 {strides = array<i32>} : memref<36x256xf32, #tpu.memory_space<vmem>>, vector<4x256xf32>,
    %c0_260 = arith.constant 0 : index
    %c0_261 = arith.constant 0 : index
    %231 = vector.load %arg11[%c0_260, %c0_261] : memref<36x256xf32, #tpu.memory_space<vmem>>, vector<36x256xf32>
    %cst_262 = arith.constant dense<0.000000e+00> : vector<8x256xf32>
    %232 = tpu.matmul %0, %231, %cst_262 {dimension_numbers = #tpu.dot_dimension_numbers<[1], [0], [0], [1], [0, 0, 1, 1], [], []>} : vector<8x36xf32>, vector<36x256xf32>, vector<8x256xf32> -> vector<8x256xf32>
    %233 = vector.broadcast %1 : vector<8x1xf32> to vector<8x256xf32>
    %234 = arith.addf %232, %233 : vector<8x256xf32>
    %cst_263 = arith.constant 0.000000e+00 : f32
    %235 = vector.broadcast %cst_263 : f32 to vector<8x256xf32>
    %236 = arith.maximumf %234, %235 : vector<8x256xf32>
    %c4_264 = arith.constant 4 : index
    %c0_265 = arith.constant 0 : index
    %c0_266 = arith.constant 0 : index
    %237 = vector.load %arg7[%c4_264, %c0_265, %c0_266] : memref<8x8x256xf32, #tpu.memory_space<vmem>>, vector<1x8x256xf32>
    %238 = vector.shape_cast %237 : vector<1x8x256xf32> to vector<8x256xf32>
    %239 = vector.shape_cast %236 : vector<8x256xf32> to vector<1x8x256xf32>
    tpu.vector_store %arg7[%c4_264, %c0_265, %c0_266], %239 {strides = array<i32>} : memref<8x8x256xf32, #tpu.memory_space<vmem>>, vector<1x8x256xf32>,
    %c5 = arith.constant 5 : index
    %c0_267 = arith.constant 0 : index
    %c0_268 = arith.constant 0 : index
    %240 = vector.load %arg1[%c5, %c0_267, %c0_268] : memref<8x4x256xf32, #tpu.memory_space<vmem>>, vector<1x4x256xf32>
    %241 = vector.shape_cast %240 : vector<1x4x256xf32> to vector<4x256xf32>
    %c0_269 = arith.constant 0 : index
    %c128_270 = arith.constant 128 : index
    %242 = vector.load %arg10[%c0_269, %c128_270] : memref<4x512xf32, #tpu.memory_space<vmem>>, vector<4x256xf32>
    tpu.vector_store %arg10[%c0_269, %c128_270], %241 {strides = array<i32>} : memref<4x512xf32, #tpu.memory_space<vmem>>, vector<4x256xf32>,
    %c0_271 = arith.constant 0 : index
    %c111_272 = arith.constant 111 : index
    %243 = vector.load %arg10[%c0_271, %c111_272] : memref<4x512xf32, #tpu.memory_space<vmem>>, vector<4x256xf32>
    %cst_273 = arith.constant 0.000000e+00 : f32
    %244 = vector.broadcast %cst_273 : f32 to vector<4x256xf32>
    %245 = arith.select %23, %243, %244 : vector<4x256xi1>, vector<4x256xf32>
    %c0_274 = arith.constant 0 : index
    %c0_275 = arith.constant 0 : index
    %246 = vector.load %arg11[%c0_274, %c0_275] : memref<36x256xf32, #tpu.memory_space<vmem>>, vector<4x256xf32>
    tpu.vector_store %arg11[%c0_274, %c0_275], %245 {strides = array<i32>} : memref<36x256xf32, #tpu.memory_space<vmem>>, vector<4x256xf32>,
    %c0_276 = arith.constant 0 : index
    %c112_277 = arith.constant 112 : index
    %247 = vector.load %arg10[%c0_276, %c112_277] : memref<4x512xf32, #tpu.memory_space<vmem>>, vector<4x256xf32>
    %c4_278 = arith.constant 4 : index
    %c0_279 = arith.constant 0 : index
    %248 = vector.load %arg11[%c4_278, %c0_279] : memref<36x256xf32, #tpu.memory_space<vmem>>, vector<4x256xf32>
    tpu.vector_store %arg11[%c4_278, %c0_279], %247 {strides = array<i32>} : memref<36x256xf32, #tpu.memory_space<vmem>>, vector<4x256xf32>,
    %c0_280 = arith.constant 0 : index
    %c113_281 = arith.constant 113 : index
    %249 = vector.load %arg10[%c0_280, %c113_281] : memref<4x512xf32, #tpu.memory_space<vmem>>, vector<4x256xf32>
    %cst_282 = arith.constant 0.000000e+00 : f32
    %250 = vector.broadcast %cst_282 : f32 to vector<4x256xf32>
    %251 = arith.select %25, %249, %250 : vector<4x256xi1>, vector<4x256xf32>
    %c8_283 = arith.constant 8 : index
    %c0_284 = arith.constant 0 : index
    %252 = vector.load %arg11[%c8_283, %c0_284] : memref<36x256xf32, #tpu.memory_space<vmem>>, vector<4x256xf32>
    tpu.vector_store %arg11[%c8_283, %c0_284], %251 {strides = array<i32>} : memref<36x256xf32, #tpu.memory_space<vmem>>, vector<4x256xf32>,
    %c0_285 = arith.constant 0 : index
    %c127_286 = arith.constant 127 : index
    %253 = vector.load %arg10[%c0_285, %c127_286] : memref<4x512xf32, #tpu.memory_space<vmem>>, vector<4x256xf32>
    %cst_287 = arith.constant 0.000000e+00 : f32
    %254 = vector.broadcast %cst_287 : f32 to vector<4x256xf32>
    %255 = arith.select %23, %253, %254 : vector<4x256xi1>, vector<4x256xf32>
    %c12_288 = arith.constant 12 : index
    %c0_289 = arith.constant 0 : index
    %256 = vector.load %arg11[%c12_288, %c0_289] : memref<36x256xf32, #tpu.memory_space<vmem>>, vector<4x256xf32>
    tpu.vector_store %arg11[%c12_288, %c0_289], %255 {strides = array<i32>} : memref<36x256xf32, #tpu.memory_space<vmem>>, vector<4x256xf32>,
    %c0_290 = arith.constant 0 : index
    %c128_291 = arith.constant 128 : index
    %257 = vector.load %arg10[%c0_290, %c128_291] : memref<4x512xf32, #tpu.memory_space<vmem>>, vector<4x256xf32>
    %c16_292 = arith.constant 16 : index
    %c0_293 = arith.constant 0 : index
    %258 = vector.load %arg11[%c16_292, %c0_293] : memref<36x256xf32, #tpu.memory_space<vmem>>, vector<4x256xf32>
    tpu.vector_store %arg11[%c16_292, %c0_293], %257 {strides = array<i32>} : memref<36x256xf32, #tpu.memory_space<vmem>>, vector<4x256xf32>,
    %c0_294 = arith.constant 0 : index
    %c129_295 = arith.constant 129 : index
    %259 = vector.load %arg10[%c0_294, %c129_295] : memref<4x512xf32, #tpu.memory_space<vmem>>, vector<4x256xf32>
    %cst_296 = arith.constant 0.000000e+00 : f32
    %260 = vector.broadcast %cst_296 : f32 to vector<4x256xf32>
    %261 = arith.select %25, %259, %260 : vector<4x256xi1>, vector<4x256xf32>
    %c20_297 = arith.constant 20 : index
    %c0_298 = arith.constant 0 : index
    %262 = vector.load %arg11[%c20_297, %c0_298] : memref<36x256xf32, #tpu.memory_space<vmem>>, vector<4x256xf32>
    tpu.vector_store %arg11[%c20_297, %c0_298], %261 {strides = array<i32>} : memref<36x256xf32, #tpu.memory_space<vmem>>, vector<4x256xf32>,
    %c0_299 = arith.constant 0 : index
    %c143_300 = arith.constant 143 : index
    %263 = vector.load %arg10[%c0_299, %c143_300] : memref<4x512xf32, #tpu.memory_space<vmem>>, vector<4x256xf32>
    %cst_301 = arith.constant 0.000000e+00 : f32
    %264 = vector.broadcast %cst_301 : f32 to vector<4x256xf32>
    %265 = arith.select %23, %263, %264 : vector<4x256xi1>, vector<4x256xf32>
    %c24_302 = arith.constant 24 : index
    %c0_303 = arith.constant 0 : index
    %266 = vector.load %arg11[%c24_302, %c0_303] : memref<36x256xf32, #tpu.memory_space<vmem>>, vector<4x256xf32>
    tpu.vector_store %arg11[%c24_302, %c0_303], %265 {strides = array<i32>} : memref<36x256xf32, #tpu.memory_space<vmem>>, vector<4x256xf32>,
    %c0_304 = arith.constant 0 : index
    %c144_305 = arith.constant 144 : index
    %267 = vector.load %arg10[%c0_304, %c144_305] : memref<4x512xf32, #tpu.memory_space<vmem>>, vector<4x256xf32>
    %c28_306 = arith.constant 28 : index
    %c0_307 = arith.constant 0 : index
    %268 = vector.load %arg11[%c28_306, %c0_307] : memref<36x256xf32, #tpu.memory_space<vmem>>, vector<4x256xf32>
    tpu.vector_store %arg11[%c28_306, %c0_307], %267 {strides = array<i32>} : memref<36x256xf32, #tpu.memory_space<vmem>>, vector<4x256xf32>,
    %c0_308 = arith.constant 0 : index
    %c145_309 = arith.constant 145 : index
    %269 = vector.load %arg10[%c0_308, %c145_309] : memref<4x512xf32, #tpu.memory_space<vmem>>, vector<4x256xf32>
    %cst_310 = arith.constant 0.000000e+00 : f32
    %270 = vector.broadcast %cst_310 : f32 to vector<4x256xf32>
    %271 = arith.select %25, %269, %270 : vector<4x256xi1>, vector<4x256xf32>
    %c32_311 = arith.constant 32 : index
    %c0_312 = arith.constant 0 : index
    %272 = vector.load %arg11[%c32_311, %c0_312] : memref<36x256xf32, #tpu.memory_space<vmem>>, vector<4x256xf32>
    tpu.vector_store %arg11[%c32_311, %c0_312], %271 {strides = array<i32>} : memref<36x256xf32, #tpu.memory_space<vmem>>, vector<4x256xf32>,
    %c0_313 = arith.constant 0 : index
    %c0_314 = arith.constant 0 : index
    %273 = vector.load %arg11[%c0_313, %c0_314] : memref<36x256xf32, #tpu.memory_space<vmem>>, vector<36x256xf32>
    %cst_315 = arith.constant dense<0.000000e+00> : vector<8x256xf32>
    %274 = tpu.matmul %0, %273, %cst_315 {dimension_numbers = #tpu.dot_dimension_numbers<[1], [0], [0], [1], [0, 0, 1, 1], [], []>} : vector<8x36xf32>, vector<36x256xf32>, vector<8x256xf32> -> vector<8x256xf32>
    %275 = vector.broadcast %1 : vector<8x1xf32> to vector<8x256xf32>
    %276 = arith.addf %274, %275 : vector<8x256xf32>
    %cst_316 = arith.constant 0.000000e+00 : f32
    %277 = vector.broadcast %cst_316 : f32 to vector<8x256xf32>
    %278 = arith.maximumf %276, %277 : vector<8x256xf32>
    %c5_317 = arith.constant 5 : index
    %c0_318 = arith.constant 0 : index
    %c0_319 = arith.constant 0 : index
    %279 = vector.load %arg7[%c5_317, %c0_318, %c0_319] : memref<8x8x256xf32, #tpu.memory_space<vmem>>, vector<1x8x256xf32>
    %280 = vector.shape_cast %279 : vector<1x8x256xf32> to vector<8x256xf32>
    %281 = vector.shape_cast %278 : vector<8x256xf32> to vector<1x8x256xf32>
    tpu.vector_store %arg7[%c5_317, %c0_318, %c0_319], %281 {strides = array<i32>} : memref<8x8x256xf32, #tpu.memory_space<vmem>>, vector<1x8x256xf32>,
    %c6 = arith.constant 6 : index
    %c0_320 = arith.constant 0 : index
    %c0_321 = arith.constant 0 : index
    %282 = vector.load %arg1[%c6, %c0_320, %c0_321] : memref<8x4x256xf32, #tpu.memory_space<vmem>>, vector<1x4x256xf32>
    %283 = vector.shape_cast %282 : vector<1x4x256xf32> to vector<4x256xf32>
    %c0_322 = arith.constant 0 : index
    %c128_323 = arith.constant 128 : index
    %284 = vector.load %arg10[%c0_322, %c128_323] : memref<4x512xf32, #tpu.memory_space<vmem>>, vector<4x256xf32>
    tpu.vector_store %arg10[%c0_322, %c128_323], %283 {strides = array<i32>} : memref<4x512xf32, #tpu.memory_space<vmem>>, vector<4x256xf32>,
    %c0_324 = arith.constant 0 : index
    %c111_325 = arith.constant 111 : index
    %285 = vector.load %arg10[%c0_324, %c111_325] : memref<4x512xf32, #tpu.memory_space<vmem>>, vector<4x256xf32>
    %cst_326 = arith.constant 0.000000e+00 : f32
    %286 = vector.broadcast %cst_326 : f32 to vector<4x256xf32>
    %287 = arith.select %23, %285, %286 : vector<4x256xi1>, vector<4x256xf32>
    %c0_327 = arith.constant 0 : index
    %c0_328 = arith.constant 0 : index
    %288 = vector.load %arg11[%c0_327, %c0_328] : memref<36x256xf32, #tpu.memory_space<vmem>>, vector<4x256xf32>
    tpu.vector_store %arg11[%c0_327, %c0_328], %287 {strides = array<i32>} : memref<36x256xf32, #tpu.memory_space<vmem>>, vector<4x256xf32>,
    %c0_329 = arith.constant 0 : index
    %c112_330 = arith.constant 112 : index
    %289 = vector.load %arg10[%c0_329, %c112_330] : memref<4x512xf32, #tpu.memory_space<vmem>>, vector<4x256xf32>
    %c4_331 = arith.constant 4 : index
    %c0_332 = arith.constant 0 : index
    %290 = vector.load %arg11[%c4_331, %c0_332] : memref<36x256xf32, #tpu.memory_space<vmem>>, vector<4x256xf32>
    tpu.vector_store %arg11[%c4_331, %c0_332], %289 {strides = array<i32>} : memref<36x256xf32, #tpu.memory_space<vmem>>, vector<4x256xf32>,
    %c0_333 = arith.constant 0 : index
    %c113_334 = arith.constant 113 : index
    %291 = vector.load %arg10[%c0_333, %c113_334] : memref<4x512xf32, #tpu.memory_space<vmem>>, vector<4x256xf32>
    %cst_335 = arith.constant 0.000000e+00 : f32
    %292 = vector.broadcast %cst_335 : f32 to vector<4x256xf32>
    %293 = arith.select %25, %291, %292 : vector<4x256xi1>, vector<4x256xf32>
    %c8_336 = arith.constant 8 : index
    %c0_337 = arith.constant 0 : index
    %294 = vector.load %arg11[%c8_336, %c0_337] : memref<36x256xf32, #tpu.memory_space<vmem>>, vector<4x256xf32>
    tpu.vector_store %arg11[%c8_336, %c0_337], %293 {strides = array<i32>} : memref<36x256xf32, #tpu.memory_space<vmem>>, vector<4x256xf32>,
    %c0_338 = arith.constant 0 : index
    %c127_339 = arith.constant 127 : index
    %295 = vector.load %arg10[%c0_338, %c127_339] : memref<4x512xf32, #tpu.memory_space<vmem>>, vector<4x256xf32>
    %cst_340 = arith.constant 0.000000e+00 : f32
    %296 = vector.broadcast %cst_340 : f32 to vector<4x256xf32>
    %297 = arith.select %23, %295, %296 : vector<4x256xi1>, vector<4x256xf32>
    %c12_341 = arith.constant 12 : index
    %c0_342 = arith.constant 0 : index
    %298 = vector.load %arg11[%c12_341, %c0_342] : memref<36x256xf32, #tpu.memory_space<vmem>>, vector<4x256xf32>
    tpu.vector_store %arg11[%c12_341, %c0_342], %297 {strides = array<i32>} : memref<36x256xf32, #tpu.memory_space<vmem>>, vector<4x256xf32>,
    %c0_343 = arith.constant 0 : index
    %c128_344 = arith.constant 128 : index
    %299 = vector.load %arg10[%c0_343, %c128_344] : memref<4x512xf32, #tpu.memory_space<vmem>>, vector<4x256xf32>
    %c16_345 = arith.constant 16 : index
    %c0_346 = arith.constant 0 : index
    %300 = vector.load %arg11[%c16_345, %c0_346] : memref<36x256xf32, #tpu.memory_space<vmem>>, vector<4x256xf32>
    tpu.vector_store %arg11[%c16_345, %c0_346], %299 {strides = array<i32>} : memref<36x256xf32, #tpu.memory_space<vmem>>, vector<4x256xf32>,
    %c0_347 = arith.constant 0 : index
    %c129_348 = arith.constant 129 : index
    %301 = vector.load %arg10[%c0_347, %c129_348] : memref<4x512xf32, #tpu.memory_space<vmem>>, vector<4x256xf32>
    %cst_349 = arith.constant 0.000000e+00 : f32
    %302 = vector.broadcast %cst_349 : f32 to vector<4x256xf32>
    %303 = arith.select %25, %301, %302 : vector<4x256xi1>, vector<4x256xf32>
    %c20_350 = arith.constant 20 : index
    %c0_351 = arith.constant 0 : index
    %304 = vector.load %arg11[%c20_350, %c0_351] : memref<36x256xf32, #tpu.memory_space<vmem>>, vector<4x256xf32>
    tpu.vector_store %arg11[%c20_350, %c0_351], %303 {strides = array<i32>} : memref<36x256xf32, #tpu.memory_space<vmem>>, vector<4x256xf32>,
    %c0_352 = arith.constant 0 : index
    %c143_353 = arith.constant 143 : index
    %305 = vector.load %arg10[%c0_352, %c143_353] : memref<4x512xf32, #tpu.memory_space<vmem>>, vector<4x256xf32>
    %cst_354 = arith.constant 0.000000e+00 : f32
    %306 = vector.broadcast %cst_354 : f32 to vector<4x256xf32>
    %307 = arith.select %23, %305, %306 : vector<4x256xi1>, vector<4x256xf32>
    %c24_355 = arith.constant 24 : index
    %c0_356 = arith.constant 0 : index
    %308 = vector.load %arg11[%c24_355, %c0_356] : memref<36x256xf32, #tpu.memory_space<vmem>>, vector<4x256xf32>
    tpu.vector_store %arg11[%c24_355, %c0_356], %307 {strides = array<i32>} : memref<36x256xf32, #tpu.memory_space<vmem>>, vector<4x256xf32>,
    %c0_357 = arith.constant 0 : index
    %c144_358 = arith.constant 144 : index
    %309 = vector.load %arg10[%c0_357, %c144_358] : memref<4x512xf32, #tpu.memory_space<vmem>>, vector<4x256xf32>
    %c28_359 = arith.constant 28 : index
    %c0_360 = arith.constant 0 : index
    %310 = vector.load %arg11[%c28_359, %c0_360] : memref<36x256xf32, #tpu.memory_space<vmem>>, vector<4x256xf32>
    tpu.vector_store %arg11[%c28_359, %c0_360], %309 {strides = array<i32>} : memref<36x256xf32, #tpu.memory_space<vmem>>, vector<4x256xf32>,
    %c0_361 = arith.constant 0 : index
    %c145_362 = arith.constant 145 : index
    %311 = vector.load %arg10[%c0_361, %c145_362] : memref<4x512xf32, #tpu.memory_space<vmem>>, vector<4x256xf32>
    %cst_363 = arith.constant 0.000000e+00 : f32
    %312 = vector.broadcast %cst_363 : f32 to vector<4x256xf32>
    %313 = arith.select %25, %311, %312 : vector<4x256xi1>, vector<4x256xf32>
    %c32_364 = arith.constant 32 : index
    %c0_365 = arith.constant 0 : index
    %314 = vector.load %arg11[%c32_364, %c0_365] : memref<36x256xf32, #tpu.memory_space<vmem>>, vector<4x256xf32>
    tpu.vector_store %arg11[%c32_364, %c0_365], %313 {strides = array<i32>} : memref<36x256xf32, #tpu.memory_space<vmem>>, vector<4x256xf32>,
    %c0_366 = arith.constant 0 : index
    %c0_367 = arith.constant 0 : index
    %315 = vector.load %arg11[%c0_366, %c0_367] : memref<36x256xf32, #tpu.memory_space<vmem>>, vector<36x256xf32>
    %cst_368 = arith.constant dense<0.000000e+00> : vector<8x256xf32>
    %316 = tpu.matmul %0, %315, %cst_368 {dimension_numbers = #tpu.dot_dimension_numbers<[1], [0], [0], [1], [0, 0, 1, 1], [], []>} : vector<8x36xf32>, vector<36x256xf32>, vector<8x256xf32> -> vector<8x256xf32>
    %317 = vector.broadcast %1 : vector<8x1xf32> to vector<8x256xf32>
    %318 = arith.addf %316, %317 : vector<8x256xf32>
    %cst_369 = arith.constant 0.000000e+00 : f32
    %319 = vector.broadcast %cst_369 : f32 to vector<8x256xf32>
    %320 = arith.maximumf %318, %319 : vector<8x256xf32>
    %c6_370 = arith.constant 6 : index
    %c0_371 = arith.constant 0 : index
    %c0_372 = arith.constant 0 : index
    %321 = vector.load %arg7[%c6_370, %c0_371, %c0_372] : memref<8x8x256xf32, #tpu.memory_space<vmem>>, vector<1x8x256xf32>
    %322 = vector.shape_cast %321 : vector<1x8x256xf32> to vector<8x256xf32>
    %323 = vector.shape_cast %320 : vector<8x256xf32> to vector<1x8x256xf32>
    tpu.vector_store %arg7[%c6_370, %c0_371, %c0_372], %323 {strides = array<i32>} : memref<8x8x256xf32, #tpu.memory_space<vmem>>, vector<1x8x256xf32>,
    %c7 = arith.constant 7 : index
    %c0_373 = arith.constant 0 : index
    %c0_374 = arith.constant 0 : index
    %324 = vector.load %arg1[%c7, %c0_373, %c0_374] : memref<8x4x256xf32, #tpu.memory_space<vmem>>, vector<1x4x256xf32>
    %325 = vector.shape_cast %324 : vector<1x4x256xf32> to vector<4x256xf32>
    %c0_375 = arith.constant 0 : index
    %c128_376 = arith.constant 128 : index
    %326 = vector.load %arg10[%c0_375, %c128_376] : memref<4x512xf32, #tpu.memory_space<vmem>>, vector<4x256xf32>
    tpu.vector_store %arg10[%c0_375, %c128_376], %325 {strides = array<i32>} : memref<4x512xf32, #tpu.memory_space<vmem>>, vector<4x256xf32>,
    %c0_377 = arith.constant 0 : index
    %c111_378 = arith.constant 111 : index
    %327 = vector.load %arg10[%c0_377, %c111_378] : memref<4x512xf32, #tpu.memory_space<vmem>>, vector<4x256xf32>
    %cst_379 = arith.constant 0.000000e+00 : f32
    %328 = vector.broadcast %cst_379 : f32 to vector<4x256xf32>
    %329 = arith.select %23, %327, %328 : vector<4x256xi1>, vector<4x256xf32>
    %c0_380 = arith.constant 0 : index
    %c0_381 = arith.constant 0 : index
    %330 = vector.load %arg11[%c0_380, %c0_381] : memref<36x256xf32, #tpu.memory_space<vmem>>, vector<4x256xf32>
    tpu.vector_store %arg11[%c0_380, %c0_381], %329 {strides = array<i32>} : memref<36x256xf32, #tpu.memory_space<vmem>>, vector<4x256xf32>,
    %c0_382 = arith.constant 0 : index
    %c112_383 = arith.constant 112 : index
    %331 = vector.load %arg10[%c0_382, %c112_383] : memref<4x512xf32, #tpu.memory_space<vmem>>, vector<4x256xf32>
    %c4_384 = arith.constant 4 : index
    %c0_385 = arith.constant 0 : index
    %332 = vector.load %arg11[%c4_384, %c0_385] : memref<36x256xf32, #tpu.memory_space<vmem>>, vector<4x256xf32>
    tpu.vector_store %arg11[%c4_384, %c0_385], %331 {strides = array<i32>} : memref<36x256xf32, #tpu.memory_space<vmem>>, vector<4x256xf32>,
    %c0_386 = arith.constant 0 : index
    %c113_387 = arith.constant 113 : index
    %333 = vector.load %arg10[%c0_386, %c113_387] : memref<4x512xf32, #tpu.memory_space<vmem>>, vector<4x256xf32>
    %cst_388 = arith.constant 0.000000e+00 : f32
    %334 = vector.broadcast %cst_388 : f32 to vector<4x256xf32>
    %335 = arith.select %25, %333, %334 : vector<4x256xi1>, vector<4x256xf32>
    %c8_389 = arith.constant 8 : index
    %c0_390 = arith.constant 0 : index
    %336 = vector.load %arg11[%c8_389, %c0_390] : memref<36x256xf32, #tpu.memory_space<vmem>>, vector<4x256xf32>
    tpu.vector_store %arg11[%c8_389, %c0_390], %335 {strides = array<i32>} : memref<36x256xf32, #tpu.memory_space<vmem>>, vector<4x256xf32>,
    %c0_391 = arith.constant 0 : index
    %c127_392 = arith.constant 127 : index
    %337 = vector.load %arg10[%c0_391, %c127_392] : memref<4x512xf32, #tpu.memory_space<vmem>>, vector<4x256xf32>
    %cst_393 = arith.constant 0.000000e+00 : f32
    %338 = vector.broadcast %cst_393 : f32 to vector<4x256xf32>
    %339 = arith.select %23, %337, %338 : vector<4x256xi1>, vector<4x256xf32>
    %c12_394 = arith.constant 12 : index
    %c0_395 = arith.constant 0 : index
    %340 = vector.load %arg11[%c12_394, %c0_395] : memref<36x256xf32, #tpu.memory_space<vmem>>, vector<4x256xf32>
    tpu.vector_store %arg11[%c12_394, %c0_395], %339 {strides = array<i32>} : memref<36x256xf32, #tpu.memory_space<vmem>>, vector<4x256xf32>,
    %c0_396 = arith.constant 0 : index
    %c128_397 = arith.constant 128 : index
    %341 = vector.load %arg10[%c0_396, %c128_397] : memref<4x512xf32, #tpu.memory_space<vmem>>, vector<4x256xf32>
    %c16_398 = arith.constant 16 : index
    %c0_399 = arith.constant 0 : index
    %342 = vector.load %arg11[%c16_398, %c0_399] : memref<36x256xf32, #tpu.memory_space<vmem>>, vector<4x256xf32>
    tpu.vector_store %arg11[%c16_398, %c0_399], %341 {strides = array<i32>} : memref<36x256xf32, #tpu.memory_space<vmem>>, vector<4x256xf32>,
    %c0_400 = arith.constant 0 : index
    %c129_401 = arith.constant 129 : index
    %343 = vector.load %arg10[%c0_400, %c129_401] : memref<4x512xf32, #tpu.memory_space<vmem>>, vector<4x256xf32>
    %cst_402 = arith.constant 0.000000e+00 : f32
    %344 = vector.broadcast %cst_402 : f32 to vector<4x256xf32>
    %345 = arith.select %25, %343, %344 : vector<4x256xi1>, vector<4x256xf32>
    %c20_403 = arith.constant 20 : index
    %c0_404 = arith.constant 0 : index
    %346 = vector.load %arg11[%c20_403, %c0_404] : memref<36x256xf32, #tpu.memory_space<vmem>>, vector<4x256xf32>
    tpu.vector_store %arg11[%c20_403, %c0_404], %345 {strides = array<i32>} : memref<36x256xf32, #tpu.memory_space<vmem>>, vector<4x256xf32>,
    %c0_405 = arith.constant 0 : index
    %c143_406 = arith.constant 143 : index
    %347 = vector.load %arg10[%c0_405, %c143_406] : memref<4x512xf32, #tpu.memory_space<vmem>>, vector<4x256xf32>
    %cst_407 = arith.constant 0.000000e+00 : f32
    %348 = vector.broadcast %cst_407 : f32 to vector<4x256xf32>
    %349 = arith.select %23, %347, %348 : vector<4x256xi1>, vector<4x256xf32>
    %c24_408 = arith.constant 24 : index
    %c0_409 = arith.constant 0 : index
    %350 = vector.load %arg11[%c24_408, %c0_409] : memref<36x256xf32, #tpu.memory_space<vmem>>, vector<4x256xf32>
    tpu.vector_store %arg11[%c24_408, %c0_409], %349 {strides = array<i32>} : memref<36x256xf32, #tpu.memory_space<vmem>>, vector<4x256xf32>,
    %c0_410 = arith.constant 0 : index
    %c144_411 = arith.constant 144 : index
    %351 = vector.load %arg10[%c0_410, %c144_411] : memref<4x512xf32, #tpu.memory_space<vmem>>, vector<4x256xf32>
    %c28_412 = arith.constant 28 : index
    %c0_413 = arith.constant 0 : index
    %352 = vector.load %arg11[%c28_412, %c0_413] : memref<36x256xf32, #tpu.memory_space<vmem>>, vector<4x256xf32>
    tpu.vector_store %arg11[%c28_412, %c0_413], %351 {strides = array<i32>} : memref<36x256xf32, #tpu.memory_space<vmem>>, vector<4x256xf32>,
    %c0_414 = arith.constant 0 : index
    %c145_415 = arith.constant 145 : index
    %353 = vector.load %arg10[%c0_414, %c145_415] : memref<4x512xf32, #tpu.memory_space<vmem>>, vector<4x256xf32>
    %cst_416 = arith.constant 0.000000e+00 : f32
    %354 = vector.broadcast %cst_416 : f32 to vector<4x256xf32>
    %355 = arith.select %25, %353, %354 : vector<4x256xi1>, vector<4x256xf32>
    %c32_417 = arith.constant 32 : index
    %c0_418 = arith.constant 0 : index
    %356 = vector.load %arg11[%c32_417, %c0_418] : memref<36x256xf32, #tpu.memory_space<vmem>>, vector<4x256xf32>
    tpu.vector_store %arg11[%c32_417, %c0_418], %355 {strides = array<i32>} : memref<36x256xf32, #tpu.memory_space<vmem>>, vector<4x256xf32>,
    %c0_419 = arith.constant 0 : index
    %c0_420 = arith.constant 0 : index
    %357 = vector.load %arg11[%c0_419, %c0_420] : memref<36x256xf32, #tpu.memory_space<vmem>>, vector<36x256xf32>
    %cst_421 = arith.constant dense<0.000000e+00> : vector<8x256xf32>
    %358 = tpu.matmul %0, %357, %cst_421 {dimension_numbers = #tpu.dot_dimension_numbers<[1], [0], [0], [1], [0, 0, 1, 1], [], []>} : vector<8x36xf32>, vector<36x256xf32>, vector<8x256xf32> -> vector<8x256xf32>
    %359 = vector.broadcast %1 : vector<8x1xf32> to vector<8x256xf32>
    %360 = arith.addf %358, %359 : vector<8x256xf32>
    %cst_422 = arith.constant 0.000000e+00 : f32
    %361 = vector.broadcast %cst_422 : f32 to vector<8x256xf32>
    %362 = arith.maximumf %360, %361 : vector<8x256xf32>
    %c7_423 = arith.constant 7 : index
    %c0_424 = arith.constant 0 : index
    %c0_425 = arith.constant 0 : index
    %363 = vector.load %arg7[%c7_423, %c0_424, %c0_425] : memref<8x8x256xf32, #tpu.memory_space<vmem>>, vector<1x8x256xf32>
    %364 = vector.shape_cast %363 : vector<1x8x256xf32> to vector<8x256xf32>
    %365 = vector.shape_cast %362 : vector<8x256xf32> to vector<1x8x256xf32>
    tpu.vector_store %arg7[%c7_423, %c0_424, %c0_425], %365 {strides = array<i32>} : memref<8x8x256xf32, #tpu.memory_space<vmem>>, vector<1x8x256xf32>,
    %c0_426 = arith.constant 0 : index
    %c0_427 = arith.constant 0 : index
    %c0_428 = arith.constant 0 : index
    %366 = vector.load %arg7[%c0_426, %c0_427, %c0_428] : memref<8x8x256xf32, #tpu.memory_space<vmem>>, vector<8x1x256xf32>
    %367 = vector.shape_cast %366 : vector<8x1x256xf32> to vector<8x256xf32>
    %cst_429 = arith.constant dense<0.000000e+00> : vector<8x64xf32>
    %368 = tpu.matmul %367, %2, %cst_429 {dimension_numbers = #tpu.dot_dimension_numbers<[1], [0], [0], [1], [0, 0, 1, 1], [], []>} : vector<8x256xf32>, vector<256x64xf32>, vector<8x64xf32> -> vector<8x64xf32>
    %c0_430 = arith.constant 0 : index
    %c1_431 = arith.constant 1 : index
    %c0_432 = arith.constant 0 : index
    %369 = vector.load %arg7[%c0_430, %c1_431, %c0_432] : memref<8x8x256xf32, #tpu.memory_space<vmem>>, vector<8x1x256xf32>
    %370 = vector.shape_cast %369 : vector<8x1x256xf32> to vector<8x256xf32>
    %cst_433 = arith.constant dense<0.000000e+00> : vector<8x64xf32>
    %371 = tpu.matmul %370, %2, %cst_433 {dimension_numbers = #tpu.dot_dimension_numbers<[1], [0], [0], [1], [0, 0, 1, 1], [], []>} : vector<8x256xf32>, vector<256x64xf32>, vector<8x64xf32> -> vector<8x64xf32>
    %c0_434 = arith.constant 0 : index
    %c2_435 = arith.constant 2 : index
    %c0_436 = arith.constant 0 : index
    %372 = vector.load %arg7[%c0_434, %c2_435, %c0_436] : memref<8x8x256xf32, #tpu.memory_space<vmem>>, vector<8x1x256xf32>
    %373 = vector.shape_cast %372 : vector<8x1x256xf32> to vector<8x256xf32>
    %cst_437 = arith.constant dense<0.000000e+00> : vector<8x64xf32>
    %374 = tpu.matmul %373, %2, %cst_437 {dimension_numbers = #tpu.dot_dimension_numbers<[1], [0], [0], [1], [0, 0, 1, 1], [], []>} : vector<8x256xf32>, vector<256x64xf32>, vector<8x64xf32> -> vector<8x64xf32>
    %c0_438 = arith.constant 0 : index
    %c3_439 = arith.constant 3 : index
    %c0_440 = arith.constant 0 : index
    %375 = vector.load %arg7[%c0_438, %c3_439, %c0_440] : memref<8x8x256xf32, #tpu.memory_space<vmem>>, vector<8x1x256xf32>
    %376 = vector.shape_cast %375 : vector<8x1x256xf32> to vector<8x256xf32>
    %cst_441 = arith.constant dense<0.000000e+00> : vector<8x64xf32>
    %377 = tpu.matmul %376, %2, %cst_441 {dimension_numbers = #tpu.dot_dimension_numbers<[1], [0], [0], [1], [0, 0, 1, 1], [], []>} : vector<8x256xf32>, vector<256x64xf32>, vector<8x64xf32> -> vector<8x64xf32>
    %c0_442 = arith.constant 0 : index
    %c4_443 = arith.constant 4 : index
    %c0_444 = arith.constant 0 : index
    %378 = vector.load %arg7[%c0_442, %c4_443, %c0_444] : memref<8x8x256xf32, #tpu.memory_space<vmem>>, vector<8x1x256xf32>
    %379 = vector.shape_cast %378 : vector<8x1x256xf32> to vector<8x256xf32>
    %cst_445 = arith.constant dense<0.000000e+00> : vector<8x64xf32>
    %380 = tpu.matmul %379, %2, %cst_445 {dimension_numbers = #tpu.dot_dimension_numbers<[1], [0], [0], [1], [0, 0, 1, 1], [], []>} : vector<8x256xf32>, vector<256x64xf32>, vector<8x64xf32> -> vector<8x64xf32>
    %c0_446 = arith.constant 0 : index
    %c5_447 = arith.constant 5 : index
    %c0_448 = arith.constant 0 : index
    %381 = vector.load %arg7[%c0_446, %c5_447, %c0_448] : memref<8x8x256xf32, #tpu.memory_space<vmem>>, vector<8x1x256xf32>
    %382 = vector.shape_cast %381 : vector<8x1x256xf32> to vector<8x256xf32>
    %cst_449 = arith.constant dense<0.000000e+00> : vector<8x64xf32>
    %383 = tpu.matmul %382, %2, %cst_449 {dimension_numbers = #tpu.dot_dimension_numbers<[1], [0], [0], [1], [0, 0, 1, 1], [], []>} : vector<8x256xf32>, vector<256x64xf32>, vector<8x64xf32> -> vector<8x64xf32>
    %c0_450 = arith.constant 0 : index
    %c6_451 = arith.constant 6 : index
    %c0_452 = arith.constant 0 : index
    %384 = vector.load %arg7[%c0_450, %c6_451, %c0_452] : memref<8x8x256xf32, #tpu.memory_space<vmem>>, vector<8x1x256xf32>
    %385 = vector.shape_cast %384 : vector<8x1x256xf32> to vector<8x256xf32>
    %cst_453 = arith.constant dense<0.000000e+00> : vector<8x64xf32>
    %386 = tpu.matmul %385, %2, %cst_453 {dimension_numbers = #tpu.dot_dimension_numbers<[1], [0], [0], [1], [0, 0, 1, 1], [], []>} : vector<8x256xf32>, vector<256x64xf32>, vector<8x64xf32> -> vector<8x64xf32>
    %c0_454 = arith.constant 0 : index
    %c7_455 = arith.constant 7 : index
    %c0_456 = arith.constant 0 : index
    %387 = vector.load %arg7[%c0_454, %c7_455, %c0_456] : memref<8x8x256xf32, #tpu.memory_space<vmem>>, vector<8x1x256xf32>
    %388 = vector.shape_cast %387 : vector<8x1x256xf32> to vector<8x256xf32>
    %cst_457 = arith.constant dense<0.000000e+00> : vector<8x64xf32>
    %389 = tpu.matmul %388, %2, %cst_457 {dimension_numbers = #tpu.dot_dimension_numbers<[1], [0], [0], [1], [0, 0, 1, 1], [], []>} : vector<8x256xf32>, vector<256x64xf32>, vector<8x64xf32> -> vector<8x64xf32>
    %390 = tpu.concatenate %368, %371, %374, %377, %380, %383, %386, %389 in 1 : vector<8x64xf32>, vector<8x64xf32>, vector<8x64xf32>, vector<8x64xf32>, vector<8x64xf32>, vector<8x64xf32>, vector<8x64xf32>, vector<8x64xf32> -> vector<8x512xf32>
    %c0_458 = arith.constant 0 : index
    %c0_459 = arith.constant 0 : index
    %c0_460 = arith.constant 0 : index
    %391 = vector.load %arg8[%c0_458, %c0_459, %c0_460] : memref<8x1x512xf32, #tpu.memory_space<vmem>>, vector<8x1x512xf32>
    %392 = vector.shape_cast %391 : vector<8x1x512xf32> to vector<8x512xf32>
    %393 = vector.shape_cast %390 : vector<8x512xf32> to vector<8x1x512xf32>
    tpu.vector_store %arg8[%c0_458, %c0_459, %c0_460], %393 {strides = array<i32>} : memref<8x1x512xf32, #tpu.memory_space<vmem>>, vector<8x1x512xf32>,
    %cst_461 = arith.constant dense<0.000000e+00> : vector<8x10xf32>
    %394 = tpu.matmul %390, %3, %cst_461 {dimension_numbers = #tpu.dot_dimension_numbers<[1], [0], [0], [1], [0, 0, 1, 1], [], []>} : vector<8x512xf32>, vector<512x10xf32>, vector<8x10xf32> -> vector<8x10xf32>
    %395 = vector.broadcast %4 : vector<1x10xf32> to vector<8x10xf32>
    %396 = arith.addf %394, %395 : vector<8x10xf32>
    %c0_462 = arith.constant 0 : index
    %c0_463 = arith.constant 0 : index
    %c0_464 = arith.constant 0 : index
    %397 = vector.load %arg9[%c0_462, %c0_463, %c0_464] : memref<8x1x10xf32, #tpu.memory_space<vmem>>, vector<8x1x10xf32>
    %398 = vector.shape_cast %397 : vector<8x1x10xf32> to vector<8x10xf32>
    %399 = vector.shape_cast %396 : vector<8x10xf32> to vector<8x1x10xf32>
    tpu.vector_store %arg9[%c0_462, %c0_463, %c0_464], %399 {strides = array<i32>} : memref<8x1x10xf32, #tpu.memory_space<vmem>>, vector<8x1x10xf32>,
    return
  }
  func.func @transform_0(%arg0: i32) -> (i32, i32, i32) {
    %c0_i32 = arith.constant 0 : i32
    %c0_i32_0 = arith.constant 0 : i32
    %c0_i32_1 = arith.constant 0 : i32
    return %arg0, %c0_i32, %c0_i32_0 : i32, i32, i32
  }
  func.func @transform_1(%arg0: i32) -> (i32, i32) {
    %c0_i32 = arith.constant 0 : i32
    %c0_i32_0 = arith.constant 0 : i32
    %c0_i32_1 = arith.constant 0 : i32
    return %c0_i32, %c0_i32_0 : i32, i32
  }
  func.func @transform_2(%arg0: i32) -> (i32, i32) {
    %c0_i32 = arith.constant 0 : i32
    %c0_i32_0 = arith.constant 0 : i32
    %c0_i32_1 = arith.constant 0 : i32
    return %c0_i32, %c0_i32_0 : i32, i32
  }
  func.func @transform_3(%arg0: i32) -> (i32, i32) {
    %c0_i32 = arith.constant 0 : i32
    %c0_i32_0 = arith.constant 0 : i32
    %c0_i32_1 = arith.constant 0 : i32
    return %c0_i32, %c0_i32_0 : i32, i32
  }
  func.func @transform_4(%arg0: i32) -> (i32, i32) {
    %c0_i32 = arith.constant 0 : i32
    %c0_i32_0 = arith.constant 0 : i32
    %c0_i32_1 = arith.constant 0 : i32
    return %c0_i32, %c0_i32_0 : i32, i32
  }
  func.func @transform_5(%arg0: i32) -> (i32, i32) {
    %c0_i32 = arith.constant 0 : i32
    %c0_i32_0 = arith.constant 0 : i32
    %c0_i32_1 = arith.constant 0 : i32
    return %c0_i32, %c0_i32_0 : i32, i32
  }
  func.func @transform_6(%arg0: i32) -> (i32, i32, i32) {
    %c0_i32 = arith.constant 0 : i32
    %c0_i32_0 = arith.constant 0 : i32
    %c0_i32_1 = arith.constant 0 : i32
    return %arg0, %c0_i32, %c0_i32_0 : i32, i32, i32
  }
  func.func @transform_7(%arg0: i32) -> (i32, i32, i32) {
    %c0_i32 = arith.constant 0 : i32
    %c0_i32_0 = arith.constant 0 : i32
    %c0_i32_1 = arith.constant 0 : i32
    return %arg0, %c0_i32, %c0_i32_0 : i32, i32, i32
  }
  func.func @transform_8(%arg0: i32) -> (i32, i32, i32) {
    %c0_i32 = arith.constant 0 : i32
    %c0_i32_0 = arith.constant 0 : i32
    %c0_i32_1 = arith.constant 0 : i32
    return %arg0, %c0_i32, %c0_i32_0 : i32, i32, i32
  }
}

</mosaic_0001>

<llo_original>
// kernel: early_exit_forward.1
$region0: #{early_exit_forward.1}
  #allocation0 [shape = 'u32[]', space=smem, size = 0x4, offset = 0x4, fixed_abs, tag = 'smem constant byte address 0x4 - core index']
  #allocation1 [shape = 'u32[144,128]{1,0:T(1,128)}', space=vmem, size = 0x12000, scoped, tag = 'internal scratch']
  #allocation2 [shape = 'f32[4,512]{1,0:T(4,128)}', space=vmem, size = 0x2000, scoped, tag = 'scratch operand']
  #allocation3 [shape = 'f32[36,256]{1,0:T(8,128)}', space=vmem, size = 0xa000, scoped, tag = 'scratch operand']
  %s0 = inlined_call_operand.vmem [shape: f32[16,4,256], index: 0, kind: input, shape index: {}]
  %s1 = inlined_call_operand.vmem [shape: f32[8,36], index: 1, kind: input, shape index: {}]
  %s2 = inlined_call_operand.vmem [shape: f32[8,1], index: 2, kind: input, shape index: {}]
  %s3 = inlined_call_operand.vmem [shape: f32[256,64], index: 3, kind: input, shape index: {}]
  %s4 = inlined_call_operand.vmem [shape: f32[512,10], index: 4, kind: input, shape index: {}]
  %s5 = inlined_call_operand.vmem [shape: f32[1,10], index: 5, kind: input, shape index: {}]
  %s6 = inlined_call_operand.vmem [shape: f32[16,8,256], index: 6, kind: output, shape index: {0}]
  %s7 = inlined_call_operand.vmem [shape: f32[16,1,512], index: 7, kind: output, shape index: {1}]
  %s8 = inlined_call_operand.hbm [shape: f32[16,1,10], index: 8, kind: output, shape index: {2}]
  %9 = xla_tuple %s6, %s7, %s8
  %s10 = sld [smem:[#allocation0]]
  $region73: #{early_exit_forward.1} parent=0
    _
  %s12 = ssub.s32 1, %s10
  %s13 = scalar_select 0, %s12, %s10
  $region1: #{early_exit_forward.1} parent=0
    #allocation4 [shape = 'u8[8192]{0}', space=vmem, size = 0x2000, scoped, tag = 'output window, operand 2']
    #allocation5 [shape = 's32[2]{0}', space=sflag, size = 0x8, scoped, tag = 'scoped memory for early_exit_forward.1']
    %14 = vsyncpa [#allocation5], 0
    %s15 = scalar_lea.sflag [#allocation5], 1
    %16 = vsyncpa %s15, 0
    loop: start=0, step=1, limit=4
    $region2: #{early_exit_forward.1} parent=1 // loop_pre_header
      _
    $region3: #{early_exit_forward.1} parent=1 // loop_header
      %s18 = sphi 0, %s22
      %p19 = scmp.ge.s32.totalorder %s18, 4
      %s28 = sphi 0, %s30
      %s31 = sphi 0, %s28
      %s32 = sphi 0, %s31
      %s48 = sphi 0, %s32
      %s52 = sphi 0, %s52
      %s54 = sphi 0, %s52
      %s55 = sphi 0, %s54
      %s69 = sphi 0, %s55
      %s73 = sphi 0, %s73
      %s75 = sphi 0, %s73
      %s76 = sphi 0, %s75
      %s90 = sphi 0, %s76
      %s94 = sphi 0, %s94
      %s96 = sphi 0, %s94
      %s97 = sphi 0, %s96
      %s111 = sphi 0, %s97
      %s115 = sphi 0, %s115
      %s117 = sphi 0, %s115
      %s118 = sphi 0, %s117
      %s132 = sphi 0, %s118
      %s136 = sphi 0, %s136
      %s138 = sphi 0, %s136
      %s139 = sphi 0, %s138
      %s153 = sphi 0, %s139
      %s159 = sphi 0, %s161
      %s162 = sphi 0, %s159
      %s163 = sphi 0, %s162
      %s179 = sphi 0, %s163
      %s185 = sphi 0, %s187
      %s188 = sphi 0, %s185
      %s189 = sphi 0, %s188
      %s205 = sphi 0, %s189
      %s211 = sphi 0, %s213
      %s214 = sphi 0, %s211
      %s215 = sphi 0, %s214
      %s231 = sphi 0, %s215
    $region4: #{early_exit_forward.1} parent=1 // loop_header_branch
      %21 = sbr.rel (%p19) target = $region8
    $region5: #{early_exit_forward.1} parent=1 // loop_body
      %s23 = ssub.s32 %s18, 1
      %s24 = ssub.s32 %s18, 2
      %s25 = sadd.s32 %s18, 1
      %s26 = ssub.s32 %s18, %s25
      %p27 = scmp.eq.s32.totalorder %s26, 0
      %s29 = sadd.s32 %s28, 1
      %s30 = scalar_select %p27, %s28, %s29
      %p33 = pneg %p27
      %p34 = scmp.eq.s32.totalorder %s18, 1
      %p35 = por %p33, %p34
      %p36 = scmp.ne.s32.totalorder %s28, %s31
      %p37 = scmp.eq.s32.totalorder %s18, 0
      %p38 = por %p36, %p37
      %p39 = scmp.ne.s32.totalorder %s28, %s31
      %p40 = scmp.eq.s32.totalorder %s23, 1
      %p41 = por %p39, %p40
      %p42 = scmp.ne.s32.totalorder %s31, %s32
      %p43 = scmp.eq.s32.totalorder %s23, 0
      %p44 = por %p42, %p43
      %p45 = scmp.ne.s32.totalorder %s31, %s32
      %p46 = scmp.eq.s32.totalorder %s24, 1
      %p47 = por %p45, %p46
      %p49 = scmp.ne.s32.totalorder %s32, %s48
      %p50 = scmp.eq.s32.totalorder %s24, 0
      %p51 = por %p49, %p50
      %s53 = sadd.s32 %s52, 1
      %p56 = scmp.eq.s32.totalorder %s18, 1
      %p57 = scmp.ne.s32.totalorder %s52, %s54
      %p58 = scmp.eq.s32.totalorder %s18, 0
      %p59 = por %p57, %p58
      %p60 = scmp.ne.s32.totalorder %s52, %s54
      %p61 = scmp.eq.s32.totalorder %s23, 1
      %p62 = por %p60, %p61
      %p63 = scmp.ne.s32.totalorder %s54, %s55
      %p64 = scmp.eq.s32.totalorder %s23, 0
      %p65 = por %p63, %p64
      %p66 = scmp.ne.s32.totalorder %s54, %s55
      %p67 = scmp.eq.s32.totalorder %s24, 1
      %p68 = por %p66, %p67
      %p70 = scmp.ne.s32.totalorder %s55, %s69
      %p71 = scmp.eq.s32.totalorder %s24, 0
      %p72 = por %p70, %p71
      %s74 = sadd.s32 %s73, 1
      %p77 = scmp.eq.s32.totalorder %s18, 1
      %p78 = scmp.ne.s32.totalorder %s73, %s75
      %p79 = scmp.eq.s32.totalorder %s18, 0
      %p80 = por %p78, %p79
      %p81 = scmp.ne.s32.totalorder %s73, %s75
      %p82 = scmp.eq.s32.totalorder %s23, 1
      %p83 = por %p81, %p82
      %p84 = scmp.ne.s32.totalorder %s75, %s76
      %p85 = scmp.eq.s32.totalorder %s23, 0
      %p86 = por %p84, %p85
      %p87 = scmp.ne.s32.totalorder %s75, %s76
      %p88 = scmp.eq.s32.totalorder %s24, 1
      %p89 = por %p87, %p88
      %p91 = scmp.ne.s32.totalorder %s76, %s90
      %p92 = scmp.eq.s32.totalorder %s24, 0
      %p93 = por %p91, %p92
      %s95 = sadd.s32 %s94, 1
      %p98 = scmp.eq.s32.totalorder %s18, 1
      %p99 = scmp.ne.s32.totalorder %s94, %s96
      %p100 = scmp.eq.s32.totalorder %s18, 0
      %p101 = por %p99, %p100
      %p102 = scmp.ne.s32.totalorder %s94, %s96
      %p103 = scmp.eq.s32.totalorder %s23, 1
      %p104 = por %p102, %p103
      %p105 = scmp.ne.s32.totalorder %s96, %s97
      %p106 = scmp.eq.s32.totalorder %s23, 0
      %p107 = por %p105, %p106
      %p108 = scmp.ne.s32.totalorder %s96, %s97
      %p109 = scmp.eq.s32.totalorder %s24, 1
      %p110 = por %p108, %p109
      %p112 = scmp.ne.s32.totalorder %s97, %s111
      %p113 = scmp.eq.s32.totalorder %s24, 0
      %p114 = por %p112, %p113
      %s116 = sadd.s32 %s115, 1
      %p119 = scmp.eq.s32.totalorder %s18, 1
      %p120 = scmp.ne.s32.totalorder %s115, %s117
      %p121 = scmp.eq.s32.totalorder %s18, 0
      %p122 = por %p120, %p121
      %p123 = scmp.ne.s32.totalorder %s115, %s117
      %p124 = scmp.eq.s32.totalorder %s23, 1
      %p125 = por %p123, %p124
      %p126 = scmp.ne.s32.totalorder %s117, %s118
      %p127 = scmp.eq.s32.totalorder %s23, 0
      %p128 = por %p126, %p127
      %p129 = scmp.ne.s32.totalorder %s117, %s118
      %p130 = scmp.eq.s32.totalorder %s24, 1
      %p131 = por %p129, %p130
      %p133 = scmp.ne.s32.totalorder %s118, %s132
      %p134 = scmp.eq.s32.totalorder %s24, 0
      %p135 = por %p133, %p134
      %s137 = sadd.s32 %s136, 1
      %p140 = scmp.eq.s32.totalorder %s18, 1
      %p141 = scmp.ne.s32.totalorder %s136, %s138
      %p142 = scmp.eq.s32.totalorder %s18, 0
      %p143 = por %p141, %p142
      %p144 = scmp.ne.s32.totalorder %s136, %s138
      %p145 = scmp.eq.s32.totalorder %s23, 1
      %p146 = por %p144, %p145
      %p147 = scmp.ne.s32.totalorder %s138, %s139
      %p148 = scmp.eq.s32.totalorder %s23, 0
      %p149 = por %p147, %p148
      %p150 = scmp.ne.s32.totalorder %s138, %s139
      %p151 = scmp.eq.s32.totalorder %s24, 1
      %p152 = por %p150, %p151
      %p154 = scmp.ne.s32.totalorder %s139, %s153
      %p155 = scmp.eq.s32.totalorder %s24, 0
      %p156 = por %p154, %p155
      %s157 = ssub.s32 %s18, %s25
      %p158 = scmp.eq.s32.totalorder %s157, 0
      %s160 = sadd.s32 %s159, 1
      %s161 = scalar_select %p158, %s159, %s160
      %p164 = pneg %p158
      %p165 = scmp.eq.s32.totalorder %s18, 1
      %p166 = por %p164, %p165
      %p167 = scmp.ne.s32.totalorder %s159, %s162
      %p168 = scmp.eq.s32.totalorder %s18, 0
      %p169 = por %p167, %p168
      %p170 = scmp.ne.s32.totalorder %s159, %s162
      %p171 = scmp.eq.s32.totalorder %s23, 1
      %p172 = por %p170, %p171
      %p173 = scmp.ne.s32.totalorder %s162, %s163
      %p174 = scmp.eq.s32.totalorder %s23, 0
      %p175 = por %p173, %p174
      %p176 = scmp.ne.s32.totalorder %s162, %s163
      %p177 = scmp.eq.s32.totalorder %s24, 1
      %p178 = por %p176, %p177
      %p180 = scmp.ne.s32.totalorder %s163, %s179
      %p181 = scmp.eq.s32.totalorder %s24, 0
      %p182 = por %p180, %p181
      %s183 = ssub.s32 %s18, %s25
      %p184 = scmp.eq.s32.totalorder %s183, 0
      %s186 = sadd.s32 %s185, 1
      %s187 = scalar_select %p184, %s185, %s186
      %p190 = pneg %p184
      %p191 = scmp.eq.s32.totalorder %s18, 1
      %p192 = por %p190, %p191
      %p193 = scmp.ne.s32.totalorder %s185, %s188
      %p194 = scmp.eq.s32.totalorder %s18, 0
      %p195 = por %p193, %p194
      %p196 = scmp.ne.s32.totalorder %s185, %s188
      %p197 = scmp.eq.s32.totalorder %s23, 1
      %p198 = por %p196, %p197
      %p199 = scmp.ne.s32.totalorder %s188, %s189
      %p200 = scmp.eq.s32.totalorder %s23, 0
      %p201 = por %p199, %p200
      %p202 = scmp.ne.s32.totalorder %s188, %s189
      %p203 = scmp.eq.s32.totalorder %s24, 1
      %p204 = por %p202, %p203
      %p206 = scmp.ne.s32.totalorder %s189, %s205
      %p207 = scmp.eq.s32.totalorder %s24, 0
      %p208 = por %p206, %p207
      %s209 = ssub.s32 %s18, %s25
      %p210 = scmp.eq.s32.totalorder %s209, 0
      %s212 = sadd.s32 %s211, 1
      %s213 = scalar_select %p210, %s211, %s212
      %p216 = pneg %p210
      %p217 = scmp.eq.s32.totalorder %s18, 1
      %p218 = por %p216, %p217
      %p219 = scmp.ne.s32.totalorder %s211, %s214
      %p220 = scmp.eq.s32.totalorder %s18, 0
      %p221 = por %p219, %p220
      %p222 = scmp.ne.s32.totalorder %s211, %s214
      %p223 = scmp.eq.s32.totalorder %s23, 1
      %p224 = por %p222, %p223
      %p225 = scmp.ne.s32.totalorder %s214, %s215
      %p226 = scmp.eq.s32.totalorder %s23, 0
      %p227 = por %p225, %p226
      %p228 = scmp.ne.s32.totalorder %s214, %s215
      %p229 = scmp.eq.s32.totalorder %s24, 1
      %p230 = por %p228, %p229
      %p232 = scmp.ne.s32.totalorder %s215, %s231
      %p233 = scmp.eq.s32.totalorder %s24, 0
      %p234 = por %p232, %p233
      %p235 = scmp.le.s32.totalorder 1, %s18
      %p236 = scmp.lt.s32.totalorder %s18, 3
      %p237 = pnand %p235, %p236
      %p238 = pneg %p237
      // Predicated region
      $region9: #{early_exit_forward.1} parent=5 // pred_check
        _
      $region10: #{early_exit_forward.1} parent=5 // pred_check_branch
        %240 = sbr.rel (%p237) target = $region12
      $region11: #{early_exit_forward.1} parent=5 // pred_region
        %s241 = ssub.s32 %s18, 1
        // Predicated region
        $region13: #{early_exit_forward.1} parent=11 // pred_check
          %p242 = pneg %p65
        $region14: #{early_exit_forward.1} parent=11 // pred_check_branch
          %244 = sbr.rel (%p242) target = $region16
        $region15: #{early_exit_forward.1} parent=11 // pred_region
          _
        $region16: #{early_exit_forward.1} parent=11 // pred_fallthru
          _
        // Predicated region
        $region17: #{early_exit_forward.1} parent=11 // pred_check
          %p245 = pneg %p86
        $region18: #{early_exit_forward.1} parent=11 // pred_check_branch
          %247 = sbr.rel (%p245) target = $region20
        $region19: #{early_exit_forward.1} parent=11 // pred_region
          _
        $region20: #{early_exit_forward.1} parent=11 // pred_fallthru
          _
        // Predicated region
        $region21: #{early_exit_forward.1} parent=11 // pred_check
          %p248 = pneg %p107
        $region22: #{early_exit_forward.1} parent=11 // pred_check_branch
          %250 = sbr.rel (%p248) target = $region24
        $region23: #{early_exit_forward.1} parent=11 // pred_region
          _
        $region24: #{early_exit_forward.1} parent=11 // pred_fallthru
          _
        // Predicated region
        $region25: #{early_exit_forward.1} parent=11 // pred_check
          %p251 = pneg %p128
        $region26: #{early_exit_forward.1} parent=11 // pred_check_branch
          %253 = sbr.rel (%p251) target = $region28
        $region27: #{early_exit_forward.1} parent=11 // pred_region
          _
        $region28: #{early_exit_forward.1} parent=11 // pred_fallthru
          _
        // Predicated region
        $region29: #{early_exit_forward.1} parent=11 // pred_check
          %p254 = pneg %p149
        $region30: #{early_exit_forward.1} parent=11 // pred_check_branch
          %256 = sbr.rel (%p254) target = $region32
        $region31: #{early_exit_forward.1} parent=11 // pred_region
          _
        $region32: #{early_exit_forward.1} parent=11 // pred_fallthru
          _
      $region12: #{early_exit_forward.1} parent=5 // pred_fallthru
        _
      %p257 = scmp.lt.s32.totalorder %s18, 2
      // Predicated region
      $region33: #{early_exit_forward.1} parent=5 // pred_check
        %p258 = pneg %p257
      $region34: #{early_exit_forward.1} parent=5 // pred_check_branch
        %260 = sbr.rel (%p258) target = $region36
      $region35: #{early_exit_forward.1} parent=5 // pred_region
        // Predicated region
        $region37: #{early_exit_forward.1} parent=35 // pred_check
          %p261 = pneg %p38
        $region38: #{early_exit_forward.1} parent=35 // pred_check_branch
          %263 = sbr.rel (%p261) target = $region40
        $region39: #{early_exit_forward.1} parent=35 // pred_region
          %s264 = smul.u32 8, %s18
          %p265 = scmp.lt.s32.totalorder %s264, 15
          %s266 = scalar_select %p265, %s264, 15
          %s267 = smul.addr %s266, 2
          %s268 = smul.addr %s267, 4
          %s269 = scalar_lea.vmem %s0, %s268
          %s270 = smul.u32 8, %s18
        $region40: #{early_exit_forward.1} parent=35 // pred_fallthru
          _
      $region36: #{early_exit_forward.1} parent=5 // pred_fallthru
        _
      %p271 = scmp.le.s32.totalorder 1, %s18
      %p272 = scmp.lt.s32.totalorder %s18, 3
      %p273 = pnand %p271, %p272
      %p274 = pneg %p273
      // Predicated region
      $region41: #{early_exit_forward.1} parent=5 // pred_check
        _
      $region42: #{early_exit_forward.1} parent=5 // pred_check_branch
        %276 = sbr.rel (%p273) target = $region44
      $region43: #{early_exit_forward.1} parent=5 // pred_region
        %s277 = ssub.s32 %s18, 1
        %s278 = smul.u32 8, %s23
        %p279 = scmp.lt.s32.totalorder %s278, 15
        %s280 = scalar_select %p279, %s278, 15
        %s281 = smul.addr %s280, 2
        %s282 = smul.addr %s281, 4
        %s283 = scalar_lea.vmem %s0, %s282
        %p284 = pneg %p44
        %p285 = pneg %p41
        %p286 = pneg %p65
        %p287 = pneg %p62
        %p288 = pneg %p86
        %p289 = pneg %p83
        %p290 = pneg %p107
        %p291 = pneg %p104
        %p292 = pneg %p128
        %p293 = pneg %p125
        %p294 = pneg %p149
        %p295 = pneg %p146
        %p296 = pneg %p175
        %p297 = pneg %p172
        %s298 = smul.u32 8, %s23
        %p299 = scmp.lt.s32.totalorder %s298, 15
        %s300 = scalar_select %p299, %s298, 15
        %s301 = smul.addr %s300, 2
        %s302 = smul.addr %s301, 8
        %s303 = scalar_lea.vmem %s6, %s302
        %p304 = pneg %p201
        %p305 = pneg %p198
        %s306 = smul.u32 8, %s23
        %p307 = scmp.lt.s32.totalorder %s306, 15
        %s308 = scalar_select %p307, %s306, 15
        %s309 = smul.addr %s308, 4
        %s310 = scalar_lea.vmem %s7, %s309
        %p311 = pneg %p227
        %p312 = pneg %p224
        %s313 = sand.u32 %s214, 1
        %s314 = scalar_lea.sflag [#allocation5], %s313
        %s315 = sand.u32 %s214, 1
        %s316 = smul.addr %s315, 8
        %s317 = scalar_lea.vmem [#allocation4], %s316
        %s318 = smul.u32 8, %s23
        %p319 = scmp.lt.s32.totalorder %s318, 15
        %s320 = scalar_select %p319, %s318, 15
        %s321 = smul.addr %s320, 2
        %s322 = smul.addr %s321, 4
        %s323 = scalar_lea.vmem %s0, %s322
        %s324 = smul.u32 8, %s23
        %s325 = smul.u32 8, %s23
        %p326 = scmp.lt.s32.totalorder %s325, 15
        %s327 = scalar_select %p326, %s325, 15
        %s328 = smul.addr %s327, 2
        %s329 = smul.addr %s328, 8
        %s330 = scalar_lea.vmem %s6, %s329
        %s331 = smul.u32 8, %s23
        %s332 = smul.u32 8, %s23
        %p333 = scmp.lt.s32.totalorder %s332, 15
        %s334 = scalar_select %p333, %s332, 15
        %s335 = smul.addr %s334, 4
        %s336 = scalar_lea.vmem %s7, %s335
        %s337 = smul.u32 8, %s23
        %s338 = smul.u32 8, %s23
        %v339 = vld [vmem:[%s1] sm:$0xff]
        %v340 = vld [vmem:[%s2] sm:$0xff]
        %v341 = vld [vmem:[%s3] sm:$0xff]
        %v342 = vld [vmem:[%s3 + $0x8] sm:$0xff]
        %v343 = vld [vmem:[%s3 + $0x10] sm:$0xff]
        %v344 = vld [vmem:[%s3 + $0x18] sm:$0xff]
        %v345 = vld [vmem:[%s3 + $0x20] sm:$0xff]
        %v346 = vld [vmem:[%s3 + $0x28] sm:$0xff]
        %v347 = vld [vmem:[%s3 + $0x30] sm:$0xff]
        %v348 = vld [vmem:[%s3 + $0x38] sm:$0xff]
        %v349 = vld [vmem:[%s3 + $0x40] sm:$0xff]
        %v350 = vld [vmem:[%s3 + $0x48] sm:$0xff]
        %v351 = vld [vmem:[%s3 + $0x50] sm:$0xff]
        %v352 = vld [vmem:[%s3 + $0x58] sm:$0xff]
        %v353 = vld [vmem:[%s3 + $0x60] sm:$0xff]
        %v354 = vld [vmem:[%s3 + $0x68] sm:$0xff]
        %v355 = vld [vmem:[%s3 + $0x70] sm:$0xff]
        %v356 = vld [vmem:[%s3 + $0x78] sm:$0xff]
        %v357 = vld [vmem:[%s3 + $0x80] sm:$0xff]
        %v358 = vld [vmem:[%s3 + $0x88] sm:$0xff]
        %v359 = vld [vmem:[%s3 + $0x90] sm:$0xff]
        %v360 = vld [vmem:[%s3 + $0x98] sm:$0xff]
        %v361 = vld [vmem:[%s3 + $0xa0] sm:$0xff]
        %v362 = vld [vmem:[%s3 + $0xa8] sm:$0xff]
        %v363 = vld [vmem:[%s3 + $0xb0] sm:$0xff]
        %v364 = vld [vmem:[%s3 + $0xb8] sm:$0xff]
        %v365 = vld [vmem:[%s3 + $0xc0] sm:$0xff]
        %v366 = vld [vmem:[%s3 + $0xc8] sm:$0xff]
        %v367 = vld [vmem:[%s3 + $0xd0] sm:$0xff]
        %v368 = vld [vmem:[%s3 + $0xd8] sm:$0xff]
        %v369 = vld [vmem:[%s3 + $0xe0] sm:$0xff]
        %v370 = vld [vmem:[%s3 + $0xe8] sm:$0xff]
        %v371 = vld [vmem:[%s3 + $0xf0] sm:$0xff]
        %v372 = vld [vmem:[%s3 + $0xf8] sm:$0xff]
        %v373 = vld [vmem:[%s4] sm:$0xff]
        %v374 = vld [vmem:[%s4 + $0x8] sm:$0xff]
        %v375 = vld [vmem:[%s4 + $0x10] sm:$0xff]
        %v376 = vld [vmem:[%s4 + $0x18] sm:$0xff]
        %v377 = vld [vmem:[%s4 + $0x20] sm:$0xff]
        %v378 = vld [vmem:[%s4 + $0x28] sm:$0xff]
        %v379 = vld [vmem:[%s4 + $0x30] sm:$0xff]
        %v380 = vld [vmem:[%s4 + $0x38] sm:$0xff]
        %v381 = vld [vmem:[%s4 + $0x40] sm:$0xff]
        %v382 = vld [vmem:[%s4 + $0x48] sm:$0xff]
        %v383 = vld [vmem:[%s4 + $0x50] sm:$0xff]
        %v384 = vld [vmem:[%s4 + $0x58] sm:$0xff]
        %v385 = vld [vmem:[%s4 + $0x60] sm:$0xff]
        %v386 = vld [vmem:[%s4 + $0x68] sm:$0xff]
        %v387 = vld [vmem:[%s4 + $0x70] sm:$0xff]
        %v388 = vld [vmem:[%s4 + $0x78] sm:$0xff]
        %v389 = vld [vmem:[%s4 + $0x80] sm:$0xff]
        %v390 = vld [vmem:[%s4 + $0x88] sm:$0xff]
        %v391 = vld [vmem:[%s4 + $0x90] sm:$0xff]
        %v392 = vld [vmem:[%s4 + $0x98] sm:$0xff]
        %v393 = vld [vmem:[%s4 + $0xa0] sm:$0xff]
        %v394 = vld [vmem:[%s4 + $0xa8] sm:$0xff]
        %v395 = vld [vmem:[%s4 + $0xb0] sm:$0xff]
        %v396 = vld [vmem:[%s4 + $0xb8] sm:$0xff]
        %v397 = vld [vmem:[%s4 + $0xc0] sm:$0xff]
        %v398 = vld [vmem:[%s4 + $0xc8] sm:$0xff]
        %v399 = vld [vmem:[%s4 + $0xd0] sm:$0xff]
        %v400 = vld [vmem:[%s4 + $0xd8] sm:$0xff]
        %v401 = vld [vmem:[%s4 + $0xe0] sm:$0xff]
        %v402 = vld [vmem:[%s4 + $0xe8] sm:$0xff]
        %v403 = vld [vmem:[%s4 + $0xf0] sm:$0xff]
        %v404 = vld [vmem:[%s4 + $0xf8] sm:$0xff]
        %v405 = vld [vmem:[%s4 + $0x100] sm:$0xff]
        %v406 = vld [vmem:[%s4 + $0x108] sm:$0xff]
        %v407 = vld [vmem:[%s4 + $0x110] sm:$0xff]
        %v408 = vld [vmem:[%s4 + $0x118] sm:$0xff]
        %v409 = vld [vmem:[%s4 + $0x120] sm:$0xff]
        %v410 = vld [vmem:[%s4 + $0x128] sm:$0xff]
        %v411 = vld [vmem:[%s4 + $0x130] sm:$0xff]
        %v412 = vld [vmem:[%s4 + $0x138] sm:$0xff]
        %v413 = vld [vmem:[%s4 + $0x140] sm:$0xff]
        %v414 = vld [vmem:[%s4 + $0x148] sm:$0xff]
        %v415 = vld [vmem:[%s4 + $0x150] sm:$0xff]
        %v416 = vld [vmem:[%s4 + $0x158] sm:$0xff]
        %v417 = vld [vmem:[%s4 + $0x160] sm:$0xff]
        %v418 = vld [vmem:[%s4 + $0x168] sm:$0xff]
        %v419 = vld [vmem:[%s4 + $0x170] sm:$0xff]
        %v420 = vld [vmem:[%s4 + $0x178] sm:$0xff]
        %v421 = vld [vmem:[%s4 + $0x180] sm:$0xff]
        %v422 = vld [vmem:[%s4 + $0x188] sm:$0xff]
        %v423 = vld [vmem:[%s4 + $0x190] sm:$0xff]
        %v424 = vld [vmem:[%s4 + $0x198] sm:$0xff]
        %v425 = vld [vmem:[%s4 + $0x1a0] sm:$0xff]
        %v426 = vld [vmem:[%s4 + $0x1a8] sm:$0xff]
        %v427 = vld [vmem:[%s4 + $0x1b0] sm:$0xff]
        %v428 = vld [vmem:[%s4 + $0x1b8] sm:$0xff]
        %v429 = vld [vmem:[%s4 + $0x1c0] sm:$0xff]
        %v430 = vld [vmem:[%s4 + $0x1c8] sm:$0xff]
        %v431 = vld [vmem:[%s4 + $0x1d0] sm:$0xff]
        %v432 = vld [vmem:[%s4 + $0x1d8] sm:$0xff]
        %v433 = vld [vmem:[%s4 + $0x1e0] sm:$0xff]
        %v434 = vld [vmem:[%s4 + $0x1e8] sm:$0xff]
        %v435 = vld [vmem:[%s4 + $0x1f0] sm:$0xff]
        %v436 = vld [vmem:[%s4 + $0x1f8] sm:$0xff]
        %v437 = vld [vmem:[%s5] sm:$0x1]
        %v438 = vlaneseq
        %v439 = vand.u32 %v438, 127
        %v440 = vadd.s32 %v439, 128
        %vm441 = vcmp.lt.s32.totalorder %v439, 0
        %v442 = vsub.s32 0, %v439
        %v443 = vsel %vm441, %v442, %v439
        %v444 = vshrl.u32 %v443, 4
        %v445 = vand.u32 %v443, 15
        %v446 = vsub.s32 0, %v445
        %v447 = vsel %vm441, %v446, %v445
        %vm448 = vcmp.lt.s32.totalorder %v440, 0
        %v449 = vsub.s32 0, %v440
        %v450 = vsel %vm448, %v449, %v440
        %v451 = vshrl.u32 %v450, 4
        %v452 = vand.u32 %v450, 15
        %v453 = vsub.s32 0, %v452
        %v454 = vsel %vm448, %v453, %v452
        %vm455 = vcmp.ne.s32.totalorder %v447, 0
        %vm456 = vcmp.ne.s32.totalorder %v454, 0
        %vm457 = vcmp.lt.s32.totalorder %v447, 0
        %vm458 = vcmp.lt.s32.totalorder %v454, 0
        %vm459 = vmand %vm457, %vm455
        %vm460 = vmand %vm458, %vm456
        %v461 = vadd.s32 %v447, 16
        %v462 = vadd.s32 %v454, 16
        %v463 = vsel %vm459, %v461, %v447
        %v464 = vsel %vm460, %v462, %v454
        %vm465 = vcmp.gt.s32.totalorder %v463, 0
        %vm466 = vcmp.gt.s32.totalorder %v464, 0
        %vm467 = vcmp.lt.s32.totalorder %v463, 15
        %vm468 = vcmp.lt.s32.totalorder %v464, 15
        %469 = vst [vmem:[#allocation2] sm:$0xf] 0.0
        %470 = vst [vmem:[#allocation2 + $0xc] sm:$0xf] 0.0
        %v471 = vld [vmem:[%s323] sm:$0xff]
        %472 = vst [vmem:[#allocation2 + $0x4] sm:$0xff] %v471
        %v473 = vld [vmem:[#allocation2] sm:$0xff]
        %v474 = vld [vmem:[#allocation2 + $0x8] sm:$0xf]
        %v477 = vcombine.high %v473, %v473
        %478 = vrot.lane.b32.xlu0 %v473, 17
        %v479 = vpop.permute.xlu0 %478
        %480 = vrot.lane.b32.xlu0 %v477, 17
        %v481 = vpop.permute.xlu0 %480
        %482 = vrot.lane.b32.xlu0 %v474, 17
        %v483 = vpop.permute.xlu0 %482
        %vm484 = vcmask 138240
        %v485 = vsel %vm484, %v479, %v481
        %v486 = vsel %vm484, %v481, %v483
        %v489 = vsel %vm465, %v485, 0.0
        %v490 = vsel %vm466, %v486, 0.0
        %491 = vst [vmem:[#allocation3] sm:$0xf] %v489
        %492 = vst [vmem:[#allocation3 + $0x8] sm:$0xf] %v490
        %v493 = vld [vmem:[#allocation2] sm:$0xff]
        %v494 = vld [vmem:[#allocation2 + $0x8] sm:$0xf]
        %v497 = vcombine.low %v493, %v493
        %v498 = vcombine.low %v494, %v494
        %499 = vrot.lane.b32.xlu0 %v497, 16
        %v500 = vpop.permute.xlu0 %499
        %501 = vrot.lane.b32.xlu0 %v493, 16
        %v502 = vpop.permute.xlu0 %501
        %503 = vrot.lane.b32.xlu0 %v498, 16
        %v504 = vpop.permute.xlu0 %503
        %vm505 = vcmask 130048
        %v506 = vsel %vm505, %v500, %v502
        %v507 = vsel %vm505, %v502, %v504
        %510 = vst [vmem:[#allocation3] sm:$0xf0] %v506
        %511 = vst [vmem:[#allocation3 + $0x8] sm:$0xf0] %v507
        %v512 = vld [vmem:[#allocation2] sm:$0xff]
        %v513 = vld [vmem:[#allocation2 + $0x8] sm:$0xf]
        %v516 = vcombine.high %v512, %v512
        %517 = vrot.lane.b32.xlu0 %v512, 15
        %v518 = vpop.permute.xlu0 %517
        %519 = vrot.lane.b32.xlu0 %v516, 15
        %v520 = vpop.permute.xlu0 %519
        %521 = vrot.lane.b32.xlu0 %v513, 15
        %v522 = vpop.permute.xlu0 %521
        %vm523 = vcmask 121856
        %v524 = vsel %vm523, %v518, %v520
        %v525 = vsel %vm523, %v520, %v522
        %v528 = vsel %vm467, %v524, 0.0
        %v529 = vsel %vm468, %v525, 0.0
        %530 = vst [vmem:[#allocation3 + $0x10] sm:$0xf] %v528
        %531 = vst [vmem:[#allocation3 + $0x18] sm:$0xf] %v529
        %v532 = vld [vmem:[#allocation2] sm:$0xff]
        %v533 = vld [vmem:[#allocation2 + $0x8] sm:$0xf]
        %v536 = vcombine.high %v532, %v532
        %537 = vrot.lane.b32.xlu0 %v532, 1
        %v538 = vpop.permute.xlu0 %537
        %539 = vrot.lane.b32.xlu0 %v536, 1
        %v540 = vpop.permute.xlu0 %539
        %541 = vrot.lane.b32.xlu0 %v533, 1
        %v542 = vpop.permute.xlu0 %541
        %vm543 = vcmask 7168
        %v544 = vsel %vm543, %v538, %v540
        %v545 = vsel %vm543, %v540, %v542
        %v548 = vsel %vm465, %v544, 0.0
        %v549 = vsel %vm466, %v545, 0.0
        %v552 = vrot.slane %v548, 4
        %v553 = vrot.slane %v549, 4
        %556 = vst [vmem:[#allocation3 + $0x10] sm:$0xf0] %v552
        %557 = vst [vmem:[#allocation3 + $0x18] sm:$0xf0] %v553
        %v558 = vld [vmem:[#allocation2 + $0x4] sm:$0xff]
        %v560 = vcombine.high %v558, %v558
        %562 = vst [vmem:[#allocation3 + $0x20] sm:$0xf] %v558
        %563 = vst [vmem:[#allocation3 + $0x28] sm:$0xf] %v560
        %v564 = vld [vmem:[#allocation2 + $0x4] sm:$0xff]
        %v565 = vld [vmem:[#allocation2 + $0xc] sm:$0xf]
        %v568 = vcombine.high %v564, %v564
        %569 = vrot.lane.b32.xlu0 %v564, 127
        %v570 = vpop.permute.xlu0 %569
        %571 = vrot.lane.b32.xlu0 %v568, 127
        %v572 = vpop.permute.xlu0 %571
        %573 = vrot.lane.b32.xlu0 %v565, 127
        %v574 = vpop.permute.xlu0 %573
        %vm575 = vcmask 1039360
        %v576 = vsel %vm575, %v570, %v572
        %v577 = vsel %vm575, %v572, %v574
        %v580 = vsel %vm467, %v576, 0.0
        %v581 = vsel %vm468, %v577, 0.0
        %v584 = vrot.slane %v580, 4
        %v585 = vrot.slane %v581, 4
        %588 = vst [vmem:[#allocation3 + $0x20] sm:$0xf0] %v584
        %589 = vst [vmem:[#allocation3 + $0x28] sm:$0xf0] %v585
        %v590 = vld [vmem:[#allocation2 + $0x4] sm:$0xff]
        %v591 = vld [vmem:[#allocation2 + $0xc] sm:$0xf]
        %v594 = vcombine.high %v590, %v590
        %595 = vrot.lane.b32.xlu0 %v590, 113
        %v596 = vpop.permute.xlu0 %595
        %597 = vrot.lane.b32.xlu0 %v594, 113
        %v598 = vpop.permute.xlu0 %597
        %599 = vrot.lane.b32.xlu0 %v591, 113
        %v600 = vpop.permute.xlu0 %599
        %vm601 = vcmask 924672
        %v602 = vsel %vm601, %v596, %v598
        %v603 = vsel %vm601, %v598, %v600
        %v606 = vsel %vm465, %v602, 0.0
        %v607 = vsel %vm466, %v603, 0.0
        %608 = vst [vmem:[#allocation3 + $0x30] sm:$0xf] %v606
        %609 = vst [vmem:[#allocation3 + $0x38] sm:$0xf] %v607
        %v610 = vld [vmem:[#allocation2 + $0x4] sm:$0xff]
        %v611 = vld [vmem:[#allocation2 + $0xc] sm:$0xf]
        %v614 = vcombine.low %v610, %v610
        %v615 = vcombine.low %v611, %v611
        %616 = vrot.lane.b32.xlu0 %v614, 112
        %v617 = vpop.permute.xlu0 %616
        %618 = vrot.lane.b32.xlu0 %v610, 112
        %v619 = vpop.permute.xlu0 %618
        %620 = vrot.lane.b32.xlu0 %v615, 112
        %v621 = vpop.permute.xlu0 %620
        %vm622 = vcmask 916480
        %v623 = vsel %vm622, %v617, %v619
        %v624 = vsel %vm622, %v619, %v621
        %627 = vst [vmem:[#allocation3 + $0x30] sm:$0xf0] %v623
        %628 = vst [vmem:[#allocation3 + $0x38] sm:$0xf0] %v624
        %v629 = vld [vmem:[#allocation2 + $0x4] sm:$0xff]
        %v630 = vld [vmem:[#allocation2 + $0xc] sm:$0xf]
        %v633 = vcombine.high %v629, %v629
        %634 = vrot.lane.b32.xlu0 %v629, 111
        %v635 = vpop.permute.xlu0 %634
        %636 = vrot.lane.b32.xlu0 %v633, 111
        %v637 = vpop.permute.xlu0 %636
        %638 = vrot.lane.b32.xlu0 %v630, 111
        %v639 = vpop.permute.xlu0 %638
        %vm640 = vcmask 908288
        %v641 = vsel %vm640, %v635, %v637
        %v642 = vsel %vm640, %v637, %v639
        %v645 = vsel %vm467, %v641, 0.0
        %v646 = vsel %vm468, %v642, 0.0
        %647 = vst [vmem:[#allocation3 + $0x40] sm:$0xf] %v645
        %648 = vst [vmem:[#allocation3 + $0x48] sm:$0xf] %v646
        %v649 = vld [vmem:[#allocation3] sm:$0xff]
        %v650 = vld [vmem:[#allocation3 + $0x8] sm:$0xff]
        %v651 = vld [vmem:[#allocation3 + $0x10] sm:$0xff]
        %v652 = vld [vmem:[#allocation3 + $0x18] sm:$0xff]
        %v653 = vld [vmem:[#allocation3 + $0x20] sm:$0xff]
        %v654 = vld [vmem:[#allocation3 + $0x28] sm:$0xff]
        %v655 = vld [vmem:[#allocation3 + $0x30] sm:$0xff]
        %v656 = vld [vmem:[#allocation3 + $0x38] sm:$0xff]
        %v657 = vld [vmem:[#allocation3 + $0x40] sm:$0xf]
        %v658 = vld [vmem:[#allocation3 + $0x48] sm:$0xf]
        %660 = vset.pattern.permute.xlu0 0
        %661 = vperm.xlu0 %660, %v340
        %v662 = vpop.permute.xlu0 %661
        %vm664 = vcmask 293888
        %v666 = vsel %vm664, %v339, 0
        %vm668 = vcmask 1043456
        %v670 = vsel %vm668, %v657, 0
        %v673 = vsel %vm668, %v658, 0
        %675 = vmatprep.subr.mxu0 %v650
        %676 = vmatpush1.msra.mxu0 %v649
        %677 = vmatprep.subr.mxu0 %v652
        %678 = vmatpush1.msra.mxu0 %v651
        %679 = vmatprep.subr.mxu0 %v654
        %680 = vmatpush1.msra.mxu0 %v653
        %681 = vmatprep.subr.mxu0 %v656
        %682 = vmatpush1.msra.mxu0 %v655
        %683 = vmatprep.subr.mxu0 %v673
        %684 = vmatpush1.msra.mxu0 %v670
        %685 = vmatprep.subr.mxu0 0.0
        %686 = vmatpush1.msra.mxu0 0.0
        %687 = vmatprep.subr.mxu0 0.0
        %688 = vmatpush1.msra.mxu0 0.0
        %689 = vmatprep.subr.mxu0 0.0
        %690 = vmatpush1.msra.mxu0 0.0
        %691 = vmatprep.subr.mxu0 0.0
        %692 = vmatpush1.msra.mxu0 0.0
        %693 = vmatprep.subr.mxu0 0.0
        %694 = vmatpush1.msra.mxu0 0.0
        %695 = vmatprep.subr.mxu0 0.0
        %696 = vmatpush1.msra.mxu0 0.0
        %697 = vmatprep.subr.mxu0 0.0
        %698 = vmatpush1.msra.mxu0 0.0
        %699 = vmatprep.subr.mxu0 0.0
        %700 = vmatpush1.msra.mxu0 0.0
        %701 = vmatprep.subr.mxu0 0.0
        %702 = vmatpush1.msra.mxu0 0.0
        %703 = vmatprep.subr.mxu0 0.0
        %704 = vmatpush1.msra.mxu0 0.0
        %705 = vmatprep.subr.mxu0 0.0
        %706 = vmatpush1.msra.mxu0 0.0
        %707 = vmatprep.subr.mxu0 0.0
        %708 = vmatpush1.msra.mxu0 0.0
        %709 = vmatprep.subr.mxu0 0.0
        %710 = vmatpush1.msra.mxu0 0.0
        %711 = vmatprep.subr.mxu0 0.0
        %712 = vmatpush1.msra.mxu0 0.0
        %713 = vmatprep.subr.mxu0 0.0
        %714 = vmatpush1.msra.mxu0 0.0
        %715 = vmatprep.subr.mxu0 0.0
        %716 = vmatpush1.msra.mxu0 0.0
        %717 = vmatprep.subr.mxu0 0.0
        %718 = vmatpush1.msra.mxu0 0.0
        %719 = vmatprep.subr.mxu0 0.0
        %720 = vmatpush1.msra.mxu0 0.0
        %721 = vmatprep.subr.mxu0 0.0
        %722 = vmatpush1.msra.mxu0 0.0
        %723 = vmatprep.subr.mxu0 0.0
        %724 = vmatpush1.msra.mxu0 0.0
        %725 = vmatprep.subr.mxu0 0.0
        %726 = vmatpush1.msra.mxu0 0.0
        %727 = vmatprep.subr.mxu0 0.0
        %728 = vmatpush1.msra.mxu0 0.0
        %729 = vmatprep.subr.mxu0 0.0
        %730 = vmatpush1.msra.mxu0 0.0
        %731 = vmatprep.subr.mxu0 0.0
        %732 = vmatpush1.msra.mxu0 0.0
        %733 = vmatprep.subr.mxu0 0.0
        %734 = vmatpush1.msra.mxu0 0.0
        %735 = vmatprep.subr.mxu0 0.0
        %736 = vmatpush1.msra.mxu0 0.0
        %737 = vmatprep.subr.mxu0 0.0
        %738 = vmatpush1.msra.mxu0 0.0
        %739 = vmatprep.mubr.f32.mxu0 0.0
        %740 = vmatmul.mubr.f32.gmra.mrb[0].mxu0 %v666
        %v741 = vpop.f32.mrb[0].mxu0
        %v742 = vadd.f32 %v662, %v741
        %v743 = vpop.f32.mrb[0].mxu0
        %v744 = vadd.f32 %v662, %v743
        %745 = vdwg.mxu0
        %v746 = vmax.f32 %v742, 0.0
        %v747 = vmax.f32 %v744, 0.0
        %748 = vst [vmem:[%s330] sm:$0xff] %v746
        %749 = vst [vmem:[%s330 + $0x8] sm:$0xff] %v747
        %s750 = scalar_lea.vmem %s323, 8
        %v751 = vld [vmem:[%s750] sm:$0xff]
        %752 = vst [vmem:[#allocation2 + $0x4] sm:$0xff] %v751
        %v753 = vld [vmem:[#allocation2] sm:$0xff]
        %v754 = vld [vmem:[#allocation2 + $0x8] sm:$0xf]
        %v757 = vcombine.high %v753, %v753
        %758 = vrot.lane.b32.xlu0 %v753, 17
        %v759 = vpop.permute.xlu0 %758
        %760 = vrot.lane.b32.xlu0 %v757, 17
        %v761 = vpop.permute.xlu0 %760
        %762 = vrot.lane.b32.xlu0 %v754, 17
        %v763 = vpop.permute.xlu0 %762
        %v764 = vsel %vm484, %v759, %v761
        %v765 = vsel %vm484, %v761, %v763
        %v768 = vsel %vm465, %v764, 0.0
        %v769 = vsel %vm466, %v765, 0.0
        %770 = vst [vmem:[#allocation3] sm:$0xf] %v768
        %771 = vst [vmem:[#allocation3 + $0x8] sm:$0xf] %v769
        %v772 = vld [vmem:[#allocation2] sm:$0xff]
        %v773 = vld [vmem:[#allocation2 + $0x8] sm:$0xf]
        %v776 = vcombine.low %v772, %v772
        %v777 = vcombine.low %v773, %v773
        %778 = vrot.lane.b32.xlu0 %v776, 16
        %v779 = vpop.permute.xlu0 %778
        %780 = vrot.lane.b32.xlu0 %v772, 16
        %v781 = vpop.permute.xlu0 %780
        %782 = vrot.lane.b32.xlu0 %v777, 16
        %v783 = vpop.permute.xlu0 %782
        %v784 = vsel %vm505, %v779, %v781
        %v785 = vsel %vm505, %v781, %v783
        %788 = vst [vmem:[#allocation3] sm:$0xf0] %v784
        %789 = vst [vmem:[#allocation3 + $0x8] sm:$0xf0] %v785
        %v790 = vld [vmem:[#allocation2] sm:$0xff]
        %v791 = vld [vmem:[#allocation2 + $0x8] sm:$0xf]
        %v794 = vcombine.high %v790, %v790
        %795 = vrot.lane.b32.xlu0 %v790, 15
        %v796 = vpop.permute.xlu0 %795
        %797 = vrot.lane.b32.xlu0 %v794, 15
        %v798 = vpop.permute.xlu0 %797
        %799 = vrot.lane.b32.xlu0 %v791, 15
        %v800 = vpop.permute.xlu0 %799
        %v801 = vsel %vm523, %v796, %v798
        %v802 = vsel %vm523, %v798, %v800
        %v805 = vsel %vm467, %v801, 0.0
        %v806 = vsel %vm468, %v802, 0.0
        %807 = vst [vmem:[#allocation3 + $0x10] sm:$0xf] %v805
        %808 = vst [vmem:[#allocation3 + $0x18] sm:$0xf] %v806
        %v809 = vld [vmem:[#allocation2] sm:$0xff]
        %v810 = vld [vmem:[#allocation2 + $0x8] sm:$0xf]
        %v813 = vcombine.high %v809, %v809
        %814 = vrot.lane.b32.xlu0 %v809, 1
        %v815 = vpop.permute.xlu0 %814
        %816 = vrot.lane.b32.xlu0 %v813, 1
        %v817 = vpop.permute.xlu0 %816
        %818 = vrot.lane.b32.xlu0 %v810, 1
        %v819 = vpop.permute.xlu0 %818
        %v820 = vsel %vm543, %v815, %v817
        %v821 = vsel %vm543, %v817, %v819
        %v824 = vsel %vm465, %v820, 0.0
        %v825 = vsel %vm466, %v821, 0.0
        %v828 = vrot.slane %v824, 4
        %v829 = vrot.slane %v825, 4
        %832 = vst [vmem:[#allocation3 + $0x10] sm:$0xf0] %v828
        %833 = vst [vmem:[#allocation3 + $0x18] sm:$0xf0] %v829
        %v834 = vld [vmem:[#allocation2 + $0x4] sm:$0xff]
        %v836 = vcombine.high %v834, %v834
        %838 = vst [vmem:[#allocation3 + $0x20] sm:$0xf] %v834
        %839 = vst [vmem:[#allocation3 + $0x28] sm:$0xf] %v836
        %v840 = vld [vmem:[#allocation2 + $0x4] sm:$0xff]
        %v841 = vld [vmem:[#allocation2 + $0xc] sm:$0xf]
        %v844 = vcombine.high %v840, %v840
        %845 = vrot.lane.b32.xlu0 %v840, 127
        %v846 = vpop.permute.xlu0 %845
        %847 = vrot.lane.b32.xlu0 %v844, 127
        %v848 = vpop.permute.xlu0 %847
        %849 = vrot.lane.b32.xlu0 %v841, 127
        %v850 = vpop.permute.xlu0 %849
        %v851 = vsel %vm575, %v846, %v848
        %v852 = vsel %vm575, %v848, %v850
        %v855 = vsel %vm467, %v851, 0.0
        %v856 = vsel %vm468, %v852, 0.0
        %v859 = vrot.slane %v855, 4
        %v860 = vrot.slane %v856, 4
        %863 = vst [vmem:[#allocation3 + $0x20] sm:$0xf0] %v859
        %864 = vst [vmem:[#allocation3 + $0x28] sm:$0xf0] %v860
        %v865 = vld [vmem:[#allocation2 + $0x4] sm:$0xff]
        %v866 = vld [vmem:[#allocation2 + $0xc] sm:$0xf]
        %v869 = vcombine.high %v865, %v865
        %870 = vrot.lane.b32.xlu0 %v865, 113
        %v871 = vpop.permute.xlu0 %870
        %872 = vrot.lane.b32.xlu0 %v869, 113
        %v873 = vpop.permute.xlu0 %872
        %874 = vrot.lane.b32.xlu0 %v866, 113
        %v875 = vpop.permute.xlu0 %874
        %v876 = vsel %vm601, %v871, %v873
        %v877 = vsel %vm601, %v873, %v875
        %v880 = vsel %vm465, %v876, 0.0
        %v881 = vsel %vm466, %v877, 0.0
        %882 = vst [vmem:[#allocation3 + $0x30] sm:$0xf] %v880
        %883 = vst [vmem:[#allocation3 + $0x38] sm:$0xf] %v881
        %v884 = vld [vmem:[#allocation2 + $0x4] sm:$0xff]
        %v885 = vld [vmem:[#allocation2 + $0xc] sm:$0xf]
        %v888 = vcombine.low %v884, %v884
        %v889 = vcombine.low %v885, %v885
        %890 = vrot.lane.b32.xlu0 %v888, 112
        %v891 = vpop.permute.xlu0 %890
        %892 = vrot.lane.b32.xlu0 %v884, 112
        %v893 = vpop.permute.xlu0 %892
        %894 = vrot.lane.b32.xlu0 %v889, 112
        %v895 = vpop.permute.xlu0 %894
        %v896 = vsel %vm622, %v891, %v893
        %v897 = vsel %vm622, %v893, %v895
        %900 = vst [vmem:[#allocation3 + $0x30] sm:$0xf0] %v896
        %901 = vst [vmem:[#allocation3 + $0x38] sm:$0xf0] %v897
        %v902 = vld [vmem:[#allocation2 + $0x4] sm:$0xff]
        %v903 = vld [vmem:[#allocation2 + $0xc] sm:$0xf]
        %v906 = vcombine.high %v902, %v902
        %907 = vrot.lane.b32.xlu0 %v902, 111
        %v908 = vpop.permute.xlu0 %907
        %909 = vrot.lane.b32.xlu0 %v906, 111
        %v910 = vpop.permute.xlu0 %909
        %911 = vrot.lane.b32.xlu0 %v903, 111
        %v912 = vpop.permute.xlu0 %911
        %v913 = vsel %vm640, %v908, %v910
        %v914 = vsel %vm640, %v910, %v912
        %v917 = vsel %vm467, %v913, 0.0
        %v918 = vsel %vm468, %v914, 0.0
        %919 = vst [vmem:[#allocation3 + $0x40] sm:$0xf] %v917
        %920 = vst [vmem:[#allocation3 + $0x48] sm:$0xf] %v918
        %v921 = vld [vmem:[#allocation3] sm:$0xff]
        %v922 = vld [vmem:[#allocation3 + $0x8] sm:$0xff]
        %v923 = vld [vmem:[#allocation3 + $0x10] sm:$0xff]
        %v924 = vld [vmem:[#allocation3 + $0x18] sm:$0xff]
        %v925 = vld [vmem:[#allocation3 + $0x20] sm:$0xff]
        %v926 = vld [vmem:[#allocation3 + $0x28] sm:$0xff]
        %v927 = vld [vmem:[#allocation3 + $0x30] sm:$0xff]
        %v928 = vld [vmem:[#allocation3 + $0x38] sm:$0xff]
        %v929 = vld [vmem:[#allocation3 + $0x40] sm:$0xf]
        %v930 = vld [vmem:[#allocation3 + $0x48] sm:$0xf]
        %v932 = vsel %vm668, %v929, 0
        %v935 = vsel %vm668, %v930, 0
        %937 = vmatprep.subr.mxu0 %v922
        %938 = vmatpush1.msra.mxu0 %v921
        %939 = vmatprep.subr.mxu0 %v924
        %940 = vmatpush1.msra.mxu0 %v923
        %941 = vmatprep.subr.mxu0 %v926
        %942 = vmatpush1.msra.mxu0 %v925
        %943 = vmatprep.subr.mxu0 %v928
        %944 = vmatpush1.msra.mxu0 %v927
        %945 = vmatprep.subr.mxu0 %v935
        %946 = vmatpush1.msra.mxu0 %v932
        %947 = vmatprep.subr.mxu0 0.0
        %948 = vmatpush1.msra.mxu0 0.0
        %949 = vmatprep.subr.mxu0 0.0
        %950 = vmatpush1.msra.mxu0 0.0
        %951 = vmatprep.subr.mxu0 0.0
        %952 = vmatpush1.msra.mxu0 0.0
        %953 = vmatprep.subr.mxu0 0.0
        %954 = vmatpush1.msra.mxu0 0.0
        %955 = vmatprep.subr.mxu0 0.0
        %956 = vmatpush1.msra.mxu0 0.0
        %957 = vmatprep.subr.mxu0 0.0
        %958 = vmatpush1.msra.mxu0 0.0
        %959 = vmatprep.subr.mxu0 0.0
        %960 = vmatpush1.msra.mxu0 0.0
        %961 = vmatprep.subr.mxu0 0.0
        %962 = vmatpush1.msra.mxu0 0.0
        %963 = vmatprep.subr.mxu0 0.0
        %964 = vmatpush1.msra.mxu0 0.0
        %965 = vmatprep.subr.mxu0 0.0
        %966 = vmatpush1.msra.mxu0 0.0
        %967 = vmatprep.subr.mxu0 0.0
        %968 = vmatpush1.msra.mxu0 0.0
        %969 = vmatprep.subr.mxu0 0.0
        %970 = vmatpush1.msra.mxu0 0.0
        %971 = vmatprep.subr.mxu0 0.0
        %972 = vmatpush1.msra.mxu0 0.0
        %973 = vmatprep.subr.mxu0 0.0
        %974 = vmatpush1.msra.mxu0 0.0
        %975 = vmatprep.subr.mxu0 0.0
        %976 = vmatpush1.msra.mxu0 0.0
        %977 = vmatprep.subr.mxu0 0.0
        %978 = vmatpush1.msra.mxu0 0.0
        %979 = vmatprep.subr.mxu0 0.0
        %980 = vmatpush1.msra.mxu0 0.0
        %981 = vmatprep.subr.mxu0 0.0
        %982 = vmatpush1.msra.mxu0 0.0
        %983 = vmatprep.subr.mxu0 0.0
        %984 = vmatpush1.msra.mxu0 0.0
        %985 = vmatprep.subr.mxu0 0.0
        %986 = vmatpush1.msra.mxu0 0.0
        %987 = vmatprep.subr.mxu0 0.0
        %988 = vmatpush1.msra.mxu0 0.0
        %989 = vmatprep.subr.mxu0 0.0
        %990 = vmatpush1.msra.mxu0 0.0
        %991 = vmatprep.subr.mxu0 0.0
        %992 = vmatpush1.msra.mxu0 0.0
        %993 = vmatprep.subr.mxu0 0.0
        %994 = vmatpush1.msra.mxu0 0.0
        %995 = vmatprep.subr.mxu0 0.0
        %996 = vmatpush1.msra.mxu0 0.0
        %997 = vmatprep.subr.mxu0 0.0
        %998 = vmatpush1.msra.mxu0 0.0
        %999 = vmatprep.subr.mxu0 0.0
        %1000 = vmatpush1.msra.mxu0 0.0
        %1001 = vmatprep.mubr.f32.mxu0 0.0
        %1002 = vmatmul.mubr.f32.gmra.mrb[0].mxu0 %v666
        %v1003 = vpop.f32.mrb[0].mxu0
        %v1004 = vadd.f32 %v662, %v1003
        %v1005 = vpop.f32.mrb[0].mxu0
        %v1006 = vadd.f32 %v662, %v1005
        %1007 = vdwg.mxu0
        %v1008 = vmax.f32 %v1004, 0.0
        %v1009 = vmax.f32 %v1006, 0.0
        %s1010 = scalar_lea.vmem %s330, 16
        %1011 = vst [vmem:[%s1010] sm:$0xff] %v1008
        %1012 = vst [vmem:[%s1010 + $0x8] sm:$0xff] %v1009
        %s1013 = scalar_lea.vmem %s323, 16
        %v1014 = vld [vmem:[%s1013] sm:$0xff]
        %1015 = vst [vmem:[#allocation2 + $0x4] sm:$0xff] %v1014
        %v1016 = vld [vmem:[#allocation2] sm:$0xff]
        %v1017 = vld [vmem:[#allocation2 + $0x8] sm:$0xf]
        %v1020 = vcombine.high %v1016, %v1016
        %1021 = vrot.lane.b32.xlu0 %v1016, 17
        %v1022 = vpop.permute.xlu0 %1021
        %1023 = vrot.lane.b32.xlu0 %v1020, 17
        %v1024 = vpop.permute.xlu0 %1023
        %1025 = vrot.lane.b32.xlu0 %v1017, 17
        %v1026 = vpop.permute.xlu0 %1025
        %v1027 = vsel %vm484, %v1022, %v1024
        %v1028 = vsel %vm484, %v1024, %v1026
        %v1031 = vsel %vm465, %v1027, 0.0
        %v1032 = vsel %vm466, %v1028, 0.0
        %1033 = vst [vmem:[#allocation3] sm:$0xf] %v1031
        %1034 = vst [vmem:[#allocation3 + $0x8] sm:$0xf] %v1032
        %v1035 = vld [vmem:[#allocation2] sm:$0xff]
        %v1036 = vld [vmem:[#allocation2 + $0x8] sm:$0xf]
        %v1039 = vcombine.low %v1035, %v1035
        %v1040 = vcombine.low %v1036, %v1036
        %1041 = vrot.lane.b32.xlu0 %v1039, 16
        %v1042 = vpop.permute.xlu0 %1041
        %1043 = vrot.lane.b32.xlu0 %v1035, 16
        %v1044 = vpop.permute.xlu0 %1043
        %1045 = vrot.lane.b32.xlu0 %v1040, 16
        %v1046 = vpop.permute.xlu0 %1045
        %v1047 = vsel %vm505, %v1042, %v1044
        %v1048 = vsel %vm505, %v1044, %v1046
        %1051 = vst [vmem:[#allocation3] sm:$0xf0] %v1047
        %1052 = vst [vmem:[#allocation3 + $0x8] sm:$0xf0] %v1048
        %v1053 = vld [vmem:[#allocation2] sm:$0xff]
        %v1054 = vld [vmem:[#allocation2 + $0x8] sm:$0xf]
        %v1057 = vcombine.high %v1053, %v1053
        %1058 = vrot.lane.b32.xlu0 %v1053, 15
        %v1059 = vpop.permute.xlu0 %1058
        %1060 = vrot.lane.b32.xlu0 %v1057, 15
        %v1061 = vpop.permute.xlu0 %1060
        %1062 = vrot.lane.b32.xlu0 %v1054, 15
        %v1063 = vpop.permute.xlu0 %1062
        %v1064 = vsel %vm523, %v1059, %v1061
        %v1065 = vsel %vm523, %v1061, %v1063
        %v1068 = vsel %vm467, %v1064, 0.0
        %v1069 = vsel %vm468, %v1065, 0.0
        %1070 = vst [vmem:[#allocation3 + $0x10] sm:$0xf] %v1068
        %1071 = vst [vmem:[#allocation3 + $0x18] sm:$0xf] %v1069
        %v1072 = vld [vmem:[#allocation2] sm:$0xff]
        %v1073 = vld [vmem:[#allocation2 + $0x8] sm:$0xf]
        %v1076 = vcombine.high %v1072, %v1072
        %1077 = vrot.lane.b32.xlu0 %v1072, 1
        %v1078 = vpop.permute.xlu0 %1077
        %1079 = vrot.lane.b32.xlu0 %v1076, 1
        %v1080 = vpop.permute.xlu0 %1079
        %1081 = vrot.lane.b32.xlu0 %v1073, 1
        %v1082 = vpop.permute.xlu0 %1081
        %v1083 = vsel %vm543, %v1078, %v1080
        %v1084 = vsel %vm543, %v1080, %v1082
        %v1087 = vsel %vm465, %v1083, 0.0
        %v1088 = vsel %vm466, %v1084, 0.0
        %v1091 = vrot.slane %v1087, 4
        %v1092 = vrot.slane %v1088, 4
        %1095 = vst [vmem:[#allocation3 + $0x10] sm:$0xf0] %v1091
        %1096 = vst [vmem:[#allocation3 + $0x18] sm:$0xf0] %v1092
        %v1097 = vld [vmem:[#allocation2 + $0x4] sm:$0xff]
        %v1099 = vcombine.high %v1097, %v1097
        %1101 = vst [vmem:[#allocation3 + $0x20] sm:$0xf] %v1097
        %1102 = vst [vmem:[#allocation3 + $0x28] sm:$0xf] %v1099
        %v1103 = vld [vmem:[#allocation2 + $0x4] sm:$0xff]
        %v1104 = vld [vmem:[#allocation2 + $0xc] sm:$0xf]
        %v1107 = vcombine.high %v1103, %v1103
        %1108 = vrot.lane.b32.xlu0 %v1103, 127
        %v1109 = vpop.permute.xlu0 %1108
        %1110 = vrot.lane.b32.xlu0 %v1107, 127
        %v1111 = vpop.permute.xlu0 %1110
        %1112 = vrot.lane.b32.xlu0 %v1104, 127
        %v1113 = vpop.permute.xlu0 %1112
        %v1114 = vsel %vm575, %v1109, %v1111
        %v1115 = vsel %vm575, %v1111, %v1113
        %v1118 = vsel %vm467, %v1114, 0.0
        %v1119 = vsel %vm468, %v1115, 0.0
        %v1122 = vrot.slane %v1118, 4
        %v1123 = vrot.slane %v1119, 4
        %1126 = vst [vmem:[#allocation3 + $0x20] sm:$0xf0] %v1122
        %1127 = vst [vmem:[#allocation3 + $0x28] sm:$0xf0] %v1123
        %v1128 = vld [vmem:[#allocation2 + $0x4] sm:$0xff]
        %v1129 = vld [vmem:[#allocation2 + $0xc] sm:$0xf]
        %v1132 = vcombine.high %v1128, %v1128
        %1133 = vrot.lane.b32.xlu0 %v1128, 113
        %v1134 = vpop.permute.xlu0 %1133
        %1135 = vrot.lane.b32.xlu0 %v1132, 113
        %v1136 = vpop.permute.xlu0 %1135
        %1137 = vrot.lane.b32.xlu0 %v1129, 113
        %v1138 = vpop.permute.xlu0 %1137
        %v1139 = vsel %vm601, %v1134, %v1136
        %v1140 = vsel %vm601, %v1136, %v1138
        %v1143 = vsel %vm465, %v1139, 0.0
        %v1144 = vsel %vm466, %v1140, 0.0
        %1145 = vst [vmem:[#allocation3 + $0x30] sm:$0xf] %v1143
        %1146 = vst [vmem:[#allocation3 + $0x38] sm:$0xf] %v1144
        %v1147 = vld [vmem:[#allocation2 + $0x4] sm:$0xff]
        %v1148 = vld [vmem:[#allocation2 + $0xc] sm:$0xf]
        %v1151 = vcombine.low %v1147, %v1147
        %v1152 = vcombine.low %v1148, %v1148
        %1153 = vrot.lane.b32.xlu0 %v1151, 112
        %v1154 = vpop.permute.xlu0 %1153
        %1155 = vrot.lane.b32.xlu0 %v1147, 112
        %v1156 = vpop.permute.xlu0 %1155
        %1157 = vrot.lane.b32.xlu0 %v1152, 112
        %v1158 = vpop.permute.xlu0 %1157
        %v1159 = vsel %vm622, %v1154, %v1156
        %v1160 = vsel %vm622, %v1156, %v1158
        %1163 = vst [vmem:[#allocation3 + $0x30] sm:$0xf0] %v1159
        %1164 = vst [vmem:[#allocation3 + $0x38] sm:$0xf0] %v1160
        %v1165 = vld [vmem:[#allocation2 + $0x4] sm:$0xff]
        %v1166 = vld [vmem:[#allocation2 + $0xc] sm:$0xf]
        %v1169 = vcombine.high %v1165, %v1165
        %1170 = vrot.lane.b32.xlu0 %v1165, 111
        %v1171 = vpop.permute.xlu0 %1170
        %1172 = vrot.lane.b32.xlu0 %v1169, 111
        %v1173 = vpop.permute.xlu0 %1172
        %1174 = vrot.lane.b32.xlu0 %v1166, 111
        %v1175 = vpop.permute.xlu0 %1174
        %v1176 = vsel %vm640, %v1171, %v1173
        %v1177 = vsel %vm640, %v1173, %v1175
        %v1180 = vsel %vm467, %v1176, 0.0
        %v1181 = vsel %vm468, %v1177, 0.0
        %1182 = vst [vmem:[#allocation3 + $0x40] sm:$0xf] %v1180
        %1183 = vst [vmem:[#allocation3 + $0x48] sm:$0xf] %v1181
        %v1184 = vld [vmem:[#allocation3] sm:$0xff]
        %v1185 = vld [vmem:[#allocation3 + $0x8] sm:$0xff]
        %v1186 = vld [vmem:[#allocation3 + $0x10] sm:$0xff]
        %v1187 = vld [vmem:[#allocation3 + $0x18] sm:$0xff]
        %v1188 = vld [vmem:[#allocation3 + $0x20] sm:$0xff]
        %v1189 = vld [vmem:[#allocation3 + $0x28] sm:$0xff]
        %v1190 = vld [vmem:[#allocation3 + $0x30] sm:$0xff]
        %v1191 = vld [vmem:[#allocation3 + $0x38] sm:$0xff]
        %v1192 = vld [vmem:[#allocation3 + $0x40] sm:$0xf]
        %v1193 = vld [vmem:[#allocation3 + $0x48] sm:$0xf]
        %v1195 = vsel %vm668, %v1192, 0
        %v1198 = vsel %vm668, %v1193, 0
        %1200 = vmatprep.subr.mxu0 %v1185
        %1201 = vmatpush1.msra.mxu0 %v1184
        %1202 = vmatprep.subr.mxu0 %v1187
        %1203 = vmatpush1.msra.mxu0 %v1186
        %1204 = vmatprep.subr.mxu0 %v1189
        %1205 = vmatpush1.msra.mxu0 %v1188
        %1206 = vmatprep.subr.mxu0 %v1191
        %1207 = vmatpush1.msra.mxu0 %v1190
        %1208 = vmatprep.subr.mxu0 %v1198
        %1209 = vmatpush1.msra.mxu0 %v1195
        %1210 = vmatprep.subr.mxu0 0.0
        %1211 = vmatpush1.msra.mxu0 0.0
        %1212 = vmatprep.subr.mxu0 0.0
        %1213 = vmatpush1.msra.mxu0 0.0
        %1214 = vmatprep.subr.mxu0 0.0
        %1215 = vmatpush1.msra.mxu0 0.0
        %1216 = vmatprep.subr.mxu0 0.0
        %1217 = vmatpush1.msra.mxu0 0.0
        %1218 = vmatprep.subr.mxu0 0.0
        %1219 = vmatpush1.msra.mxu0 0.0
        %1220 = vmatprep.subr.mxu0 0.0
        %1221 = vmatpush1.msra.mxu0 0.0
        %1222 = vmatprep.subr.mxu0 0.0
        %1223 = vmatpush1.msra.mxu0 0.0
        %1224 = vmatprep.subr.mxu0 0.0
        %1225 = vmatpush1.msra.mxu0 0.0
        %1226 = vmatprep.subr.mxu0 0.0
        %1227 = vmatpush1.msra.mxu0 0.0
        %1228 = vmatprep.subr.mxu0 0.0
        %1229 = vmatpush1.msra.mxu0 0.0
        %1230 = vmatprep.subr.mxu0 0.0
        %1231 = vmatpush1.msra.mxu0 0.0
        %1232 = vmatprep.subr.mxu0 0.0
        %1233 = vmatpush1.msra.mxu0 0.0
        %1234 = vmatprep.subr.mxu0 0.0
        %1235 = vmatpush1.msra.mxu0 0.0
        %1236 = vmatprep.subr.mxu0 0.0
        %1237 = vmatpush1.msra.mxu0 0.0
        %1238 = vmatprep.subr.mxu0 0.0
        %1239 = vmatpush1.msra.mxu0 0.0
        %1240 = vmatprep.subr.mxu0 0.0
        %1241 = vmatpush1.msra.mxu0 0.0
        %1242 = vmatprep.subr.mxu0 0.0
        %1243 = vmatpush1.msra.mxu0 0.0
        %1244 = vmatprep.subr.mxu0 0.0
        %1245 = vmatpush1.msra.mxu0 0.0
        %1246 = vmatprep.subr.mxu0 0.0
        %1247 = vmatpush1.msra.mxu0 0.0
        %1248 = vmatprep.subr.mxu0 0.0
        %1249 = vmatpush1.msra.mxu0 0.0
        %1250 = vmatprep.subr.mxu0 0.0
        %1251 = vmatpush1.msra.mxu0 0.0
        %1252 = vmatprep.subr.mxu0 0.0
        %1253 = vmatpush1.msra.mxu0 0.0
        %1254 = vmatprep.subr.mxu0 0.0
        %1255 = vmatpush1.msra.mxu0 0.0
        %1256 = vmatprep.subr.mxu0 0.0
        %1257 = vmatpush1.msra.mxu0 0.0
        %1258 = vmatprep.subr.mxu0 0.0
        %1259 = vmatpush1.msra.mxu0 0.0
        %1260 = vmatprep.subr.mxu0 0.0
        %1261 = vmatpush1.msra.mxu0 0.0
        %1262 = vmatprep.subr.mxu0 0.0
        %1263 = vmatpush1.msra.mxu0 0.0
        %1264 = vmatprep.mubr.f32.mxu0 0.0
        %1265 = vmatmul.mubr.f32.gmra.mrb[0].mxu0 %v666
        %v1266 = vpop.f32.mrb[0].mxu0
        %v1267 = vadd.f32 %v662, %v1266
        %v1268 = vpop.f32.mrb[0].mxu0
        %v1269 = vadd.f32 %v662, %v1268
        %1270 = vdwg.mxu0
        %v1271 = vmax.f32 %v1267, 0.0
        %v1272 = vmax.f32 %v1269, 0.0
        %s1273 = scalar_lea.vmem %s330, 32
        %1274 = vst [vmem:[%s1273] sm:$0xff] %v1271
        %1275 = vst [vmem:[%s1273 + $0x8] sm:$0xff] %v1272
        %s1276 = scalar_lea.vmem %s323, 24
        %v1277 = vld [vmem:[%s1276] sm:$0xff]
        %1278 = vst [vmem:[#allocation2 + $0x4] sm:$0xff] %v1277
        %v1279 = vld [vmem:[#allocation2] sm:$0xff]
        %v1280 = vld [vmem:[#allocation2 + $0x8] sm:$0xf]
        %v1283 = vcombine.high %v1279, %v1279
        %1284 = vrot.lane.b32.xlu0 %v1279, 17
        %v1285 = vpop.permute.xlu0 %1284
        %1286 = vrot.lane.b32.xlu0 %v1283, 17
        %v1287 = vpop.permute.xlu0 %1286
        %1288 = vrot.lane.b32.xlu0 %v1280, 17
        %v1289 = vpop.permute.xlu0 %1288
        %v1290 = vsel %vm484, %v1285, %v1287
        %v1291 = vsel %vm484, %v1287, %v1289
        %v1294 = vsel %vm465, %v1290, 0.0
        %v1295 = vsel %vm466, %v1291, 0.0
        %1296 = vst [vmem:[#allocation3] sm:$0xf] %v1294
        %1297 = vst [vmem:[#allocation3 + $0x8] sm:$0xf] %v1295
        %v1298 = vld [vmem:[#allocation2] sm:$0xff]
        %v1299 = vld [vmem:[#allocation2 + $0x8] sm:$0xf]
        %v1302 = vcombine.low %v1298, %v1298
        %v1303 = vcombine.low %v1299, %v1299
        %1304 = vrot.lane.b32.xlu0 %v1302, 16
        %v1305 = vpop.permute.xlu0 %1304
        %1306 = vrot.lane.b32.xlu0 %v1298, 16
        %v1307 = vpop.permute.xlu0 %1306
        %1308 = vrot.lane.b32.xlu0 %v1303, 16
        %v1309 = vpop.permute.xlu0 %1308
        %v1310 = vsel %vm505, %v1305, %v1307
        %v1311 = vsel %vm505, %v1307, %v1309
        %1314 = vst [vmem:[#allocation3] sm:$0xf0] %v1310
        %1315 = vst [vmem:[#allocation3 + $0x8] sm:$0xf0] %v1311
        %v1316 = vld [vmem:[#allocation2] sm:$0xff]
        %v1317 = vld [vmem:[#allocation2 + $0x8] sm:$0xf]
        %v1320 = vcombine.high %v1316, %v1316
        %1321 = vrot.lane.b32.xlu0 %v1316, 15
        %v1322 = vpop.permute.xlu0 %1321
        %1323 = vrot.lane.b32.xlu0 %v1320, 15
        %v1324 = vpop.permute.xlu0 %1323
        %1325 = vrot.lane.b32.xlu0 %v1317, 15
        %v1326 = vpop.permute.xlu0 %1325
        %v1327 = vsel %vm523, %v1322, %v1324
        %v1328 = vsel %vm523, %v1324, %v1326
        %v1331 = vsel %vm467, %v1327, 0.0
        %v1332 = vsel %vm468, %v1328, 0.0
        %1333 = vst [vmem:[#allocation3 + $0x10] sm:$0xf] %v1331
        %1334 = vst [vmem:[#allocation3 + $0x18] sm:$0xf] %v1332
        %v1335 = vld [vmem:[#allocation2] sm:$0xff]
        %v1336 = vld [vmem:[#allocation2 + $0x8] sm:$0xf]
        %v1339 = vcombine.high %v1335, %v1335
        %1340 = vrot.lane.b32.xlu0 %v1335, 1
        %v1341 = vpop.permute.xlu0 %1340
        %1342 = vrot.lane.b32.xlu0 %v1339, 1
        %v1343 = vpop.permute.xlu0 %1342
        %1344 = vrot.lane.b32.xlu0 %v1336, 1
        %v1345 = vpop.permute.xlu0 %1344
        %v1346 = vsel %vm543, %v1341, %v1343
        %v1347 = vsel %vm543, %v1343, %v1345
        %v1350 = vsel %vm465, %v1346, 0.0
        %v1351 = vsel %vm466, %v1347, 0.0
        %v1354 = vrot.slane %v1350, 4
        %v1355 = vrot.slane %v1351, 4
        %1358 = vst [vmem:[#allocation3 + $0x10] sm:$0xf0] %v1354
        %1359 = vst [vmem:[#allocation3 + $0x18] sm:$0xf0] %v1355
        %v1360 = vld [vmem:[#allocation2 + $0x4] sm:$0xff]
        %v1362 = vcombine.high %v1360, %v1360
        %1364 = vst [vmem:[#allocation3 + $0x20] sm:$0xf] %v1360
        %1365 = vst [vmem:[#allocation3 + $0x28] sm:$0xf] %v1362
        %v1366 = vld [vmem:[#allocation2 + $0x4] sm:$0xff]
        %v1367 = vld [vmem:[#allocation2 + $0xc] sm:$0xf]
        %v1370 = vcombine.high %v1366, %v1366
        %1371 = vrot.lane.b32.xlu0 %v1366, 127
        %v1372 = vpop.permute.xlu0 %1371
        %1373 = vrot.lane.b32.xlu0 %v1370, 127
        %v1374 = vpop.permute.xlu0 %1373
        %1375 = vrot.lane.b32.xlu0 %v1367, 127
        %v1376 = vpop.permute.xlu0 %1375
        %v1377 = vsel %vm575, %v1372, %v1374
        %v1378 = vsel %vm575, %v1374, %v1376
        %v1381 = vsel %vm467, %v1377, 0.0
        %v1382 = vsel %vm468, %v1378, 0.0
        %v1385 = vrot.slane %v1381, 4
        %v1386 = vrot.slane %v1382, 4
        %1389 = vst [vmem:[#allocation3 + $0x20] sm:$0xf0] %v1385
        %1390 = vst [vmem:[#allocation3 + $0x28] sm:$0xf0] %v1386
        %v1391 = vld [vmem:[#allocation2 + $0x4] sm:$0xff]
        %v1392 = vld [vmem:[#allocation2 + $0xc] sm:$0xf]
        %v1395 = vcombine.high %v1391, %v1391
        %1396 = vrot.lane.b32.xlu0 %v1391, 113
        %v1397 = vpop.permute.xlu0 %1396
        %1398 = vrot.lane.b32.xlu0 %v1395, 113
        %v1399 = vpop.permute.xlu0 %1398
        %1400 = vrot.lane.b32.xlu0 %v1392, 113
        %v1401 = vpop.permute.xlu0 %1400
        %v1402 = vsel %vm601, %v1397, %v1399
        %v1403 = vsel %vm601, %v1399, %v1401
        %v1406 = vsel %vm465, %v1402, 0.0
        %v1407 = vsel %vm466, %v1403, 0.0
        %1408 = vst [vmem:[#allocation3 + $0x30] sm:$0xf] %v1406
        %1409 = vst [vmem:[#allocation3 + $0x38] sm:$0xf] %v1407
        %v1410 = vld [vmem:[#allocation2 + $0x4] sm:$0xff]
        %v1411 = vld [vmem:[#allocation2 + $0xc] sm:$0xf]
        %v1414 = vcombine.low %v1410, %v1410
        %v1415 = vcombine.low %v1411, %v1411
        %1416 = vrot.lane.b32.xlu0 %v1414, 112
        %v1417 = vpop.permute.xlu0 %1416
        %1418 = vrot.lane.b32.xlu0 %v1410, 112
        %v1419 = vpop.permute.xlu0 %1418
        %1420 = vrot.lane.b32.xlu0 %v1415, 112
        %v1421 = vpop.permute.xlu0 %1420
        %v1422 = vsel %vm622, %v1417, %v1419
        %v1423 = vsel %vm622, %v1419, %v1421
        %1426 = vst [vmem:[#allocation3 + $0x30] sm:$0xf0] %v1422
        %1427 = vst [vmem:[#allocation3 + $0x38] sm:$0xf0] %v1423
        %v1428 = vld [vmem:[#allocation2 + $0x4] sm:$0xff]
        %v1429 = vld [vmem:[#allocation2 + $0xc] sm:$0xf]
        %v1432 = vcombine.high %v1428, %v1428
        %1433 = vrot.lane.b32.xlu0 %v1428, 111
        %v1434 = vpop.permute.xlu0 %1433
        %1435 = vrot.lane.b32.xlu0 %v1432, 111
        %v1436 = vpop.permute.xlu0 %1435
        %1437 = vrot.lane.b32.xlu0 %v1429, 111
        %v1438 = vpop.permute.xlu0 %1437
        %v1439 = vsel %vm640, %v1434, %v1436
        %v1440 = vsel %vm640, %v1436, %v1438
        %v1443 = vsel %vm467, %v1439, 0.0
        %v1444 = vsel %vm468, %v1440, 0.0
        %1445 = vst [vmem:[#allocation3 + $0x40] sm:$0xf] %v1443
        %1446 = vst [vmem:[#allocation3 + $0x48] sm:$0xf] %v1444
        %v1447 = vld [vmem:[#allocation3] sm:$0xff]
        %v1448 = vld [vmem:[#allocation3 + $0x8] sm:$0xff]
        %v1449 = vld [vmem:[#allocation3 + $0x10] sm:$0xff]
        %v1450 = vld [vmem:[#allocation3 + $0x18] sm:$0xff]
        %v1451 = vld [vmem:[#allocation3 + $0x20] sm:$0xff]
        %v1452 = vld [vmem:[#allocation3 + $0x28] sm:$0xff]
        %v1453 = vld [vmem:[#allocation3 + $0x30] sm:$0xff]
        %v1454 = vld [vmem:[#allocation3 + $0x38] sm:$0xff]
        %v1455 = vld [vmem:[#allocation3 + $0x40] sm:$0xf]
        %v1456 = vld [vmem:[#allocation3 + $0x48] sm:$0xf]
        %v1458 = vsel %vm668, %v1455, 0
        %v1461 = vsel %vm668, %v1456, 0
        %1463 = vmatprep.subr.mxu0 %v1448
        %1464 = vmatpush1.msra.mxu0 %v1447
        %1465 = vmatprep.subr.mxu0 %v1450
        %1466 = vmatpush1.msra.mxu0 %v1449
        %1467 = vmatprep.subr.mxu0 %v1452
        %1468 = vmatpush1.msra.mxu0 %v1451
        %1469 = vmatprep.subr.mxu0 %v1454
        %1470 = vmatpush1.msra.mxu0 %v1453
        %1471 = vmatprep.subr.mxu0 %v1461
        %1472 = vmatpush1.msra.mxu0 %v1458
        %1473 = vmatprep.subr.mxu0 0.0
        %1474 = vmatpush1.msra.mxu0 0.0
        %1475 = vmatprep.subr.mxu0 0.0
        %1476 = vmatpush1.msra.mxu0 0.0
        %1477 = vmatprep.subr.mxu0 0.0
        %1478 = vmatpush1.msra.mxu0 0.0
        %1479 = vmatprep.subr.mxu0 0.0
        %1480 = vmatpush1.msra.mxu0 0.0
        %1481 = vmatprep.subr.mxu0 0.0
        %1482 = vmatpush1.msra.mxu0 0.0
        %1483 = vmatprep.subr.mxu0 0.0
        %1484 = vmatpush1.msra.mxu0 0.0
        %1485 = vmatprep.subr.mxu0 0.0
        %1486 = vmatpush1.msra.mxu0 0.0
        %1487 = vmatprep.subr.mxu0 0.0
        %1488 = vmatpush1.msra.mxu0 0.0
        %1489 = vmatprep.subr.mxu0 0.0
        %1490 = vmatpush1.msra.mxu0 0.0
        %1491 = vmatprep.subr.mxu0 0.0
        %1492 = vmatpush1.msra.mxu0 0.0
        %1493 = vmatprep.subr.mxu0 0.0
        %1494 = vmatpush1.msra.mxu0 0.0
        %1495 = vmatprep.subr.mxu0 0.0
        %1496 = vmatpush1.msra.mxu0 0.0
        %1497 = vmatprep.subr.mxu0 0.0
        %1498 = vmatpush1.msra.mxu0 0.0
        %1499 = vmatprep.subr.mxu0 0.0
        %1500 = vmatpush1.msra.mxu0 0.0
        %1501 = vmatprep.subr.mxu0 0.0
        %1502 = vmatpush1.msra.mxu0 0.0
        %1503 = vmatprep.subr.mxu0 0.0
        %1504 = vmatpush1.msra.mxu0 0.0
        %1505 = vmatprep.subr.mxu0 0.0
        %1506 = vmatpush1.msra.mxu0 0.0
        %1507 = vmatprep.subr.mxu0 0.0
        %1508 = vmatpush1.msra.mxu0 0.0
        %1509 = vmatprep.subr.mxu0 0.0
        %1510 = vmatpush1.msra.mxu0 0.0
        %1511 = vmatprep.subr.mxu0 0.0
        %1512 = vmatpush1.msra.mxu0 0.0
        %1513 = vmatprep.subr.mxu0 0.0
        %1514 = vmatpush1.msra.mxu0 0.0
        %1515 = vmatprep.subr.mxu0 0.0
        %1516 = vmatpush1.msra.mxu0 0.0
        %1517 = vmatprep.subr.mxu0 0.0
        %1518 = vmatpush1.msra.mxu0 0.0
        %1519 = vmatprep.subr.mxu0 0.0
        %1520 = vmatpush1.msra.mxu0 0.0
        %1521 = vmatprep.subr.mxu0 0.0
        %1522 = vmatpush1.msra.mxu0 0.0
        %1523 = vmatprep.subr.mxu0 0.0
        %1524 = vmatpush1.msra.mxu0 0.0
        %1525 = vmatprep.subr.mxu0 0.0
        %1526 = vmatpush1.msra.mxu0 0.0
        %1527 = vmatprep.mubr.f32.mxu0 0.0
        %1528 = vmatmul.mubr.f32.gmra.mrb[0].mxu0 %v666
        %v1529 = vpop.f32.mrb[0].mxu0
        %v1530 = vadd.f32 %v662, %v1529
        %v1531 = vpop.f32.mrb[0].mxu0
        %v1532 = vadd.f32 %v662, %v1531
        %1533 = vdwg.mxu0
        %v1534 = vmax.f32 %v1530, 0.0
        %v1535 = vmax.f32 %v1532, 0.0
        %s1536 = scalar_lea.vmem %s330, 48
        %1537 = vst [vmem:[%s1536] sm:$0xff] %v1534
        %1538 = vst [vmem:[%s1536 + $0x8] sm:$0xff] %v1535
        %s1539 = scalar_lea.vmem %s323, 32
        %v1540 = vld [vmem:[%s1539] sm:$0xff]
        %1541 = vst [vmem:[#allocation2 + $0x4] sm:$0xff] %v1540
        %v1542 = vld [vmem:[#allocation2] sm:$0xff]
        %v1543 = vld [vmem:[#allocation2 + $0x8] sm:$0xf]
        %v1546 = vcombine.high %v1542, %v1542
        %1547 = vrot.lane.b32.xlu0 %v1542, 17
        %v1548 = vpop.permute.xlu0 %1547
        %1549 = vrot.lane.b32.xlu0 %v1546, 17
        %v1550 = vpop.permute.xlu0 %1549
        %1551 = vrot.lane.b32.xlu0 %v1543, 17
        %v1552 = vpop.permute.xlu0 %1551
        %v1553 = vsel %vm484, %v1548, %v1550
        %v1554 = vsel %vm484, %v1550, %v1552
        %v1557 = vsel %vm465, %v1553, 0.0
        %v1558 = vsel %vm466, %v1554, 0.0
        %1559 = vst [vmem:[#allocation3] sm:$0xf] %v1557
        %1560 = vst [vmem:[#allocation3 + $0x8] sm:$0xf] %v1558
        %v1561 = vld [vmem:[#allocation2] sm:$0xff]
        %v1562 = vld [vmem:[#allocation2 + $0x8] sm:$0xf]
        %v1565 = vcombine.low %v1561, %v1561
        %v1566 = vcombine.low %v1562, %v1562
        %1567 = vrot.lane.b32.xlu0 %v1565, 16
        %v1568 = vpop.permute.xlu0 %1567
        %1569 = vrot.lane.b32.xlu0 %v1561, 16
        %v1570 = vpop.permute.xlu0 %1569
        %1571 = vrot.lane.b32.xlu0 %v1566, 16
        %v1572 = vpop.permute.xlu0 %1571
        %v1573 = vsel %vm505, %v1568, %v1570
        %v1574 = vsel %vm505, %v1570, %v1572
        %1577 = vst [vmem:[#allocation3] sm:$0xf0] %v1573
        %1578 = vst [vmem:[#allocation3 + $0x8] sm:$0xf0] %v1574
        %v1579 = vld [vmem:[#allocation2] sm:$0xff]
        %v1580 = vld [vmem:[#allocation2 + $0x8] sm:$0xf]
        %v1583 = vcombine.high %v1579, %v1579
        %1584 = vrot.lane.b32.xlu0 %v1579, 15
        %v1585 = vpop.permute.xlu0 %1584
        %1586 = vrot.lane.b32.xlu0 %v1583, 15
        %v1587 = vpop.permute.xlu0 %1586
        %1588 = vrot.lane.b32.xlu0 %v1580, 15
        %v1589 = vpop.permute.xlu0 %1588
        %v1590 = vsel %vm523, %v1585, %v1587
        %v1591 = vsel %vm523, %v1587, %v1589
        %v1594 = vsel %vm467, %v1590, 0.0
        %v1595 = vsel %vm468, %v1591, 0.0
        %1596 = vst [vmem:[#allocation3 + $0x10] sm:$0xf] %v1594
        %1597 = vst [vmem:[#allocation3 + $0x18] sm:$0xf] %v1595
        %v1598 = vld [vmem:[#allocation2] sm:$0xff]
        %v1599 = vld [vmem:[#allocation2 + $0x8] sm:$0xf]
        %v1602 = vcombine.high %v1598, %v1598
        %1603 = vrot.lane.b32.xlu0 %v1598, 1
        %v1604 = vpop.permute.xlu0 %1603
        %1605 = vrot.lane.b32.xlu0 %v1602, 1
        %v1606 = vpop.permute.xlu0 %1605
        %1607 = vrot.lane.b32.xlu0 %v1599, 1
        %v1608 = vpop.permute.xlu0 %1607
        %v1609 = vsel %vm543, %v1604, %v1606
        %v1610 = vsel %vm543, %v1606, %v1608
        %v1613 = vsel %vm465, %v1609, 0.0
        %v1614 = vsel %vm466, %v1610, 0.0
        %v1617 = vrot.slane %v1613, 4
        %v1618 = vrot.slane %v1614, 4
        %1621 = vst [vmem:[#allocation3 + $0x10] sm:$0xf0] %v1617
        %1622 = vst [vmem:[#allocation3 + $0x18] sm:$0xf0] %v1618
        %v1623 = vld [vmem:[#allocation2 + $0x4] sm:$0xff]
        %v1625 = vcombine.high %v1623, %v1623
        %1627 = vst [vmem:[#allocation3 + $0x20] sm:$0xf] %v1623
        %1628 = vst [vmem:[#allocation3 + $0x28] sm:$0xf] %v1625
        %v1629 = vld [vmem:[#allocation2 + $0x4] sm:$0xff]
        %v1630 = vld [vmem:[#allocation2 + $0xc] sm:$0xf]
        %v1633 = vcombine.high %v1629, %v1629
        %1634 = vrot.lane.b32.xlu0 %v1629, 127
        %v1635 = vpop.permute.xlu0 %1634
        %1636 = vrot.lane.b32.xlu0 %v1633, 127
        %v1637 = vpop.permute.xlu0 %1636
        %1638 = vrot.lane.b32.xlu0 %v1630, 127
        %v1639 = vpop.permute.xlu0 %1638
        %v1640 = vsel %vm575, %v1635, %v1637
        %v1641 = vsel %vm575, %v1637, %v1639
        %v1644 = vsel %vm467, %v1640, 0.0
        %v1645 = vsel %vm468, %v1641, 0.0
        %v1648 = vrot.slane %v1644, 4
        %v1649 = vrot.slane %v1645, 4
        %1652 = vst [vmem:[#allocation3 + $0x20] sm:$0xf0] %v1648
        %1653 = vst [vmem:[#allocation3 + $0x28] sm:$0xf0] %v1649
        %v1654 = vld [vmem:[#allocation2 + $0x4] sm:$0xff]
        %v1655 = vld [vmem:[#allocation2 + $0xc] sm:$0xf]
        %v1658 = vcombine.high %v1654, %v1654
        %1659 = vrot.lane.b32.xlu0 %v1654, 113
        %v1660 = vpop.permute.xlu0 %1659
        %1661 = vrot.lane.b32.xlu0 %v1658, 113
        %v1662 = vpop.permute.xlu0 %1661
        %1663 = vrot.lane.b32.xlu0 %v1655, 113
        %v1664 = vpop.permute.xlu0 %1663
        %v1665 = vsel %vm601, %v1660, %v1662
        %v1666 = vsel %vm601, %v1662, %v1664
        %v1669 = vsel %vm465, %v1665, 0.0
        %v1670 = vsel %vm466, %v1666, 0.0
        %1671 = vst [vmem:[#allocation3 + $0x30] sm:$0xf] %v1669
        %1672 = vst [vmem:[#allocation3 + $0x38] sm:$0xf] %v1670
        %v1673 = vld [vmem:[#allocation2 + $0x4] sm:$0xff]
        %v1674 = vld [vmem:[#allocation2 + $0xc] sm:$0xf]
        %v1677 = vcombine.low %v1673, %v1673
        %v1678 = vcombine.low %v1674, %v1674
        %1679 = vrot.lane.b32.xlu0 %v1677, 112
        %v1680 = vpop.permute.xlu0 %1679
        %1681 = vrot.lane.b32.xlu0 %v1673, 112
        %v1682 = vpop.permute.xlu0 %1681
        %1683 = vrot.lane.b32.xlu0 %v1678, 112
        %v1684 = vpop.permute.xlu0 %1683
        %v1685 = vsel %vm622, %v1680, %v1682
        %v1686 = vsel %vm622, %v1682, %v1684
        %1689 = vst [vmem:[#allocation3 + $0x30] sm:$0xf0] %v1685
        %1690 = vst [vmem:[#allocation3 + $0x38] sm:$0xf0] %v1686
        %v1691 = vld [vmem:[#allocation2 + $0x4] sm:$0xff]
        %v1692 = vld [vmem:[#allocation2 + $0xc] sm:$0xf]
        %v1695 = vcombine.high %v1691, %v1691
        %1696 = vrot.lane.b32.xlu0 %v1691, 111
        %v1697 = vpop.permute.xlu0 %1696
        %1698 = vrot.lane.b32.xlu0 %v1695, 111
        %v1699 = vpop.permute.xlu0 %1698
        %1700 = vrot.lane.b32.xlu0 %v1692, 111
        %v1701 = vpop.permute.xlu0 %1700
        %v1702 = vsel %vm640, %v1697, %v1699
        %v1703 = vsel %vm640, %v1699, %v1701
        %v1706 = vsel %vm467, %v1702, 0.0
        %v1707 = vsel %vm468, %v1703, 0.0
        %1708 = vst [vmem:[#allocation3 + $0x40] sm:$0xf] %v1706
        %1709 = vst [vmem:[#allocation3 + $0x48] sm:$0xf] %v1707
        %v1710 = vld [vmem:[#allocation3] sm:$0xff]
        %v1711 = vld [vmem:[#allocation3 + $0x8] sm:$0xff]
        %v1712 = vld [vmem:[#allocation3 + $0x10] sm:$0xff]
        %v1713 = vld [vmem:[#allocation3 + $0x18] sm:$0xff]
        %v1714 = vld [vmem:[#allocation3 + $0x20] sm:$0xff]
        %v1715 = vld [vmem:[#allocation3 + $0x28] sm:$0xff]
        %v1716 = vld [vmem:[#allocation3 + $0x30] sm:$0xff]
        %v1717 = vld [vmem:[#allocation3 + $0x38] sm:$0xff]
        %v1718 = vld [vmem:[#allocation3 + $0x40] sm:$0xf]
        %v1719 = vld [vmem:[#allocation3 + $0x48] sm:$0xf]
        %v1721 = vsel %vm668, %v1718, 0
        %v1724 = vsel %vm668, %v1719, 0
        %1726 = vmatprep.subr.mxu0 %v1711
        %1727 = vmatpush1.msra.mxu0 %v1710
        %1728 = vmatprep.subr.mxu0 %v1713
        %1729 = vmatpush1.msra.mxu0 %v1712
        %1730 = vmatprep.subr.mxu0 %v1715
        %1731 = vmatpush1.msra.mxu0 %v1714
        %1732 = vmatprep.subr.mxu0 %v1717
        %1733 = vmatpush1.msra.mxu0 %v1716
        %1734 = vmatprep.subr.mxu0 %v1724
        %1735 = vmatpush1.msra.mxu0 %v1721
        %1736 = vmatprep.subr.mxu0 0.0
        %1737 = vmatpush1.msra.mxu0 0.0
        %1738 = vmatprep.subr.mxu0 0.0
        %1739 = vmatpush1.msra.mxu0 0.0
        %1740 = vmatprep.subr.mxu0 0.0
        %1741 = vmatpush1.msra.mxu0 0.0
        %1742 = vmatprep.subr.mxu0 0.0
        %1743 = vmatpush1.msra.mxu0 0.0
        %1744 = vmatprep.subr.mxu0 0.0
        %1745 = vmatpush1.msra.mxu0 0.0
        %1746 = vmatprep.subr.mxu0 0.0
        %1747 = vmatpush1.msra.mxu0 0.0
        %1748 = vmatprep.subr.mxu0 0.0
        %1749 = vmatpush1.msra.mxu0 0.0
        %1750 = vmatprep.subr.mxu0 0.0
        %1751 = vmatpush1.msra.mxu0 0.0
        %1752 = vmatprep.subr.mxu0 0.0
        %1753 = vmatpush1.msra.mxu0 0.0
        %1754 = vmatprep.subr.mxu0 0.0
        %1755 = vmatpush1.msra.mxu0 0.0
        %1756 = vmatprep.subr.mxu0 0.0
        %1757 = vmatpush1.msra.mxu0 0.0
        %1758 = vmatprep.subr.mxu0 0.0
        %1759 = vmatpush1.msra.mxu0 0.0
        %1760 = vmatprep.subr.mxu0 0.0
        %1761 = vmatpush1.msra.mxu0 0.0
        %1762 = vmatprep.subr.mxu0 0.0
        %1763 = vmatpush1.msra.mxu0 0.0
        %1764 = vmatprep.subr.mxu0 0.0
        %1765 = vmatpush1.msra.mxu0 0.0
        %1766 = vmatprep.subr.mxu0 0.0
        %1767 = vmatpush1.msra.mxu0 0.0
        %1768 = vmatprep.subr.mxu0 0.0
        %1769 = vmatpush1.msra.mxu0 0.0
        %1770 = vmatprep.subr.mxu0 0.0
        %1771 = vmatpush1.msra.mxu0 0.0
        %1772 = vmatprep.subr.mxu0 0.0
        %1773 = vmatpush1.msra.mxu0 0.0
        %1774 = vmatprep.subr.mxu0 0.0
        %1775 = vmatpush1.msra.mxu0 0.0
        %1776 = vmatprep.subr.mxu0 0.0
        %1777 = vmatpush1.msra.mxu0 0.0
        %1778 = vmatprep.subr.mxu0 0.0
        %1779 = vmatpush1.msra.mxu0 0.0
        %1780 = vmatprep.subr.mxu0 0.0
        %1781 = vmatpush1.msra.mxu0 0.0
        %1782 = vmatprep.subr.mxu0 0.0
        %1783 = vmatpush1.msra.mxu0 0.0
        %1784 = vmatprep.subr.mxu0 0.0
        %1785 = vmatpush1.msra.mxu0 0.0
        %1786 = vmatprep.subr.mxu0 0.0
        %1787 = vmatpush1.msra.mxu0 0.0
        %1788 = vmatprep.subr.mxu0 0.0
        %1789 = vmatpush1.msra.mxu0 0.0
        %1790 = vmatprep.mubr.f32.mxu0 0.0
        %1791 = vmatmul.mubr.f32.gmra.mrb[0].mxu0 %v666
        %v1792 = vpop.f32.mrb[0].mxu0
        %v1793 = vadd.f32 %v662, %v1792
        %v1794 = vpop.f32.mrb[0].mxu0
        %v1795 = vadd.f32 %v662, %v1794
        %1796 = vdwg.mxu0
        %v1797 = vmax.f32 %v1793, 0.0
        %v1798 = vmax.f32 %v1795, 0.0
        %s1799 = scalar_lea.vmem %s330, 64
        %1800 = vst [vmem:[%s1799] sm:$0xff] %v1797
        %1801 = vst [vmem:[%s1799 + $0x8] sm:$0xff] %v1798
        %s1802 = scalar_lea.vmem %s323, 40
        %v1803 = vld [vmem:[%s1802] sm:$0xff]
        %1804 = vst [vmem:[#allocation2 + $0x4] sm:$0xff] %v1803
        %v1805 = vld [vmem:[#allocation2] sm:$0xff]
        %v1806 = vld [vmem:[#allocation2 + $0x8] sm:$0xf]
        %v1809 = vcombine.high %v1805, %v1805
        %1810 = vrot.lane.b32.xlu0 %v1805, 17
        %v1811 = vpop.permute.xlu0 %1810
        %1812 = vrot.lane.b32.xlu0 %v1809, 17
        %v1813 = vpop.permute.xlu0 %1812
        %1814 = vrot.lane.b32.xlu0 %v1806, 17
        %v1815 = vpop.permute.xlu0 %1814
        %v1816 = vsel %vm484, %v1811, %v1813
        %v1817 = vsel %vm484, %v1813, %v1815
        %v1820 = vsel %vm465, %v1816, 0.0
        %v1821 = vsel %vm466, %v1817, 0.0
        %1822 = vst [vmem:[#allocation3] sm:$0xf] %v1820
        %1823 = vst [vmem:[#allocation3 + $0x8] sm:$0xf] %v1821
        %v1824 = vld [vmem:[#allocation2] sm:$0xff]
        %v1825 = vld [vmem:[#allocation2 + $0x8] sm:$0xf]
        %v1828 = vcombine.low %v1824, %v1824
        %v1829 = vcombine.low %v1825, %v1825
        %1830 = vrot.lane.b32.xlu0 %v1828, 16
        %v1831 = vpop.permute.xlu0 %1830
        %1832 = vrot.lane.b32.xlu0 %v1824, 16
        %v1833 = vpop.permute.xlu0 %1832
        %1834 = vrot.lane.b32.xlu0 %v1829, 16
        %v1835 = vpop.permute.xlu0 %1834
        %v1836 = vsel %vm505, %v1831, %v1833
        %v1837 = vsel %vm505, %v1833, %v1835
        %1840 = vst [vmem:[#allocation3] sm:$0xf0] %v1836
        %1841 = vst [vmem:[#allocation3 + $0x8] sm:$0xf0] %v1837
        %v1842 = vld [vmem:[#allocation2] sm:$0xff]
        %v1843 = vld [vmem:[#allocation2 + $0x8] sm:$0xf]
        %v1846 = vcombine.high %v1842, %v1842
        %1847 = vrot.lane.b32.xlu0 %v1842, 15
        %v1848 = vpop.permute.xlu0 %1847
        %1849 = vrot.lane.b32.xlu0 %v1846, 15
        %v1850 = vpop.permute.xlu0 %1849
        %1851 = vrot.lane.b32.xlu0 %v1843, 15
        %v1852 = vpop.permute.xlu0 %1851
        %v1853 = vsel %vm523, %v1848, %v1850
        %v1854 = vsel %vm523, %v1850, %v1852
        %v1857 = vsel %vm467, %v1853, 0.0
        %v1858 = vsel %vm468, %v1854, 0.0
        %1859 = vst [vmem:[#allocation3 + $0x10] sm:$0xf] %v1857
        %1860 = vst [vmem:[#allocation3 + $0x18] sm:$0xf] %v1858
        %v1861 = vld [vmem:[#allocation2] sm:$0xff]
        %v1862 = vld [vmem:[#allocation2 + $0x8] sm:$0xf]
        %v1865 = vcombine.high %v1861, %v1861
        %1866 = vrot.lane.b32.xlu0 %v1861, 1
        %v1867 = vpop.permute.xlu0 %1866
        %1868 = vrot.lane.b32.xlu0 %v1865, 1
        %v1869 = vpop.permute.xlu0 %1868
        %1870 = vrot.lane.b32.xlu0 %v1862, 1
        %v1871 = vpop.permute.xlu0 %1870
        %v1872 = vsel %vm543, %v1867, %v1869
        %v1873 = vsel %vm543, %v1869, %v1871
        %v1876 = vsel %vm465, %v1872, 0.0
        %v1877 = vsel %vm466, %v1873, 0.0
        %v1880 = vrot.slane %v1876, 4
        %v1881 = vrot.slane %v1877, 4
        %1884 = vst [vmem:[#allocation3 + $0x10] sm:$0xf0] %v1880
        %1885 = vst [vmem:[#allocation3 + $0x18] sm:$0xf0] %v1881
        %v1886 = vld [vmem:[#allocation2 + $0x4] sm:$0xff]
        %v1888 = vcombine.high %v1886, %v1886
        %1890 = vst [vmem:[#allocation3 + $0x20] sm:$0xf] %v1886
        %1891 = vst [vmem:[#allocation3 + $0x28] sm:$0xf] %v1888
        %v1892 = vld [vmem:[#allocation2 + $0x4] sm:$0xff]
        %v1893 = vld [vmem:[#allocation2 + $0xc] sm:$0xf]
        %v1896 = vcombine.high %v1892, %v1892
        %1897 = vrot.lane.b32.xlu0 %v1892, 127
        %v1898 = vpop.permute.xlu0 %1897
        %1899 = vrot.lane.b32.xlu0 %v1896, 127
        %v1900 = vpop.permute.xlu0 %1899
        %1901 = vrot.lane.b32.xlu0 %v1893, 127
        %v1902 = vpop.permute.xlu0 %1901
        %v1903 = vsel %vm575, %v1898, %v1900
        %v1904 = vsel %vm575, %v1900, %v1902
        %v1907 = vsel %vm467, %v1903, 0.0
        %v1908 = vsel %vm468, %v1904, 0.0
        %v1911 = vrot.slane %v1907, 4
        %v1912 = vrot.slane %v1908, 4
        %1915 = vst [vmem:[#allocation3 + $0x20] sm:$0xf0] %v1911
        %1916 = vst [vmem:[#allocation3 + $0x28] sm:$0xf0] %v1912
        %v1917 = vld [vmem:[#allocation2 + $0x4] sm:$0xff]
        %v1918 = vld [vmem:[#allocation2 + $0xc] sm:$0xf]
        %v1921 = vcombine.high %v1917, %v1917
        %1922 = vrot.lane.b32.xlu0 %v1917, 113
        %v1923 = vpop.permute.xlu0 %1922
        %1924 = vrot.lane.b32.xlu0 %v1921, 113
        %v1925 = vpop.permute.xlu0 %1924
        %1926 = vrot.lane.b32.xlu0 %v1918, 113
        %v1927 = vpop.permute.xlu0 %1926
        %v1928 = vsel %vm601, %v1923, %v1925
        %v1929 = vsel %vm601, %v1925, %v1927
        %v1932 = vsel %vm465, %v1928, 0.0
        %v1933 = vsel %vm466, %v1929, 0.0
        %1934 = vst [vmem:[#allocation3 + $0x30] sm:$0xf] %v1932
        %1935 = vst [vmem:[#allocation3 + $0x38] sm:$0xf] %v1933
        %v1936 = vld [vmem:[#allocation2 + $0x4] sm:$0xff]
        %v1937 = vld [vmem:[#allocation2 + $0xc] sm:$0xf]
        %v1940 = vcombine.low %v1936, %v1936
        %v1941 = vcombine.low %v1937, %v1937
        %1942 = vrot.lane.b32.xlu0 %v1940, 112
        %v1943 = vpop.permute.xlu0 %1942
        %1944 = vrot.lane.b32.xlu0 %v1936, 112
        %v1945 = vpop.permute.xlu0 %1944
        %1946 = vrot.lane.b32.xlu0 %v1941, 112
        %v1947 = vpop.permute.xlu0 %1946
        %v1948 = vsel %vm622, %v1943, %v1945
        %v1949 = vsel %vm622, %v1945, %v1947
        %1952 = vst [vmem:[#allocation3 + $0x30] sm:$0xf0] %v1948
        %1953 = vst [vmem:[#allocation3 + $0x38] sm:$0xf0] %v1949
        %v1954 = vld [vmem:[#allocation2 + $0x4] sm:$0xff]
        %v1955 = vld [vmem:[#allocation2 + $0xc] sm:$0xf]
        %v1958 = vcombine.high %v1954, %v1954
        %1959 = vrot.lane.b32.xlu0 %v1954, 111
        %v1960 = vpop.permute.xlu0 %1959
        %1961 = vrot.lane.b32.xlu0 %v1958, 111
        %v1962 = vpop.permute.xlu0 %1961
        %1963 = vrot.lane.b32.xlu0 %v1955, 111
        %v1964 = vpop.permute.xlu0 %1963
        %v1965 = vsel %vm640, %v1960, %v1962
        %v1966 = vsel %vm640, %v1962, %v1964
        %v1969 = vsel %vm467, %v1965, 0.0
        %v1970 = vsel %vm468, %v1966, 0.0
        %1971 = vst [vmem:[#allocation3 + $0x40] sm:$0xf] %v1969
        %1972 = vst [vmem:[#allocation3 + $0x48] sm:$0xf] %v1970
        %v1973 = vld [vmem:[#allocation3] sm:$0xff]
        %v1974 = vld [vmem:[#allocation3 + $0x8] sm:$0xff]
        %v1975 = vld [vmem:[#allocation3 + $0x10] sm:$0xff]
        %v1976 = vld [vmem:[#allocation3 + $0x18] sm:$0xff]
        %v1977 = vld [vmem:[#allocation3 + $0x20] sm:$0xff]
        %v1978 = vld [vmem:[#allocation3 + $0x28] sm:$0xff]
        %v1979 = vld [vmem:[#allocation3 + $0x30] sm:$0xff]
        %v1980 = vld [vmem:[#allocation3 + $0x38] sm:$0xff]
        %v1981 = vld [vmem:[#allocation3 + $0x40] sm:$0xf]
        %v1982 = vld [vmem:[#allocation3 + $0x48] sm:$0xf]
        %v1984 = vsel %vm668, %v1981, 0
        %v1987 = vsel %vm668, %v1982, 0
        %1989 = vmatprep.subr.mxu0 %v1974
        %1990 = vmatpush1.msra.mxu0 %v1973
        %1991 = vmatprep.subr.mxu0 %v1976
        %1992 = vmatpush1.msra.mxu0 %v1975
        %1993 = vmatprep.subr.mxu0 %v1978
        %1994 = vmatpush1.msra.mxu0 %v1977
        %1995 = vmatprep.subr.mxu0 %v1980
        %1996 = vmatpush1.msra.mxu0 %v1979
        %1997 = vmatprep.subr.mxu0 %v1987
        %1998 = vmatpush1.msra.mxu0 %v1984
        %1999 = vmatprep.subr.mxu0 0.0
        %2000 = vmatpush1.msra.mxu0 0.0
        %2001 = vmatprep.subr.mxu0 0.0
        %2002 = vmatpush1.msra.mxu0 0.0
        %2003 = vmatprep.subr.mxu0 0.0
        %2004 = vmatpush1.msra.mxu0 0.0
        %2005 = vmatprep.subr.mxu0 0.0
        %2006 = vmatpush1.msra.mxu0 0.0
        %2007 = vmatprep.subr.mxu0 0.0
        %2008 = vmatpush1.msra.mxu0 0.0
        %2009 = vmatprep.subr.mxu0 0.0
        %2010 = vmatpush1.msra.mxu0 0.0
        %2011 = vmatprep.subr.mxu0 0.0
        %2012 = vmatpush1.msra.mxu0 0.0
        %2013 = vmatprep.subr.mxu0 0.0
        %2014 = vmatpush1.msra.mxu0 0.0
        %2015 = vmatprep.subr.mxu0 0.0
        %2016 = vmatpush1.msra.mxu0 0.0
        %2017 = vmatprep.subr.mxu0 0.0
        %2018 = vmatpush1.msra.mxu0 0.0
        %2019 = vmatprep.subr.mxu0 0.0
        %2020 = vmatpush1.msra.mxu0 0.0
        %2021 = vmatprep.subr.mxu0 0.0
        %2022 = vmatpush1.msra.mxu0 0.0
        %2023 = vmatprep.subr.mxu0 0.0
        %2024 = vmatpush1.msra.mxu0 0.0
        %2025 = vmatprep.subr.mxu0 0.0
        %2026 = vmatpush1.msra.mxu0 0.0
        %2027 = vmatprep.subr.mxu0 0.0
        %2028 = vmatpush1.msra.mxu0 0.0
        %2029 = vmatprep.subr.mxu0 0.0
        %2030 = vmatpush1.msra.mxu0 0.0
        %2031 = vmatprep.subr.mxu0 0.0
        %2032 = vmatpush1.msra.mxu0 0.0
        %2033 = vmatprep.subr.mxu0 0.0
        %2034 = vmatpush1.msra.mxu0 0.0
        %2035 = vmatprep.subr.mxu0 0.0
        %2036 = vmatpush1.msra.mxu0 0.0
        %2037 = vmatprep.subr.mxu0 0.0
        %2038 = vmatpush1.msra.mxu0 0.0
        %2039 = vmatprep.subr.mxu0 0.0
        %2040 = vmatpush1.msra.mxu0 0.0
        %2041 = vmatprep.subr.mxu0 0.0
        %2042 = vmatpush1.msra.mxu0 0.0
        %2043 = vmatprep.subr.mxu0 0.0
        %2044 = vmatpush1.msra.mxu0 0.0
        %2045 = vmatprep.subr.mxu0 0.0
        %2046 = vmatpush1.msra.mxu0 0.0
        %2047 = vmatprep.subr.mxu0 0.0
        %2048 = vmatpush1.msra.mxu0 0.0
        %2049 = vmatprep.subr.mxu0 0.0
        %2050 = vmatpush1.msra.mxu0 0.0
        %2051 = vmatprep.subr.mxu0 0.0
        %2052 = vmatpush1.msra.mxu0 0.0
        %2053 = vmatprep.mubr.f32.mxu0 0.0
        %2054 = vmatmul.mubr.f32.gmra.mrb[0].mxu0 %v666
        %v2055 = vpop.f32.mrb[0].mxu0
        %v2056 = vadd.f32 %v662, %v2055
        %v2057 = vpop.f32.mrb[0].mxu0
        %v2058 = vadd.f32 %v662, %v2057
        %2059 = vdwg.mxu0
        %v2060 = vmax.f32 %v2056, 0.0
        %v2061 = vmax.f32 %v2058, 0.0
        %s2062 = scalar_lea.vmem %s330, 80
        %2063 = vst [vmem:[%s2062] sm:$0xff] %v2060
        %2064 = vst [vmem:[%s2062 + $0x8] sm:$0xff] %v2061
        %s2065 = scalar_lea.vmem %s323, 48
        %v2066 = vld [vmem:[%s2065] sm:$0xff]
        %2067 = vst [vmem:[#allocation2 + $0x4] sm:$0xff] %v2066
        %v2068 = vld [vmem:[#allocation2] sm:$0xff]
        %v2069 = vld [vmem:[#allocation2 + $0x8] sm:$0xf]
        %v2072 = vcombine.high %v2068, %v2068
        %2073 = vrot.lane.b32.xlu0 %v2068, 17
        %v2074 = vpop.permute.xlu0 %2073
        %2075 = vrot.lane.b32.xlu0 %v2072, 17
        %v2076 = vpop.permute.xlu0 %2075
        %2077 = vrot.lane.b32.xlu0 %v2069, 17
        %v2078 = vpop.permute.xlu0 %2077
        %v2079 = vsel %vm484, %v2074, %v2076
        %v2080 = vsel %vm484, %v2076, %v2078
        %v2083 = vsel %vm465, %v2079, 0.0
        %v2084 = vsel %vm466, %v2080, 0.0
        %2085 = vst [vmem:[#allocation3] sm:$0xf] %v2083
        %2086 = vst [vmem:[#allocation3 + $0x8] sm:$0xf] %v2084
        %v2087 = vld [vmem:[#allocation2] sm:$0xff]
        %v2088 = vld [vmem:[#allocation2 + $0x8] sm:$0xf]
        %v2091 = vcombine.low %v2087, %v2087
        %v2092 = vcombine.low %v2088, %v2088
        %2093 = vrot.lane.b32.xlu0 %v2091, 16
        %v2094 = vpop.permute.xlu0 %2093
        %2095 = vrot.lane.b32.xlu0 %v2087, 16
        %v2096 = vpop.permute.xlu0 %2095
        %2097 = vrot.lane.b32.xlu0 %v2092, 16
        %v2098 = vpop.permute.xlu0 %2097
        %v2099 = vsel %vm505, %v2094, %v2096
        %v2100 = vsel %vm505, %v2096, %v2098
        %2103 = vst [vmem:[#allocation3] sm:$0xf0] %v2099
        %2104 = vst [vmem:[#allocation3 + $0x8] sm:$0xf0] %v2100
        %v2105 = vld [vmem:[#allocation2] sm:$0xff]
        %v2106 = vld [vmem:[#allocation2 + $0x8] sm:$0xf]
        %v2109 = vcombine.high %v2105, %v2105
        %2110 = vrot.lane.b32.xlu0 %v2105, 15
        %v2111 = vpop.permute.xlu0 %2110
        %2112 = vrot.lane.b32.xlu0 %v2109, 15
        %v2113 = vpop.permute.xlu0 %2112
        %2114 = vrot.lane.b32.xlu0 %v2106, 15
        %v2115 = vpop.permute.xlu0 %2114
        %v2116 = vsel %vm523, %v2111, %v2113
        %v2117 = vsel %vm523, %v2113, %v2115
        %v2120 = vsel %vm467, %v2116, 0.0
        %v2121 = vsel %vm468, %v2117, 0.0
        %2122 = vst [vmem:[#allocation3 + $0x10] sm:$0xf] %v2120
        %2123 = vst [vmem:[#allocation3 + $0x18] sm:$0xf] %v2121
        %v2124 = vld [vmem:[#allocation2] sm:$0xff]
        %v2125 = vld [vmem:[#allocation2 + $0x8] sm:$0xf]
        %v2128 = vcombine.high %v2124, %v2124
        %2129 = vrot.lane.b32.xlu0 %v2124, 1
        %v2130 = vpop.permute.xlu0 %2129
        %2131 = vrot.lane.b32.xlu0 %v2128, 1
        %v2132 = vpop.permute.xlu0 %2131
        %2133 = vrot.lane.b32.xlu0 %v2125, 1
        %v2134 = vpop.permute.xlu0 %2133
        %v2135 = vsel %vm543, %v2130, %v2132
        %v2136 = vsel %vm543, %v2132, %v2134
        %v2139 = vsel %vm465, %v2135, 0.0
        %v2140 = vsel %vm466, %v2136, 0.0
        %v2143 = vrot.slane %v2139, 4
        %v2144 = vrot.slane %v2140, 4
        %2147 = vst [vmem:[#allocation3 + $0x10] sm:$0xf0] %v2143
        %2148 = vst [vmem:[#allocation3 + $0x18] sm:$0xf0] %v2144
        %v2149 = vld [vmem:[#allocation2 + $0x4] sm:$0xff]
        %v2151 = vcombine.high %v2149, %v2149
        %2153 = vst [vmem:[#allocation3 + $0x20] sm:$0xf] %v2149
        %2154 = vst [vmem:[#allocation3 + $0x28] sm:$0xf] %v2151
        %v2155 = vld [vmem:[#allocation2 + $0x4] sm:$0xff]
        %v2156 = vld [vmem:[#allocation2 + $0xc] sm:$0xf]
        %v2159 = vcombine.high %v2155, %v2155
        %2160 = vrot.lane.b32.xlu0 %v2155, 127
        %v2161 = vpop.permute.xlu0 %2160
        %2162 = vrot.lane.b32.xlu0 %v2159, 127
        %v2163 = vpop.permute.xlu0 %2162
        %2164 = vrot.lane.b32.xlu0 %v2156, 127
        %v2165 = vpop.permute.xlu0 %2164
        %v2166 = vsel %vm575, %v2161, %v2163
        %v2167 = vsel %vm575, %v2163, %v2165
        %v2170 = vsel %vm467, %v2166, 0.0
        %v2171 = vsel %vm468, %v2167, 0.0
        %v2174 = vrot.slane %v2170, 4
        %v2175 = vrot.slane %v2171, 4
        %2178 = vst [vmem:[#allocation3 + $0x20] sm:$0xf0] %v2174
        %2179 = vst [vmem:[#allocation3 + $0x28] sm:$0xf0] %v2175
        %v2180 = vld [vmem:[#allocation2 + $0x4] sm:$0xff]
        %v2181 = vld [vmem:[#allocation2 + $0xc] sm:$0xf]
        %v2184 = vcombine.high %v2180, %v2180
        %2185 = vrot.lane.b32.xlu0 %v2180, 113
        %v2186 = vpop.permute.xlu0 %2185
        %2187 = vrot.lane.b32.xlu0 %v2184, 113
        %v2188 = vpop.permute.xlu0 %2187
        %2189 = vrot.lane.b32.xlu0 %v2181, 113
        %v2190 = vpop.permute.xlu0 %2189
        %v2191 = vsel %vm601, %v2186, %v2188
        %v2192 = vsel %vm601, %v2188, %v2190
        %v2195 = vsel %vm465, %v2191, 0.0
        %v2196 = vsel %vm466, %v2192, 0.0
        %2197 = vst [vmem:[#allocation3 + $0x30] sm:$0xf] %v2195
        %2198 = vst [vmem:[#allocation3 + $0x38] sm:$0xf] %v2196
        %v2199 = vld [vmem:[#allocation2 + $0x4] sm:$0xff]
        %v2200 = vld [vmem:[#allocation2 + $0xc] sm:$0xf]
        %v2203 = vcombine.low %v2199, %v2199
        %v2204 = vcombine.low %v2200, %v2200
        %2205 = vrot.lane.b32.xlu0 %v2203, 112
        %v2206 = vpop.permute.xlu0 %2205
        %2207 = vrot.lane.b32.xlu0 %v2199, 112
        %v2208 = vpop.permute.xlu0 %2207
        %2209 = vrot.lane.b32.xlu0 %v2204, 112
        %v2210 = vpop.permute.xlu0 %2209
        %v2211 = vsel %vm622, %v2206, %v2208
        %v2212 = vsel %vm622, %v2208, %v2210
        %2215 = vst [vmem:[#allocation3 + $0x30] sm:$0xf0] %v2211
        %2216 = vst [vmem:[#allocation3 + $0x38] sm:$0xf0] %v2212
        %v2217 = vld [vmem:[#allocation2 + $0x4] sm:$0xff]
        %v2218 = vld [vmem:[#allocation2 + $0xc] sm:$0xf]
        %v2221 = vcombine.high %v2217, %v2217
        %2222 = vrot.lane.b32.xlu0 %v2217, 111
        %v2223 = vpop.permute.xlu0 %2222
        %2224 = vrot.lane.b32.xlu0 %v2221, 111
        %v2225 = vpop.permute.xlu0 %2224
        %2226 = vrot.lane.b32.xlu0 %v2218, 111
        %v2227 = vpop.permute.xlu0 %2226
        %v2228 = vsel %vm640, %v2223, %v2225
        %v2229 = vsel %vm640, %v2225, %v2227
        %v2232 = vsel %vm467, %v2228, 0.0
        %v2233 = vsel %vm468, %v2229, 0.0
        %2234 = vst [vmem:[#allocation3 + $0x40] sm:$0xf] %v2232
        %2235 = vst [vmem:[#allocation3 + $0x48] sm:$0xf] %v2233
        %v2236 = vld [vmem:[#allocation3] sm:$0xff]
        %v2237 = vld [vmem:[#allocation3 + $0x8] sm:$0xff]
        %v2238 = vld [vmem:[#allocation3 + $0x10] sm:$0xff]
        %v2239 = vld [vmem:[#allocation3 + $0x18] sm:$0xff]
        %v2240 = vld [vmem:[#allocation3 + $0x20] sm:$0xff]
        %v2241 = vld [vmem:[#allocation3 + $0x28] sm:$0xff]
        %v2242 = vld [vmem:[#allocation3 + $0x30] sm:$0xff]
        %v2243 = vld [vmem:[#allocation3 + $0x38] sm:$0xff]
        %v2244 = vld [vmem:[#allocation3 + $0x40] sm:$0xf]
        %v2245 = vld [vmem:[#allocation3 + $0x48] sm:$0xf]
        %v2247 = vsel %vm668, %v2244, 0
        %v2250 = vsel %vm668, %v2245, 0
        %2252 = vmatprep.subr.mxu0 %v2237
        %2253 = vmatpush1.msra.mxu0 %v2236
        %2254 = vmatprep.subr.mxu0 %v2239
        %2255 = vmatpush1.msra.mxu0 %v2238
        %2256 = vmatprep.subr.mxu0 %v2241
        %2257 = vmatpush1.msra.mxu0 %v2240
        %2258 = vmatprep.subr.mxu0 %v2243
        %2259 = vmatpush1.msra.mxu0 %v2242
        %2260 = vmatprep.subr.mxu0 %v2250
        %2261 = vmatpush1.msra.mxu0 %v2247
        %2262 = vmatprep.subr.mxu0 0.0
        %2263 = vmatpush1.msra.mxu0 0.0
        %2264 = vmatprep.subr.mxu0 0.0
        %2265 = vmatpush1.msra.mxu0 0.0
        %2266 = vmatprep.subr.mxu0 0.0
        %2267 = vmatpush1.msra.mxu0 0.0
        %2268 = vmatprep.subr.mxu0 0.0
        %2269 = vmatpush1.msra.mxu0 0.0
        %2270 = vmatprep.subr.mxu0 0.0
        %2271 = vmatpush1.msra.mxu0 0.0
        %2272 = vmatprep.subr.mxu0 0.0
        %2273 = vmatpush1.msra.mxu0 0.0
        %2274 = vmatprep.subr.mxu0 0.0
        %2275 = vmatpush1.msra.mxu0 0.0
        %2276 = vmatprep.subr.mxu0 0.0
        %2277 = vmatpush1.msra.mxu0 0.0
        %2278 = vmatprep.subr.mxu0 0.0
        %2279 = vmatpush1.msra.mxu0 0.0
        %2280 = vmatprep.subr.mxu0 0.0
        %2281 = vmatpush1.msra.mxu0 0.0
        %2282 = vmatprep.subr.mxu0 0.0
        %2283 = vmatpush1.msra.mxu0 0.0
        %2284 = vmatprep.subr.mxu0 0.0
        %2285 = vmatpush1.msra.mxu0 0.0
        %2286 = vmatprep.subr.mxu0 0.0
        %2287 = vmatpush1.msra.mxu0 0.0
        %2288 = vmatprep.subr.mxu0 0.0
        %2289 = vmatpush1.msra.mxu0 0.0
        %2290 = vmatprep.subr.mxu0 0.0
        %2291 = vmatpush1.msra.mxu0 0.0
        %2292 = vmatprep.subr.mxu0 0.0
        %2293 = vmatpush1.msra.mxu0 0.0
        %2294 = vmatprep.subr.mxu0 0.0
        %2295 = vmatpush1.msra.mxu0 0.0
        %2296 = vmatprep.subr.mxu0 0.0
        %2297 = vmatpush1.msra.mxu0 0.0
        %2298 = vmatprep.subr.mxu0 0.0
        %2299 = vmatpush1.msra.mxu0 0.0
        %2300 = vmatprep.subr.mxu0 0.0
        %2301 = vmatpush1.msra.mxu0 0.0
        %2302 = vmatprep.subr.mxu0 0.0
        %2303 = vmatpush1.msra.mxu0 0.0
        %2304 = vmatprep.subr.mxu0 0.0
        %2305 = vmatpush1.msra.mxu0 0.0
        %2306 = vmatprep.subr.mxu0 0.0
        %2307 = vmatpush1.msra.mxu0 0.0
        %2308 = vmatprep.subr.mxu0 0.0
        %2309 = vmatpush1.msra.mxu0 0.0
        %2310 = vmatprep.subr.mxu0 0.0
        %2311 = vmatpush1.msra.mxu0 0.0
        %2312 = vmatprep.subr.mxu0 0.0
        %2313 = vmatpush1.msra.mxu0 0.0
        %2314 = vmatprep.subr.mxu0 0.0
        %2315 = vmatpush1.msra.mxu0 0.0
        %2316 = vmatprep.mubr.f32.mxu0 0.0
        %2317 = vmatmul.mubr.f32.gmra.mrb[0].mxu0 %v666
        %v2318 = vpop.f32.mrb[0].mxu0
        %v2319 = vadd.f32 %v662, %v2318
        %v2320 = vpop.f32.mrb[0].mxu0
        %v2321 = vadd.f32 %v662, %v2320
        %2322 = vdwg.mxu0
        %v2323 = vmax.f32 %v2319, 0.0
        %v2324 = vmax.f32 %v2321, 0.0
        %s2325 = scalar_lea.vmem %s330, 96
        %2326 = vst [vmem:[%s2325] sm:$0xff] %v2323
        %2327 = vst [vmem:[%s2325 + $0x8] sm:$0xff] %v2324
        %s2328 = scalar_lea.vmem %s323, 56
        %v2329 = vld [vmem:[%s2328] sm:$0xff]
        %2330 = vst [vmem:[#allocation2 + $0x4] sm:$0xff] %v2329
        %v2331 = vld [vmem:[#allocation2] sm:$0xff]
        %v2332 = vld [vmem:[#allocation2 + $0x8] sm:$0xf]
        %v2335 = vcombine.high %v2331, %v2331
        %2336 = vrot.lane.b32.xlu0 %v2331, 17
        %v2337 = vpop.permute.xlu0 %2336
        %2338 = vrot.lane.b32.xlu0 %v2335, 17
        %v2339 = vpop.permute.xlu0 %2338
        %2340 = vrot.lane.b32.xlu0 %v2332, 17
        %v2341 = vpop.permute.xlu0 %2340
        %v2342 = vsel %vm484, %v2337, %v2339
        %v2343 = vsel %vm484, %v2339, %v2341
        %v2346 = vsel %vm465, %v2342, 0.0
        %v2347 = vsel %vm466, %v2343, 0.0
        %2348 = vst [vmem:[#allocation3] sm:$0xf] %v2346
        %2349 = vst [vmem:[#allocation3 + $0x8] sm:$0xf] %v2347
        %v2350 = vld [vmem:[#allocation2] sm:$0xff]
        %v2351 = vld [vmem:[#allocation2 + $0x8] sm:$0xf]
        %v2354 = vcombine.low %v2350, %v2350
        %v2355 = vcombine.low %v2351, %v2351
        %2356 = vrot.lane.b32.xlu0 %v2354, 16
        %v2357 = vpop.permute.xlu0 %2356
        %2358 = vrot.lane.b32.xlu0 %v2350, 16
        %v2359 = vpop.permute.xlu0 %2358
        %2360 = vrot.lane.b32.xlu0 %v2355, 16
        %v2361 = vpop.permute.xlu0 %2360
        %v2362 = vsel %vm505, %v2357, %v2359
        %v2363 = vsel %vm505, %v2359, %v2361
        %2366 = vst [vmem:[#allocation3] sm:$0xf0] %v2362
        %2367 = vst [vmem:[#allocation3 + $0x8] sm:$0xf0] %v2363
        %v2368 = vld [vmem:[#allocation2] sm:$0xff]
        %v2369 = vld [vmem:[#allocation2 + $0x8] sm:$0xf]
        %v2372 = vcombine.high %v2368, %v2368
        %2373 = vrot.lane.b32.xlu0 %v2368, 15
        %v2374 = vpop.permute.xlu0 %2373
        %2375 = vrot.lane.b32.xlu0 %v2372, 15
        %v2376 = vpop.permute.xlu0 %2375
        %2377 = vrot.lane.b32.xlu0 %v2369, 15
        %v2378 = vpop.permute.xlu0 %2377
        %v2379 = vsel %vm523, %v2374, %v2376
        %v2380 = vsel %vm523, %v2376, %v2378
        %v2383 = vsel %vm467, %v2379, 0.0
        %v2384 = vsel %vm468, %v2380, 0.0
        %2385 = vst [vmem:[#allocation3 + $0x10] sm:$0xf] %v2383
        %2386 = vst [vmem:[#allocation3 + $0x18] sm:$0xf] %v2384
        %v2387 = vld [vmem:[#allocation2] sm:$0xff]
        %v2388 = vld [vmem:[#allocation2 + $0x8] sm:$0xf]
        %v2391 = vcombine.high %v2387, %v2387
        %2392 = vrot.lane.b32.xlu0 %v2387, 1
        %v2393 = vpop.permute.xlu0 %2392
        %2394 = vrot.lane.b32.xlu0 %v2391, 1
        %v2395 = vpop.permute.xlu0 %2394
        %2396 = vrot.lane.b32.xlu0 %v2388, 1
        %v2397 = vpop.permute.xlu0 %2396
        %v2398 = vsel %vm543, %v2393, %v2395
        %v2399 = vsel %vm543, %v2395, %v2397
        %v2402 = vsel %vm465, %v2398, 0.0
        %v2403 = vsel %vm466, %v2399, 0.0
        %v2406 = vrot.slane %v2402, 4
        %v2407 = vrot.slane %v2403, 4
        %2410 = vst [vmem:[#allocation3 + $0x10] sm:$0xf0] %v2406
        %2411 = vst [vmem:[#allocation3 + $0x18] sm:$0xf0] %v2407
        %v2412 = vld [vmem:[#allocation2 + $0x4] sm:$0xff]
        %v2414 = vcombine.high %v2412, %v2412
        %2416 = vst [vmem:[#allocation3 + $0x20] sm:$0xf] %v2412
        %2417 = vst [vmem:[#allocation3 + $0x28] sm:$0xf] %v2414
        %v2418 = vld [vmem:[#allocation2 + $0x4] sm:$0xff]
        %v2419 = vld [vmem:[#allocation2 + $0xc] sm:$0xf]
        %v2422 = vcombine.high %v2418, %v2418
        %2423 = vrot.lane.b32.xlu0 %v2418, 127
        %v2424 = vpop.permute.xlu0 %2423
        %2425 = vrot.lane.b32.xlu0 %v2422, 127
        %v2426 = vpop.permute.xlu0 %2425
        %2427 = vrot.lane.b32.xlu0 %v2419, 127
        %v2428 = vpop.permute.xlu0 %2427
        %v2429 = vsel %vm575, %v2424, %v2426
        %v2430 = vsel %vm575, %v2426, %v2428
        %v2433 = vsel %vm467, %v2429, 0.0
        %v2434 = vsel %vm468, %v2430, 0.0
        %v2437 = vrot.slane %v2433, 4
        %v2438 = vrot.slane %v2434, 4
        %2441 = vst [vmem:[#allocation3 + $0x20] sm:$0xf0] %v2437
        %2442 = vst [vmem:[#allocation3 + $0x28] sm:$0xf0] %v2438
        %v2443 = vld [vmem:[#allocation2 + $0x4] sm:$0xff]
        %v2444 = vld [vmem:[#allocation2 + $0xc] sm:$0xf]
        %v2447 = vcombine.high %v2443, %v2443
        %2448 = vrot.lane.b32.xlu0 %v2443, 113
        %v2449 = vpop.permute.xlu0 %2448
        %2450 = vrot.lane.b32.xlu0 %v2447, 113
        %v2451 = vpop.permute.xlu0 %2450
        %2452 = vrot.lane.b32.xlu0 %v2444, 113
        %v2453 = vpop.permute.xlu0 %2452
        %v2454 = vsel %vm601, %v2449, %v2451
        %v2455 = vsel %vm601, %v2451, %v2453
        %v2458 = vsel %vm465, %v2454, 0.0
        %v2459 = vsel %vm466, %v2455, 0.0
        %2460 = vst [vmem:[#allocation3 + $0x30] sm:$0xf] %v2458
        %2461 = vst [vmem:[#allocation3 + $0x38] sm:$0xf] %v2459
        %v2462 = vld [vmem:[#allocation2 + $0x4] sm:$0xff]
        %v2463 = vld [vmem:[#allocation2 + $0xc] sm:$0xf]
        %v2466 = vcombine.low %v2462, %v2462
        %v2467 = vcombine.low %v2463, %v2463
        %2468 = vrot.lane.b32.xlu0 %v2466, 112
        %v2469 = vpop.permute.xlu0 %2468
        %2470 = vrot.lane.b32.xlu0 %v2462, 112
        %v2471 = vpop.permute.xlu0 %2470
        %2472 = vrot.lane.b32.xlu0 %v2467, 112
        %v2473 = vpop.permute.xlu0 %2472
        %v2474 = vsel %vm622, %v2469, %v2471
        %v2475 = vsel %vm622, %v2471, %v2473
        %2478 = vst [vmem:[#allocation3 + $0x30] sm:$0xf0] %v2474
        %2479 = vst [vmem:[#allocation3 + $0x38] sm:$0xf0] %v2475
        %v2480 = vld [vmem:[#allocation2 + $0x4] sm:$0xff]
        %v2481 = vld [vmem:[#allocation2 + $0xc] sm:$0xf]
        %v2484 = vcombine.high %v2480, %v2480
        %2485 = vrot.lane.b32.xlu0 %v2480, 111
        %v2486 = vpop.permute.xlu0 %2485
        %2487 = vrot.lane.b32.xlu0 %v2484, 111
        %v2488 = vpop.permute.xlu0 %2487
        %2489 = vrot.lane.b32.xlu0 %v2481, 111
        %v2490 = vpop.permute.xlu0 %2489
        %v2491 = vsel %vm640, %v2486, %v2488
        %v2492 = vsel %vm640, %v2488, %v2490
        %v2495 = vsel %vm467, %v2491, 0.0
        %v2496 = vsel %vm468, %v2492, 0.0
        %2497 = vst [vmem:[#allocation3 + $0x40] sm:$0xf] %v2495
        %2498 = vst [vmem:[#allocation3 + $0x48] sm:$0xf] %v2496
        %v2499 = vld [vmem:[#allocation3] sm:$0xff]
        %v2500 = vld [vmem:[#allocation3 + $0x8] sm:$0xff]
        %v2501 = vld [vmem:[#allocation3 + $0x10] sm:$0xff]
        %v2502 = vld [vmem:[#allocation3 + $0x18] sm:$0xff]
        %v2503 = vld [vmem:[#allocation3 + $0x20] sm:$0xff]
        %v2504 = vld [vmem:[#allocation3 + $0x28] sm:$0xff]
        %v2505 = vld [vmem:[#allocation3 + $0x30] sm:$0xff]
        %v2506 = vld [vmem:[#allocation3 + $0x38] sm:$0xff]
        %v2507 = vld [vmem:[#allocation3 + $0x40] sm:$0xf]
        %v2508 = vld [vmem:[#allocation3 + $0x48] sm:$0xf]
        %v2510 = vsel %vm668, %v2507, 0
        %v2513 = vsel %vm668, %v2508, 0
        %2515 = vmatprep.subr.mxu0 %v2500
        %2516 = vmatpush1.msra.mxu0 %v2499
        %2517 = vmatprep.subr.mxu0 %v2502
        %2518 = vmatpush1.msra.mxu0 %v2501
        %2519 = vmatprep.subr.mxu0 %v2504
        %2520 = vmatpush1.msra.mxu0 %v2503
        %2521 = vmatprep.subr.mxu0 %v2506
        %2522 = vmatpush1.msra.mxu0 %v2505
        %2523 = vmatprep.subr.mxu0 %v2513
        %2524 = vmatpush1.msra.mxu0 %v2510
        %2525 = vmatprep.subr.mxu0 0.0
        %2526 = vmatpush1.msra.mxu0 0.0
        %2527 = vmatprep.subr.mxu0 0.0
        %2528 = vmatpush1.msra.mxu0 0.0
        %2529 = vmatprep.subr.mxu0 0.0
        %2530 = vmatpush1.msra.mxu0 0.0
        %2531 = vmatprep.subr.mxu0 0.0
        %2532 = vmatpush1.msra.mxu0 0.0
        %2533 = vmatprep.subr.mxu0 0.0
        %2534 = vmatpush1.msra.mxu0 0.0
        %2535 = vmatprep.subr.mxu0 0.0
        %2536 = vmatpush1.msra.mxu0 0.0
        %2537 = vmatprep.subr.mxu0 0.0
        %2538 = vmatpush1.msra.mxu0 0.0
        %2539 = vmatprep.subr.mxu0 0.0
        %2540 = vmatpush1.msra.mxu0 0.0
        %2541 = vmatprep.subr.mxu0 0.0
        %2542 = vmatpush1.msra.mxu0 0.0
        %2543 = vmatprep.subr.mxu0 0.0
        %2544 = vmatpush1.msra.mxu0 0.0
        %2545 = vmatprep.subr.mxu0 0.0
        %2546 = vmatpush1.msra.mxu0 0.0
        %2547 = vmatprep.subr.mxu0 0.0
        %2548 = vmatpush1.msra.mxu0 0.0
        %2549 = vmatprep.subr.mxu0 0.0
        %2550 = vmatpush1.msra.mxu0 0.0
        %2551 = vmatprep.subr.mxu0 0.0
        %2552 = vmatpush1.msra.mxu0 0.0
        %2553 = vmatprep.subr.mxu0 0.0
        %2554 = vmatpush1.msra.mxu0 0.0
        %2555 = vmatprep.subr.mxu0 0.0
        %2556 = vmatpush1.msra.mxu0 0.0
        %2557 = vmatprep.subr.mxu0 0.0
        %2558 = vmatpush1.msra.mxu0 0.0
        %2559 = vmatprep.subr.mxu0 0.0
        %2560 = vmatpush1.msra.mxu0 0.0
        %2561 = vmatprep.subr.mxu0 0.0
        %2562 = vmatpush1.msra.mxu0 0.0
        %2563 = vmatprep.subr.mxu0 0.0
        %2564 = vmatpush1.msra.mxu0 0.0
        %2565 = vmatprep.subr.mxu0 0.0
        %2566 = vmatpush1.msra.mxu0 0.0
        %2567 = vmatprep.subr.mxu0 0.0
        %2568 = vmatpush1.msra.mxu0 0.0
        %2569 = vmatprep.subr.mxu0 0.0
        %2570 = vmatpush1.msra.mxu0 0.0
        %2571 = vmatprep.subr.mxu0 0.0
        %2572 = vmatpush1.msra.mxu0 0.0
        %2573 = vmatprep.subr.mxu0 0.0
        %2574 = vmatpush1.msra.mxu0 0.0
        %2575 = vmatprep.subr.mxu0 0.0
        %2576 = vmatpush1.msra.mxu0 0.0
        %2577 = vmatprep.subr.mxu0 0.0
        %2578 = vmatpush1.msra.mxu0 0.0
        %2579 = vmatprep.mubr.f32.mxu0 0.0
        %2580 = vmatmul.mubr.f32.gmra.mrb[0].mxu0 %v666
        %v2581 = vpop.f32.mrb[0].mxu0
        %v2582 = vadd.f32 %v662, %v2581
        %v2583 = vpop.f32.mrb[0].mxu0
        %v2584 = vadd.f32 %v662, %v2583
        %2585 = vdwg.mxu0
        %v2586 = vmax.f32 %v2582, 0.0
        %v2587 = vmax.f32 %v2584, 0.0
        %s2588 = scalar_lea.vmem %s330, 112
        %2589 = vst [vmem:[%s2588] sm:$0xff] %v2586
        %2590 = vst [vmem:[%s2588 + $0x8] sm:$0xff] %v2587
        %v2591 = vld [vmem:[%s330] ss:$8 sm:$0x3]
        %s2592 = scalar_lea.vmem %s330, 16
        %v2593 = vld [vmem:[%s2592] ss:$8 sm:$0x3]
        %s2594 = scalar_lea.vmem %s330, 32
        %v2595 = vld [vmem:[%s2594] ss:$8 sm:$0x3]
        %s2596 = scalar_lea.vmem %s330, 48
        %v2597 = vld [vmem:[%s2596] ss:$8 sm:$0x3]
        %s2598 = scalar_lea.vmem %s330, 64
        %v2599 = vld [vmem:[%s2598] ss:$8 sm:$0x3]
        %s2600 = scalar_lea.vmem %s330, 80
        %v2601 = vld [vmem:[%s2600] ss:$8 sm:$0x3]
        %s2602 = scalar_lea.vmem %s330, 96
        %v2603 = vld [vmem:[%s2602] ss:$8 sm:$0x3]
        %s2604 = scalar_lea.vmem %s330, 112
        %v2605 = vld [vmem:[%s2604] ss:$8 sm:$0x3]
        %v2614 = vcombine.low %v2591, %v2593
        %v2615 = vcombine.low %v2595, %v2597
        %v2616 = vcombine.low %v2599, %v2601
        %v2617 = vcombine.low %v2603, %v2605
        %v2619 = vunpack.c.l.s4 1966171168
        %v2620 = vunpack.c.0.s8 %v2619
        %v2621 = vlaneseq
        %v2622 = vshrl.u32 %v2621, 7
        %v2623 = vsub.s32 %v2620, %v2622
        %v2624 = vrot.slane %v2614, %v2623
        %v2626 = vunpack.c.l.s4 1966171168
        %v2627 = vunpack.c.0.s8 %v2626
        %v2628 = vlaneseq
        %v2629 = vshrl.u32 %v2628, 7
        %v2630 = vsub.s32 %v2627, %v2629
        %v2631 = vrot.slane %v2615, %v2630
        %v2633 = vunpack.c.l.s4 1966171168
        %v2634 = vunpack.c.0.s8 %v2633
        %v2635 = vlaneseq
        %v2636 = vshrl.u32 %v2635, 7
        %v2637 = vsub.s32 %v2634, %v2636
        %v2638 = vrot.slane %v2616, %v2637
        %v2640 = vunpack.c.l.s4 1966171168
        %v2641 = vunpack.c.0.s8 %v2640
        %v2642 = vlaneseq
        %v2643 = vshrl.u32 %v2642, 7
        %v2644 = vsub.s32 %v2641, %v2643
        %v2645 = vrot.slane %v2617, %v2644
        %v2646 = vcombine.low %v2624, %v2631
        %v2647 = vcombine.high %v2624, %v2631
        %v2648 = vcombine.low %v2638, %v2645
        %v2649 = vcombine.high %v2638, %v2645
        %v2651 = vunpack.c.l.s4 1966171168
        %v2652 = vunpack.c.0.s8 %v2651
        %v2653 = vlaneseq
        %v2654 = vshrl.u32 %v2653, 7
        %v2655 = vsub.s32 %v2652, %v2654
        %v2656 = vrot.slane %v2646, %v2655
        %v2658 = vunpack.c.l.s4 1966171168
        %v2659 = vunpack.c.0.s8 %v2658
        %v2660 = vlaneseq
        %v2661 = vshrl.u32 %v2660, 7
        %v2662 = vsub.s32 %v2659, %v2661
        %v2663 = vrot.slane %v2647, %v2662
        %v2665 = vunpack.c.l.s4 1966171168
        %v2666 = vunpack.c.0.s8 %v2665
        %v2667 = vlaneseq
        %v2668 = vshrl.u32 %v2667, 7
        %v2669 = vsub.s32 %v2666, %v2668
        %v2670 = vrot.slane %v2648, %v2669
        %v2672 = vunpack.c.l.s4 1966171168
        %v2673 = vunpack.c.0.s8 %v2672
        %v2674 = vlaneseq
        %v2675 = vshrl.u32 %v2674, 7
        %v2676 = vsub.s32 %v2673, %v2675
        %v2677 = vrot.slane %v2649, %v2676
        %v2678 = vcombine.low %v2656, %v2670
        %v2679 = vcombine.low %v2663, %v2677
        %2682 = vmatprep.subr.mxu0 0.0
        %2683 = vmatpush1.msra.mxu0 %v341
        %2684 = vmatprep.subr.mxu0 0.0
        %2685 = vmatpush1.msra.mxu0 %v342
        %2686 = vmatprep.subr.mxu0 0.0
        %2687 = vmatpush1.msra.mxu0 %v343
        %2688 = vmatprep.subr.mxu0 0.0
        %2689 = vmatpush1.msra.mxu0 %v344
        %2690 = vmatprep.subr.mxu0 0.0
        %2691 = vmatpush1.msra.mxu0 %v345
        %2692 = vmatprep.subr.mxu0 0.0
        %2693 = vmatpush1.msra.mxu0 %v346
        %2694 = vmatprep.subr.mxu0 0.0
        %2695 = vmatpush1.msra.mxu0 %v347
        %2696 = vmatprep.subr.mxu0 0.0
        %2697 = vmatpush1.msra.mxu0 %v348
        %2698 = vmatprep.subr.mxu0 0.0
        %2699 = vmatpush1.msra.mxu0 %v349
        %2700 = vmatprep.subr.mxu0 0.0
        %2701 = vmatpush1.msra.mxu0 %v350
        %2702 = vmatprep.subr.mxu0 0.0
        %2703 = vmatpush1.msra.mxu0 %v351
        %2704 = vmatprep.subr.mxu0 0.0
        %2705 = vmatpush1.msra.mxu0 %v352
        %2706 = vmatprep.subr.mxu0 0.0
        %2707 = vmatpush1.msra.mxu0 %v353
        %2708 = vmatprep.subr.mxu0 0.0
        %2709 = vmatpush1.msra.mxu0 %v354
        %2710 = vmatprep.subr.mxu0 0.0
        %2711 = vmatpush1.msra.mxu0 %v355
        %2712 = vmatprep.subr.mxu0 0.0
        %2713 = vmatpush1.msra.mxu0 %v356
        %2714 = vmatprep.subr.mxu0 0.0
        %2715 = vmatpush1.msra.mxu0 %v357
        %2716 = vmatprep.subr.mxu0 0.0
        %2717 = vmatpush1.msra.mxu0 %v358
        %2718 = vmatprep.subr.mxu0 0.0
        %2719 = vmatpush1.msra.mxu0 %v359
        %2720 = vmatprep.subr.mxu0 0.0
        %2721 = vmatpush1.msra.mxu0 %v360
        %2722 = vmatprep.subr.mxu0 0.0
        %2723 = vmatpush1.msra.mxu0 %v361
        %2724 = vmatprep.subr.mxu0 0.0
        %2725 = vmatpush1.msra.mxu0 %v362
        %2726 = vmatprep.subr.mxu0 0.0
        %2727 = vmatpush1.msra.mxu0 %v363
        %2728 = vmatprep.subr.mxu0 0.0
        %2729 = vmatpush1.msra.mxu0 %v364
        %2730 = vmatprep.subr.mxu0 0.0
        %2731 = vmatpush1.msra.mxu0 %v365
        %2732 = vmatprep.subr.mxu0 0.0
        %2733 = vmatpush1.msra.mxu0 %v366
        %2734 = vmatprep.subr.mxu0 0.0
        %2735 = vmatpush1.msra.mxu0 %v367
        %2736 = vmatprep.subr.mxu0 0.0
        %2737 = vmatpush1.msra.mxu0 %v368
        %2738 = vmatprep.subr.mxu0 0.0
        %2739 = vmatpush1.msra.mxu0 %v369
        %2740 = vmatprep.subr.mxu0 0.0
        %2741 = vmatpush1.msra.mxu0 %v370
        %2742 = vmatprep.subr.mxu0 0.0
        %2743 = vmatpush1.msra.mxu0 %v371
        %2744 = vmatprep.subr.mxu0 0.0
        %2745 = vmatpush1.msra.mxu0 %v372
        %2746 = vmatprep.mubr.f32.mxu0 %v2679
        %2747 = vmatmul.mubr.f32.gmra.mrb[0].mxu0 %v2678
        %v2748 = vpop.f32.mrb[0].mxu0
        %v2749 = vadd.f32 0.0, %v2748
        %v2750 = vpop.f32.mrb[0].mxu0
        %2751 = vdwg.mxu0
        %s2752 = scalar_lea.vmem %s330, 1
        %v2753 = vld [vmem:[%s2752] ss:$8 sm:$0x3]
        %s2754 = scalar_lea.vmem %s330, 17
        %v2755 = vld [vmem:[%s2754] ss:$8 sm:$0x3]
        %s2756 = scalar_lea.vmem %s330, 33
        %v2757 = vld [vmem:[%s2756] ss:$8 sm:$0x3]
        %s2758 = scalar_lea.vmem %s330, 49
        %v2759 = vld [vmem:[%s2758] ss:$8 sm:$0x3]
        %s2760 = scalar_lea.vmem %s330, 65
        %v2761 = vld [vmem:[%s2760] ss:$8 sm:$0x3]
        %s2762 = scalar_lea.vmem %s330, 81
        %v2763 = vld [vmem:[%s2762] ss:$8 sm:$0x3]
        %s2764 = scalar_lea.vmem %s330, 97
        %v2765 = vld [vmem:[%s2764] ss:$8 sm:$0x3]
        %s2766 = scalar_lea.vmem %s330, 113
        %v2767 = vld [vmem:[%s2766] ss:$8 sm:$0x3]
        %v2776 = vcombine.low %v2753, %v2755
        %v2777 = vcombine.low %v2757, %v2759
        %v2778 = vcombine.low %v2761, %v2763
        %v2779 = vcombine.low %v2765, %v2767
        %v2781 = vunpack.c.l.s4 1966171168
        %v2782 = vunpack.c.0.s8 %v2781
        %v2783 = vlaneseq
        %v2784 = vshrl.u32 %v2783, 7
        %v2785 = vsub.s32 %v2782, %v2784
        %v2786 = vrot.slane %v2776, %v2785
        %v2788 = vunpack.c.l.s4 1966171168
        %v2789 = vunpack.c.0.s8 %v2788
        %v2790 = vlaneseq
        %v2791 = vshrl.u32 %v2790, 7
        %v2792 = vsub.s32 %v2789, %v2791
        %v2793 = vrot.slane %v2777, %v2792
        %v2795 = vunpack.c.l.s4 1966171168
        %v2796 = vunpack.c.0.s8 %v2795
        %v2797 = vlaneseq
        %v2798 = vshrl.u32 %v2797, 7
        %v2799 = vsub.s32 %v2796, %v2798
        %v2800 = vrot.slane %v2778, %v2799
        %v2802 = vunpack.c.l.s4 1966171168
        %v2803 = vunpack.c.0.s8 %v2802
        %v2804 = vlaneseq
        %v2805 = vshrl.u32 %v2804, 7
        %v2806 = vsub.s32 %v2803, %v2805
        %v2807 = vrot.slane %v2779, %v2806
        %v2808 = vcombine.low %v2786, %v2793
        %v2809 = vcombine.high %v2786, %v2793
        %v2810 = vcombine.low %v2800, %v2807
        %v2811 = vcombine.high %v2800, %v2807
        %v2813 = vunpack.c.l.s4 1966171168
        %v2814 = vunpack.c.0.s8 %v2813
        %v2815 = vlaneseq
        %v2816 = vshrl.u32 %v2815, 7
        %v2817 = vsub.s32 %v2814, %v2816
        %v2818 = vrot.slane %v2808, %v2817
        %v2820 = vunpack.c.l.s4 1966171168
        %v2821 = vunpack.c.0.s8 %v2820
        %v2822 = vlaneseq
        %v2823 = vshrl.u32 %v2822, 7
        %v2824 = vsub.s32 %v2821, %v2823
        %v2825 = vrot.slane %v2809, %v2824
        %v2827 = vunpack.c.l.s4 1966171168
        %v2828 = vunpack.c.0.s8 %v2827
        %v2829 = vlaneseq
        %v2830 = vshrl.u32 %v2829, 7
        %v2831 = vsub.s32 %v2828, %v2830
        %v2832 = vrot.slane %v2810, %v2831
        %v2834 = vunpack.c.l.s4 1966171168
        %v2835 = vunpack.c.0.s8 %v2834
        %v2836 = vlaneseq
        %v2837 = vshrl.u32 %v2836, 7
        %v2838 = vsub.s32 %v2835, %v2837
        %v2839 = vrot.slane %v2811, %v2838
        %v2840 = vcombine.low %v2818, %v2832
        %v2841 = vcombine.low %v2825, %v2839
        %2844 = vmatprep.subr.mxu0 0.0
        %2845 = vmatpush1.msra.mxu0 %v341
        %2846 = vmatprep.subr.mxu0 0.0
        %2847 = vmatpush1.msra.mxu0 %v342
        %2848 = vmatprep.subr.mxu0 0.0
        %2849 = vmatpush1.msra.mxu0 %v343
        %2850 = vmatprep.subr.mxu0 0.0
        %2851 = vmatpush1.msra.mxu0 %v344
        %2852 = vmatprep.subr.mxu0 0.0
        %2853 = vmatpush1.msra.mxu0 %v345
        %2854 = vmatprep.subr.mxu0 0.0
        %2855 = vmatpush1.msra.mxu0 %v346
        %2856 = vmatprep.subr.mxu0 0.0
        %2857 = vmatpush1.msra.mxu0 %v347
        %2858 = vmatprep.subr.mxu0 0.0
        %2859 = vmatpush1.msra.mxu0 %v348
        %2860 = vmatprep.subr.mxu0 0.0
        %2861 = vmatpush1.msra.mxu0 %v349
        %2862 = vmatprep.subr.mxu0 0.0
        %2863 = vmatpush1.msra.mxu0 %v350
        %2864 = vmatprep.subr.mxu0 0.0
        %2865 = vmatpush1.msra.mxu0 %v351
        %2866 = vmatprep.subr.mxu0 0.0
        %2867 = vmatpush1.msra.mxu0 %v352
        %2868 = vmatprep.subr.mxu0 0.0
        %2869 = vmatpush1.msra.mxu0 %v353
        %2870 = vmatprep.subr.mxu0 0.0
        %2871 = vmatpush1.msra.mxu0 %v354
        %2872 = vmatprep.subr.mxu0 0.0
        %2873 = vmatpush1.msra.mxu0 %v355
        %2874 = vmatprep.subr.mxu0 0.0
        %2875 = vmatpush1.msra.mxu0 %v356
        %2876 = vmatprep.subr.mxu0 0.0
        %2877 = vmatpush1.msra.mxu0 %v357
        %2878 = vmatprep.subr.mxu0 0.0
        %2879 = vmatpush1.msra.mxu0 %v358
        %2880 = vmatprep.subr.mxu0 0.0
        %2881 = vmatpush1.msra.mxu0 %v359
        %2882 = vmatprep.subr.mxu0 0.0
        %2883 = vmatpush1.msra.mxu0 %v360
        %2884 = vmatprep.subr.mxu0 0.0
        %2885 = vmatpush1.msra.mxu0 %v361
        %2886 = vmatprep.subr.mxu0 0.0
        %2887 = vmatpush1.msra.mxu0 %v362
        %2888 = vmatprep.subr.mxu0 0.0
        %2889 = vmatpush1.msra.mxu0 %v363
        %2890 = vmatprep.subr.mxu0 0.0
        %2891 = vmatpush1.msra.mxu0 %v364
        %2892 = vmatprep.subr.mxu0 0.0
        %2893 = vmatpush1.msra.mxu0 %v365
        %2894 = vmatprep.subr.mxu0 0.0
        %2895 = vmatpush1.msra.mxu0 %v366
        %2896 = vmatprep.subr.mxu0 0.0
        %2897 = vmatpush1.msra.mxu0 %v367
        %2898 = vmatprep.subr.mxu0 0.0
        %2899 = vmatpush1.msra.mxu0 %v368
        %2900 = vmatprep.subr.mxu0 0.0
        %2901 = vmatpush1.msra.mxu0 %v369
        %2902 = vmatprep.subr.mxu0 0.0
        %2903 = vmatpush1.msra.mxu0 %v370
        %2904 = vmatprep.subr.mxu0 0.0
        %2905 = vmatpush1.msra.mxu0 %v371
        %2906 = vmatprep.subr.mxu0 0.0
        %2907 = vmatpush1.msra.mxu0 %v372
        %2908 = vmatprep.mubr.f32.mxu0 %v2841
        %2909 = vmatmul.mubr.f32.gmra.mrb[0].mxu0 %v2840
        %v2910 = vpop.f32.mrb[0].mxu0
        %v2911 = vadd.f32 0.0, %v2910
        %v2912 = vpop.f32.mrb[0].mxu0
        %2913 = vdwg.mxu0
        %s2914 = scalar_lea.vmem %s330, 2
        %v2915 = vld [vmem:[%s2914] ss:$8 sm:$0x3]
        %s2916 = scalar_lea.vmem %s330, 18
        %v2917 = vld [vmem:[%s2916] ss:$8 sm:$0x3]
        %s2918 = scalar_lea.vmem %s330, 34
        %v2919 = vld [vmem:[%s2918] ss:$8 sm:$0x3]
        %s2920 = scalar_lea.vmem %s330, 50
        %v2921 = vld [vmem:[%s2920] ss:$8 sm:$0x3]
        %s2922 = scalar_lea.vmem %s330, 66
        %v2923 = vld [vmem:[%s2922] ss:$8 sm:$0x3]
        %s2924 = scalar_lea.vmem %s330, 82
        %v2925 = vld [vmem:[%s2924] ss:$8 sm:$0x3]
        %s2926 = scalar_lea.vmem %s330, 98
        %v2927 = vld [vmem:[%s2926] ss:$8 sm:$0x3]
        %s2928 = scalar_lea.vmem %s330, 114
        %v2929 = vld [vmem:[%s2928] ss:$8 sm:$0x3]
        %v2938 = vcombine.low %v2915, %v2917
        %v2939 = vcombine.low %v2919, %v2921
        %v2940 = vcombine.low %v2923, %v2925
        %v2941 = vcombine.low %v2927, %v2929
        %v2943 = vunpack.c.l.s4 1966171168
        %v2944 = vunpack.c.0.s8 %v2943
        %v2945 = vlaneseq
        %v2946 = vshrl.u32 %v2945, 7
        %v2947 = vsub.s32 %v2944, %v2946
        %v2948 = vrot.slane %v2938, %v2947
        %v2950 = vunpack.c.l.s4 1966171168
        %v2951 = vunpack.c.0.s8 %v2950
        %v2952 = vlaneseq
        %v2953 = vshrl.u32 %v2952, 7
        %v2954 = vsub.s32 %v2951, %v2953
        %v2955 = vrot.slane %v2939, %v2954
        %v2957 = vunpack.c.l.s4 1966171168
        %v2958 = vunpack.c.0.s8 %v2957
        %v2959 = vlaneseq
        %v2960 = vshrl.u32 %v2959, 7
        %v2961 = vsub.s32 %v2958, %v2960
        %v2962 = vrot.slane %v2940, %v2961
        %v2964 = vunpack.c.l.s4 1966171168
        %v2965 = vunpack.c.0.s8 %v2964
        %v2966 = vlaneseq
        %v2967 = vshrl.u32 %v2966, 7
        %v2968 = vsub.s32 %v2965, %v2967
        %v2969 = vrot.slane %v2941, %v2968
        %v2970 = vcombine.low %v2948, %v2955
        %v2971 = vcombine.high %v2948, %v2955
        %v2972 = vcombine.low %v2962, %v2969
        %v2973 = vcombine.high %v2962, %v2969
        %v2975 = vunpack.c.l.s4 1966171168
        %v2976 = vunpack.c.0.s8 %v2975
        %v2977 = vlaneseq
        %v2978 = vshrl.u32 %v2977, 7
        %v2979 = vsub.s32 %v2976, %v2978
        %v2980 = vrot.slane %v2970, %v2979
        %v2982 = vunpack.c.l.s4 1966171168
        %v2983 = vunpack.c.0.s8 %v2982
        %v2984 = vlaneseq
        %v2985 = vshrl.u32 %v2984, 7
        %v2986 = vsub.s32 %v2983, %v2985
        %v2987 = vrot.slane %v2971, %v2986
        %v2989 = vunpack.c.l.s4 1966171168
        %v2990 = vunpack.c.0.s8 %v2989
        %v2991 = vlaneseq
        %v2992 = vshrl.u32 %v2991, 7
        %v2993 = vsub.s32 %v2990, %v2992
        %v2994 = vrot.slane %v2972, %v2993
        %v2996 = vunpack.c.l.s4 1966171168
        %v2997 = vunpack.c.0.s8 %v2996
        %v2998 = vlaneseq
        %v2999 = vshrl.u32 %v2998, 7
        %v3000 = vsub.s32 %v2997, %v2999
        %v3001 = vrot.slane %v2973, %v3000
        %v3002 = vcombine.low %v2980, %v2994
        %v3003 = vcombine.low %v2987, %v3001
        %3006 = vmatprep.subr.mxu0 0.0
        %3007 = vmatpush1.msra.mxu0 %v341
        %3008 = vmatprep.subr.mxu0 0.0
        %3009 = vmatpush1.msra.mxu0 %v342
        %3010 = vmatprep.subr.mxu0 0.0
        %3011 = vmatpush1.msra.mxu0 %v343
        %3012 = vmatprep.subr.mxu0 0.0
        %3013 = vmatpush1.msra.mxu0 %v344
        %3014 = vmatprep.subr.mxu0 0.0
        %3015 = vmatpush1.msra.mxu0 %v345
        %3016 = vmatprep.subr.mxu0 0.0
        %3017 = vmatpush1.msra.mxu0 %v346
        %3018 = vmatprep.subr.mxu0 0.0
        %3019 = vmatpush1.msra.mxu0 %v347
        %3020 = vmatprep.subr.mxu0 0.0
        %3021 = vmatpush1.msra.mxu0 %v348
        %3022 = vmatprep.subr.mxu0 0.0
        %3023 = vmatpush1.msra.mxu0 %v349
        %3024 = vmatprep.subr.mxu0 0.0
        %3025 = vmatpush1.msra.mxu0 %v350
        %3026 = vmatprep.subr.mxu0 0.0
        %3027 = vmatpush1.msra.mxu0 %v351
        %3028 = vmatprep.subr.mxu0 0.0
        %3029 = vmatpush1.msra.mxu0 %v352
        %3030 = vmatprep.subr.mxu0 0.0
        %3031 = vmatpush1.msra.mxu0 %v353
        %3032 = vmatprep.subr.mxu0 0.0
        %3033 = vmatpush1.msra.mxu0 %v354
        %3034 = vmatprep.subr.mxu0 0.0
        %3035 = vmatpush1.msra.mxu0 %v355
        %3036 = vmatprep.subr.mxu0 0.0
        %3037 = vmatpush1.msra.mxu0 %v356
        %3038 = vmatprep.subr.mxu0 0.0
        %3039 = vmatpush1.msra.mxu0 %v357
        %3040 = vmatprep.subr.mxu0 0.0
        %3041 = vmatpush1.msra.mxu0 %v358
        %3042 = vmatprep.subr.mxu0 0.0
        %3043 = vmatpush1.msra.mxu0 %v359
        %3044 = vmatprep.subr.mxu0 0.0
        %3045 = vmatpush1.msra.mxu0 %v360
        %3046 = vmatprep.subr.mxu0 0.0
        %3047 = vmatpush1.msra.mxu0 %v361
        %3048 = vmatprep.subr.mxu0 0.0
        %3049 = vmatpush1.msra.mxu0 %v362
        %3050 = vmatprep.subr.mxu0 0.0
        %3051 = vmatpush1.msra.mxu0 %v363
        %3052 = vmatprep.subr.mxu0 0.0
        %3053 = vmatpush1.msra.mxu0 %v364
        %3054 = vmatprep.subr.mxu0 0.0
        %3055 = vmatpush1.msra.mxu0 %v365
        %3056 = vmatprep.subr.mxu0 0.0
        %3057 = vmatpush1.msra.mxu0 %v366
        %3058 = vmatprep.subr.mxu0 0.0
        %3059 = vmatpush1.msra.mxu0 %v367
        %3060 = vmatprep.subr.mxu0 0.0
        %3061 = vmatpush1.msra.mxu0 %v368
        %3062 = vmatprep.subr.mxu0 0.0
        %3063 = vmatpush1.msra.mxu0 %v369
        %3064 = vmatprep.subr.mxu0 0.0
        %3065 = vmatpush1.msra.mxu0 %v370
        %3066 = vmatprep.subr.mxu0 0.0
        %3067 = vmatpush1.msra.mxu0 %v371
        %3068 = vmatprep.subr.mxu0 0.0
        %3069 = vmatpush1.msra.mxu0 %v372
        %3070 = vmatprep.mubr.f32.mxu0 %v3003
        %3071 = vmatmul.mubr.f32.gmra.mrb[0].mxu0 %v3002
        %v3072 = vpop.f32.mrb[0].mxu0
        %v3073 = vadd.f32 0.0, %v3072
        %v3074 = vpop.f32.mrb[0].mxu0
        %3075 = vdwg.mxu0
        %s3076 = scalar_lea.vmem %s330, 3
        %v3077 = vld [vmem:[%s3076] ss:$8 sm:$0x3]
        %s3078 = scalar_lea.vmem %s330, 19
        %v3079 = vld [vmem:[%s3078] ss:$8 sm:$0x3]
        %s3080 = scalar_lea.vmem %s330, 35
        %v3081 = vld [vmem:[%s3080] ss:$8 sm:$0x3]
        %s3082 = scalar_lea.vmem %s330, 51
        %v3083 = vld [vmem:[%s3082] ss:$8 sm:$0x3]
        %s3084 = scalar_lea.vmem %s330, 67
        %v3085 = vld [vmem:[%s3084] ss:$8 sm:$0x3]
        %s3086 = scalar_lea.vmem %s330, 83
        %v3087 = vld [vmem:[%s3086] ss:$8 sm:$0x3]
        %s3088 = scalar_lea.vmem %s330, 99
        %v3089 = vld [vmem:[%s3088] ss:$8 sm:$0x3]
        %s3090 = scalar_lea.vmem %s330, 115
        %v3091 = vld [vmem:[%s3090] ss:$8 sm:$0x3]
        %v3100 = vcombine.low %v3077, %v3079
        %v3101 = vcombine.low %v3081, %v3083
        %v3102 = vcombine.low %v3085, %v3087
        %v3103 = vcombine.low %v3089, %v3091
        %v3105 = vunpack.c.l.s4 1966171168
        %v3106 = vunpack.c.0.s8 %v3105
        %v3107 = vlaneseq
        %v3108 = vshrl.u32 %v3107, 7
        %v3109 = vsub.s32 %v3106, %v3108
        %v3110 = vrot.slane %v3100, %v3109
        %v3112 = vunpack.c.l.s4 1966171168
        %v3113 = vunpack.c.0.s8 %v3112
        %v3114 = vlaneseq
        %v3115 = vshrl.u32 %v3114, 7
        %v3116 = vsub.s32 %v3113, %v3115
        %v3117 = vrot.slane %v3101, %v3116
        %v3119 = vunpack.c.l.s4 1966171168
        %v3120 = vunpack.c.0.s8 %v3119
        %v3121 = vlaneseq
        %v3122 = vshrl.u32 %v3121, 7
        %v3123 = vsub.s32 %v3120, %v3122
        %v3124 = vrot.slane %v3102, %v3123
        %v3126 = vunpack.c.l.s4 1966171168
        %v3127 = vunpack.c.0.s8 %v3126
        %v3128 = vlaneseq
        %v3129 = vshrl.u32 %v3128, 7
        %v3130 = vsub.s32 %v3127, %v3129
        %v3131 = vrot.slane %v3103, %v3130
        %v3132 = vcombine.low %v3110, %v3117
        %v3133 = vcombine.high %v3110, %v3117
        %v3134 = vcombine.low %v3124, %v3131
        %v3135 = vcombine.high %v3124, %v3131
        %v3137 = vunpack.c.l.s4 1966171168
        %v3138 = vunpack.c.0.s8 %v3137
        %v3139 = vlaneseq
        %v3140 = vshrl.u32 %v3139, 7
        %v3141 = vsub.s32 %v3138, %v3140
        %v3142 = vrot.slane %v3132, %v3141
        %v3144 = vunpack.c.l.s4 1966171168
        %v3145 = vunpack.c.0.s8 %v3144
        %v3146 = vlaneseq
        %v3147 = vshrl.u32 %v3146, 7
        %v3148 = vsub.s32 %v3145, %v3147
        %v3149 = vrot.slane %v3133, %v3148
        %v3151 = vunpack.c.l.s4 1966171168
        %v3152 = vunpack.c.0.s8 %v3151
        %v3153 = vlaneseq
        %v3154 = vshrl.u32 %v3153, 7
        %v3155 = vsub.s32 %v3152, %v3154
        %v3156 = vrot.slane %v3134, %v3155
        %v3158 = vunpack.c.l.s4 1966171168
        %v3159 = vunpack.c.0.s8 %v3158
        %v3160 = vlaneseq
        %v3161 = vshrl.u32 %v3160, 7
        %v3162 = vsub.s32 %v3159, %v3161
        %v3163 = vrot.slane %v3135, %v3162
        %v3164 = vcombine.low %v3142, %v3156
        %v3165 = vcombine.low %v3149, %v3163
        %3168 = vmatprep.subr.mxu0 0.0
        %3169 = vmatpush1.msra.mxu0 %v341
        %3170 = vmatprep.subr.mxu0 0.0
        %3171 = vmatpush1.msra.mxu0 %v342
        %3172 = vmatprep.subr.mxu0 0.0
        %3173 = vmatpush1.msra.mxu0 %v343
        %3174 = vmatprep.subr.mxu0 0.0
        %3175 = vmatpush1.msra.mxu0 %v344
        %3176 = vmatprep.subr.mxu0 0.0
        %3177 = vmatpush1.msra.mxu0 %v345
        %3178 = vmatprep.subr.mxu0 0.0
        %3179 = vmatpush1.msra.mxu0 %v346
        %3180 = vmatprep.subr.mxu0 0.0
        %3181 = vmatpush1.msra.mxu0 %v347
        %3182 = vmatprep.subr.mxu0 0.0
        %3183 = vmatpush1.msra.mxu0 %v348
        %3184 = vmatprep.subr.mxu0 0.0
        %3185 = vmatpush1.msra.mxu0 %v349
        %3186 = vmatprep.subr.mxu0 0.0
        %3187 = vmatpush1.msra.mxu0 %v350
        %3188 = vmatprep.subr.mxu0 0.0
        %3189 = vmatpush1.msra.mxu0 %v351
        %3190 = vmatprep.subr.mxu0 0.0
        %3191 = vmatpush1.msra.mxu0 %v352
        %3192 = vmatprep.subr.mxu0 0.0
        %3193 = vmatpush1.msra.mxu0 %v353
        %3194 = vmatprep.subr.mxu0 0.0
        %3195 = vmatpush1.msra.mxu0 %v354
        %3196 = vmatprep.subr.mxu0 0.0
        %3197 = vmatpush1.msra.mxu0 %v355
        %3198 = vmatprep.subr.mxu0 0.0
        %3199 = vmatpush1.msra.mxu0 %v356
        %3200 = vmatprep.subr.mxu0 0.0
        %3201 = vmatpush1.msra.mxu0 %v357
        %3202 = vmatprep.subr.mxu0 0.0
        %3203 = vmatpush1.msra.mxu0 %v358
        %3204 = vmatprep.subr.mxu0 0.0
        %3205 = vmatpush1.msra.mxu0 %v359
        %3206 = vmatprep.subr.mxu0 0.0
        %3207 = vmatpush1.msra.mxu0 %v360
        %3208 = vmatprep.subr.mxu0 0.0
        %3209 = vmatpush1.msra.mxu0 %v361
        %3210 = vmatprep.subr.mxu0 0.0
        %3211 = vmatpush1.msra.mxu0 %v362
        %3212 = vmatprep.subr.mxu0 0.0
        %3213 = vmatpush1.msra.mxu0 %v363
        %3214 = vmatprep.subr.mxu0 0.0
        %3215 = vmatpush1.msra.mxu0 %v364
        %3216 = vmatprep.subr.mxu0 0.0
        %3217 = vmatpush1.msra.mxu0 %v365
        %3218 = vmatprep.subr.mxu0 0.0
        %3219 = vmatpush1.msra.mxu0 %v366
        %3220 = vmatprep.subr.mxu0 0.0
        %3221 = vmatpush1.msra.mxu0 %v367
        %3222 = vmatprep.subr.mxu0 0.0
        %3223 = vmatpush1.msra.mxu0 %v368
        %3224 = vmatprep.subr.mxu0 0.0
        %3225 = vmatpush1.msra.mxu0 %v369
        %3226 = vmatprep.subr.mxu0 0.0
        %3227 = vmatpush1.msra.mxu0 %v370
        %3228 = vmatprep.subr.mxu0 0.0
        %3229 = vmatpush1.msra.mxu0 %v371
        %3230 = vmatprep.subr.mxu0 0.0
        %3231 = vmatpush1.msra.mxu0 %v372
        %3232 = vmatprep.mubr.f32.mxu0 %v3165
        %3233 = vmatmul.mubr.f32.gmra.mrb[0].mxu0 %v3164
        %v3234 = vpop.f32.mrb[0].mxu0
        %v3235 = vadd.f32 0.0, %v3234
        %v3236 = vpop.f32.mrb[0].mxu0
        %3237 = vdwg.mxu0
        %s3238 = scalar_lea.vmem %s330, 4
        %v3239 = vld [vmem:[%s3238] ss:$8 sm:$0x3]
        %s3240 = scalar_lea.vmem %s330, 20
        %v3241 = vld [vmem:[%s3240] ss:$8 sm:$0x3]
        %s3242 = scalar_lea.vmem %s330, 36
        %v3243 = vld [vmem:[%s3242] ss:$8 sm:$0x3]
        %s3244 = scalar_lea.vmem %s330, 52
        %v3245 = vld [vmem:[%s3244] ss:$8 sm:$0x3]
        %s3246 = scalar_lea.vmem %s330, 68
        %v3247 = vld [vmem:[%s3246] ss:$8 sm:$0x3]
        %s3248 = scalar_lea.vmem %s330, 84
        %v3249 = vld [vmem:[%s3248] ss:$8 sm:$0x3]
        %s3250 = scalar_lea.vmem %s330, 100
        %v3251 = vld [vmem:[%s3250] ss:$8 sm:$0x3]
        %s3252 = scalar_lea.vmem %s330, 116
        %v3253 = vld [vmem:[%s3252] ss:$8 sm:$0x3]
        %v3262 = vcombine.low %v3239, %v3241
        %v3263 = vcombine.low %v3243, %v3245
        %v3264 = vcombine.low %v3247, %v3249
        %v3265 = vcombine.low %v3251, %v3253
        %v3267 = vunpack.c.l.s4 1966171168
        %v3268 = vunpack.c.0.s8 %v3267
        %v3269 = vlaneseq
        %v3270 = vshrl.u32 %v3269, 7
        %v3271 = vsub.s32 %v3268, %v3270
        %v3272 = vrot.slane %v3262, %v3271
        %v3274 = vunpack.c.l.s4 1966171168
        %v3275 = vunpack.c.0.s8 %v3274
        %v3276 = vlaneseq
        %v3277 = vshrl.u32 %v3276, 7
        %v3278 = vsub.s32 %v3275, %v3277
        %v3279 = vrot.slane %v3263, %v3278
        %v3281 = vunpack.c.l.s4 1966171168
        %v3282 = vunpack.c.0.s8 %v3281
        %v3283 = vlaneseq
        %v3284 = vshrl.u32 %v3283, 7
        %v3285 = vsub.s32 %v3282, %v3284
        %v3286 = vrot.slane %v3264, %v3285
        %v3288 = vunpack.c.l.s4 1966171168
        %v3289 = vunpack.c.0.s8 %v3288
        %v3290 = vlaneseq
        %v3291 = vshrl.u32 %v3290, 7
        %v3292 = vsub.s32 %v3289, %v3291
        %v3293 = vrot.slane %v3265, %v3292
        %v3294 = vcombine.low %v3272, %v3279
        %v3295 = vcombine.high %v3272, %v3279
        %v3296 = vcombine.low %v3286, %v3293
        %v3297 = vcombine.high %v3286, %v3293
        %v3299 = vunpack.c.l.s4 1966171168
        %v3300 = vunpack.c.0.s8 %v3299
        %v3301 = vlaneseq
        %v3302 = vshrl.u32 %v3301, 7
        %v3303 = vsub.s32 %v3300, %v3302
        %v3304 = vrot.slane %v3294, %v3303
        %v3306 = vunpack.c.l.s4 1966171168
        %v3307 = vunpack.c.0.s8 %v3306
        %v3308 = vlaneseq
        %v3309 = vshrl.u32 %v3308, 7
        %v3310 = vsub.s32 %v3307, %v3309
        %v3311 = vrot.slane %v3295, %v3310
        %v3313 = vunpack.c.l.s4 1966171168
        %v3314 = vunpack.c.0.s8 %v3313
        %v3315 = vlaneseq
        %v3316 = vshrl.u32 %v3315, 7
        %v3317 = vsub.s32 %v3314, %v3316
        %v3318 = vrot.slane %v3296, %v3317
        %v3320 = vunpack.c.l.s4 1966171168
        %v3321 = vunpack.c.0.s8 %v3320
        %v3322 = vlaneseq
        %v3323 = vshrl.u32 %v3322, 7
        %v3324 = vsub.s32 %v3321, %v3323
        %v3325 = vrot.slane %v3297, %v3324
        %v3326 = vcombine.low %v3304, %v3318
        %v3327 = vcombine.low %v3311, %v3325
        %3330 = vmatprep.subr.mxu0 0.0
        %3331 = vmatpush1.msra.mxu0 %v341
        %3332 = vmatprep.subr.mxu0 0.0
        %3333 = vmatpush1.msra.mxu0 %v342
        %3334 = vmatprep.subr.mxu0 0.0
        %3335 = vmatpush1.msra.mxu0 %v343
        %3336 = vmatprep.subr.mxu0 0.0
        %3337 = vmatpush1.msra.mxu0 %v344
        %3338 = vmatprep.subr.mxu0 0.0
        %3339 = vmatpush1.msra.mxu0 %v345
        %3340 = vmatprep.subr.mxu0 0.0
        %3341 = vmatpush1.msra.mxu0 %v346
        %3342 = vmatprep.subr.mxu0 0.0
        %3343 = vmatpush1.msra.mxu0 %v347
        %3344 = vmatprep.subr.mxu0 0.0
        %3345 = vmatpush1.msra.mxu0 %v348
        %3346 = vmatprep.subr.mxu0 0.0
        %3347 = vmatpush1.msra.mxu0 %v349
        %3348 = vmatprep.subr.mxu0 0.0
        %3349 = vmatpush1.msra.mxu0 %v350
        %3350 = vmatprep.subr.mxu0 0.0
        %3351 = vmatpush1.msra.mxu0 %v351
        %3352 = vmatprep.subr.mxu0 0.0
        %3353 = vmatpush1.msra.mxu0 %v352
        %3354 = vmatprep.subr.mxu0 0.0
        %3355 = vmatpush1.msra.mxu0 %v353
        %3356 = vmatprep.subr.mxu0 0.0
        %3357 = vmatpush1.msra.mxu0 %v354
        %3358 = vmatprep.subr.mxu0 0.0
        %3359 = vmatpush1.msra.mxu0 %v355
        %3360 = vmatprep.subr.mxu0 0.0
        %3361 = vmatpush1.msra.mxu0 %v356
        %3362 = vmatprep.subr.mxu0 0.0
        %3363 = vmatpush1.msra.mxu0 %v357
        %3364 = vmatprep.subr.mxu0 0.0
        %3365 = vmatpush1.msra.mxu0 %v358
        %3366 = vmatprep.subr.mxu0 0.0
        %3367 = vmatpush1.msra.mxu0 %v359
        %3368 = vmatprep.subr.mxu0 0.0
        %3369 = vmatpush1.msra.mxu0 %v360
        %3370 = vmatprep.subr.mxu0 0.0
        %3371 = vmatpush1.msra.mxu0 %v361
        %3372 = vmatprep.subr.mxu0 0.0
        %3373 = vmatpush1.msra.mxu0 %v362
        %3374 = vmatprep.subr.mxu0 0.0
        %3375 = vmatpush1.msra.mxu0 %v363
        %3376 = vmatprep.subr.mxu0 0.0
        %3377 = vmatpush1.msra.mxu0 %v364
        %3378 = vmatprep.subr.mxu0 0.0
        %3379 = vmatpush1.msra.mxu0 %v365
        %3380 = vmatprep.subr.mxu0 0.0
        %3381 = vmatpush1.msra.mxu0 %v366
        %3382 = vmatprep.subr.mxu0 0.0
        %3383 = vmatpush1.msra.mxu0 %v367
        %3384 = vmatprep.subr.mxu0 0.0
        %3385 = vmatpush1.msra.mxu0 %v368
        %3386 = vmatprep.subr.mxu0 0.0
        %3387 = vmatpush1.msra.mxu0 %v369
        %3388 = vmatprep.subr.mxu0 0.0
        %3389 = vmatpush1.msra.mxu0 %v370
        %3390 = vmatprep.subr.mxu0 0.0
        %3391 = vmatpush1.msra.mxu0 %v371
        %3392 = vmatprep.subr.mxu0 0.0
        %3393 = vmatpush1.msra.mxu0 %v372
        %3394 = vmatprep.mubr.f32.mxu0 %v3327
        %3395 = vmatmul.mubr.f32.gmra.mrb[0].mxu0 %v3326
        %v3396 = vpop.f32.mrb[0].mxu0
        %v3397 = vadd.f32 0.0, %v3396
        %v3398 = vpop.f32.mrb[0].mxu0
        %3399 = vdwg.mxu0
        %s3400 = scalar_lea.vmem %s330, 5
        %v3401 = vld [vmem:[%s3400] ss:$8 sm:$0x3]
        %s3402 = scalar_lea.vmem %s330, 21
        %v3403 = vld [vmem:[%s3402] ss:$8 sm:$0x3]
        %s3404 = scalar_lea.vmem %s330, 37
        %v3405 = vld [vmem:[%s3404] ss:$8 sm:$0x3]
        %s3406 = scalar_lea.vmem %s330, 53
        %v3407 = vld [vmem:[%s3406] ss:$8 sm:$0x3]
        %s3408 = scalar_lea.vmem %s330, 69
        %v3409 = vld [vmem:[%s3408] ss:$8 sm:$0x3]
        %s3410 = scalar_lea.vmem %s330, 85
        %v3411 = vld [vmem:[%s3410] ss:$8 sm:$0x3]
        %s3412 = scalar_lea.vmem %s330, 101
        %v3413 = vld [vmem:[%s3412] ss:$8 sm:$0x3]
        %s3414 = scalar_lea.vmem %s330, 117
        %v3415 = vld [vmem:[%s3414] ss:$8 sm:$0x3]
        %v3424 = vcombine.low %v3401, %v3403
        %v3425 = vcombine.low %v3405, %v3407
        %v3426 = vcombine.low %v3409, %v3411
        %v3427 = vcombine.low %v3413, %v3415
        %v3429 = vunpack.c.l.s4 1966171168
        %v3430 = vunpack.c.0.s8 %v3429
        %v3431 = vlaneseq
        %v3432 = vshrl.u32 %v3431, 7
        %v3433 = vsub.s32 %v3430, %v3432
        %v3434 = vrot.slane %v3424, %v3433
        %v3436 = vunpack.c.l.s4 1966171168
        %v3437 = vunpack.c.0.s8 %v3436
        %v3438 = vlaneseq
        %v3439 = vshrl.u32 %v3438, 7
        %v3440 = vsub.s32 %v3437, %v3439
        %v3441 = vrot.slane %v3425, %v3440
        %v3443 = vunpack.c.l.s4 1966171168
        %v3444 = vunpack.c.0.s8 %v3443
        %v3445 = vlaneseq
        %v3446 = vshrl.u32 %v3445, 7
        %v3447 = vsub.s32 %v3444, %v3446
        %v3448 = vrot.slane %v3426, %v3447
        %v3450 = vunpack.c.l.s4 1966171168
        %v3451 = vunpack.c.0.s8 %v3450
        %v3452 = vlaneseq
        %v3453 = vshrl.u32 %v3452, 7
        %v3454 = vsub.s32 %v3451, %v3453
        %v3455 = vrot.slane %v3427, %v3454
        %v3456 = vcombine.low %v3434, %v3441
        %v3457 = vcombine.high %v3434, %v3441
        %v3458 = vcombine.low %v3448, %v3455
        %v3459 = vcombine.high %v3448, %v3455
        %v3461 = vunpack.c.l.s4 1966171168
        %v3462 = vunpack.c.0.s8 %v3461
        %v3463 = vlaneseq
        %v3464 = vshrl.u32 %v3463, 7
        %v3465 = vsub.s32 %v3462, %v3464
        %v3466 = vrot.slane %v3456, %v3465
        %v3468 = vunpack.c.l.s4 1966171168
        %v3469 = vunpack.c.0.s8 %v3468
        %v3470 = vlaneseq
        %v3471 = vshrl.u32 %v3470, 7
        %v3472 = vsub.s32 %v3469, %v3471
        %v3473 = vrot.slane %v3457, %v3472
        %v3475 = vunpack.c.l.s4 1966171168
        %v3476 = vunpack.c.0.s8 %v3475
        %v3477 = vlaneseq
        %v3478 = vshrl.u32 %v3477, 7
        %v3479 = vsub.s32 %v3476, %v3478
        %v3480 = vrot.slane %v3458, %v3479
        %v3482 = vunpack.c.l.s4 1966171168
        %v3483 = vunpack.c.0.s8 %v3482
        %v3484 = vlaneseq
        %v3485 = vshrl.u32 %v3484, 7
        %v3486 = vsub.s32 %v3483, %v3485
        %v3487 = vrot.slane %v3459, %v3486
        %v3488 = vcombine.low %v3466, %v3480
        %v3489 = vcombine.low %v3473, %v3487
        %3492 = vmatprep.subr.mxu0 0.0
        %3493 = vmatpush1.msra.mxu0 %v341
        %3494 = vmatprep.subr.mxu0 0.0
        %3495 = vmatpush1.msra.mxu0 %v342
        %3496 = vmatprep.subr.mxu0 0.0
        %3497 = vmatpush1.msra.mxu0 %v343
        %3498 = vmatprep.subr.mxu0 0.0
        %3499 = vmatpush1.msra.mxu0 %v344
        %3500 = vmatprep.subr.mxu0 0.0
        %3501 = vmatpush1.msra.mxu0 %v345
        %3502 = vmatprep.subr.mxu0 0.0
        %3503 = vmatpush1.msra.mxu0 %v346
        %3504 = vmatprep.subr.mxu0 0.0
        %3505 = vmatpush1.msra.mxu0 %v347
        %3506 = vmatprep.subr.mxu0 0.0
        %3507 = vmatpush1.msra.mxu0 %v348
        %3508 = vmatprep.subr.mxu0 0.0
        %3509 = vmatpush1.msra.mxu0 %v349
        %3510 = vmatprep.subr.mxu0 0.0
        %3511 = vmatpush1.msra.mxu0 %v350
        %3512 = vmatprep.subr.mxu0 0.0
        %3513 = vmatpush1.msra.mxu0 %v351
        %3514 = vmatprep.subr.mxu0 0.0
        %3515 = vmatpush1.msra.mxu0 %v352
        %3516 = vmatprep.subr.mxu0 0.0
        %3517 = vmatpush1.msra.mxu0 %v353
        %3518 = vmatprep.subr.mxu0 0.0
        %3519 = vmatpush1.msra.mxu0 %v354
        %3520 = vmatprep.subr.mxu0 0.0
        %3521 = vmatpush1.msra.mxu0 %v355
        %3522 = vmatprep.subr.mxu0 0.0
        %3523 = vmatpush1.msra.mxu0 %v356
        %3524 = vmatprep.subr.mxu0 0.0
        %3525 = vmatpush1.msra.mxu0 %v357
        %3526 = vmatprep.subr.mxu0 0.0
        %3527 = vmatpush1.msra.mxu0 %v358
        %3528 = vmatprep.subr.mxu0 0.0
        %3529 = vmatpush1.msra.mxu0 %v359
        %3530 = vmatprep.subr.mxu0 0.0
        %3531 = vmatpush1.msra.mxu0 %v360
        %3532 = vmatprep.subr.mxu0 0.0
        %3533 = vmatpush1.msra.mxu0 %v361
        %3534 = vmatprep.subr.mxu0 0.0
        %3535 = vmatpush1.msra.mxu0 %v362
        %3536 = vmatprep.subr.mxu0 0.0
        %3537 = vmatpush1.msra.mxu0 %v363
        %3538 = vmatprep.subr.mxu0 0.0
        %3539 = vmatpush1.msra.mxu0 %v364
        %3540 = vmatprep.subr.mxu0 0.0
        %3541 = vmatpush1.msra.mxu0 %v365
        %3542 = vmatprep.subr.mxu0 0.0
        %3543 = vmatpush1.msra.mxu0 %v366
        %3544 = vmatprep.subr.mxu0 0.0
        %3545 = vmatpush1.msra.mxu0 %v367
        %3546 = vmatprep.subr.mxu0 0.0
        %3547 = vmatpush1.msra.mxu0 %v368
        %3548 = vmatprep.subr.mxu0 0.0
        %3549 = vmatpush1.msra.mxu0 %v369
        %3550 = vmatprep.subr.mxu0 0.0
        %3551 = vmatpush1.msra.mxu0 %v370
        %3552 = vmatprep.subr.mxu0 0.0
        %3553 = vmatpush1.msra.mxu0 %v371
        %3554 = vmatprep.subr.mxu0 0.0
        %3555 = vmatpush1.msra.mxu0 %v372
        %3556 = vmatprep.mubr.f32.mxu0 %v3489
        %3557 = vmatmul.mubr.f32.gmra.mrb[0].mxu0 %v3488
        %v3558 = vpop.f32.mrb[0].mxu0
        %v3559 = vadd.f32 0.0, %v3558
        %v3560 = vpop.f32.mrb[0].mxu0
        %3561 = vdwg.mxu0
        %s3562 = scalar_lea.vmem %s330, 6
        %v3563 = vld [vmem:[%s3562] ss:$8 sm:$0x3]
        %s3564 = scalar_lea.vmem %s330, 22
        %v3565 = vld [vmem:[%s3564] ss:$8 sm:$0x3]
        %s3566 = scalar_lea.vmem %s330, 38
        %v3567 = vld [vmem:[%s3566] ss:$8 sm:$0x3]
        %s3568 = scalar_lea.vmem %s330, 54
        %v3569 = vld [vmem:[%s3568] ss:$8 sm:$0x3]
        %s3570 = scalar_lea.vmem %s330, 70
        %v3571 = vld [vmem:[%s3570] ss:$8 sm:$0x3]
        %s3572 = scalar_lea.vmem %s330, 86
        %v3573 = vld [vmem:[%s3572] ss:$8 sm:$0x3]
        %s3574 = scalar_lea.vmem %s330, 102
        %v3575 = vld [vmem:[%s3574] ss:$8 sm:$0x3]
        %s3576 = scalar_lea.vmem %s330, 118
        %v3577 = vld [vmem:[%s3576] ss:$8 sm:$0x3]
        %v3586 = vcombine.low %v3563, %v3565
        %v3587 = vcombine.low %v3567, %v3569
        %v3588 = vcombine.low %v3571, %v3573
        %v3589 = vcombine.low %v3575, %v3577
        %v3591 = vunpack.c.l.s4 1966171168
        %v3592 = vunpack.c.0.s8 %v3591
        %v3593 = vlaneseq
        %v3594 = vshrl.u32 %v3593, 7
        %v3595 = vsub.s32 %v3592, %v3594
        %v3596 = vrot.slane %v3586, %v3595
        %v3598 = vunpack.c.l.s4 1966171168
        %v3599 = vunpack.c.0.s8 %v3598
        %v3600 = vlaneseq
        %v3601 = vshrl.u32 %v3600, 7
        %v3602 = vsub.s32 %v3599, %v3601
        %v3603 = vrot.slane %v3587, %v3602
        %v3605 = vunpack.c.l.s4 1966171168
        %v3606 = vunpack.c.0.s8 %v3605
        %v3607 = vlaneseq
        %v3608 = vshrl.u32 %v3607, 7
        %v3609 = vsub.s32 %v3606, %v3608
        %v3610 = vrot.slane %v3588, %v3609
        %v3612 = vunpack.c.l.s4 1966171168
        %v3613 = vunpack.c.0.s8 %v3612
        %v3614 = vlaneseq
        %v3615 = vshrl.u32 %v3614, 7
        %v3616 = vsub.s32 %v3613, %v3615
        %v3617 = vrot.slane %v3589, %v3616
        %v3618 = vcombine.low %v3596, %v3603
        %v3619 = vcombine.high %v3596, %v3603
        %v3620 = vcombine.low %v3610, %v3617
        %v3621 = vcombine.high %v3610, %v3617
        %v3623 = vunpack.c.l.s4 1966171168
        %v3624 = vunpack.c.0.s8 %v3623
        %v3625 = vlaneseq
        %v3626 = vshrl.u32 %v3625, 7
        %v3627 = vsub.s32 %v3624, %v3626
        %v3628 = vrot.slane %v3618, %v3627
        %v3630 = vunpack.c.l.s4 1966171168
        %v3631 = vunpack.c.0.s8 %v3630
        %v3632 = vlaneseq
        %v3633 = vshrl.u32 %v3632, 7
        %v3634 = vsub.s32 %v3631, %v3633
        %v3635 = vrot.slane %v3619, %v3634
        %v3637 = vunpack.c.l.s4 1966171168
        %v3638 = vunpack.c.0.s8 %v3637
        %v3639 = vlaneseq
        %v3640 = vshrl.u32 %v3639, 7
        %v3641 = vsub.s32 %v3638, %v3640
        %v3642 = vrot.slane %v3620, %v3641
        %v3644 = vunpack.c.l.s4 1966171168
        %v3645 = vunpack.c.0.s8 %v3644
        %v3646 = vlaneseq
        %v3647 = vshrl.u32 %v3646, 7
        %v3648 = vsub.s32 %v3645, %v3647
        %v3649 = vrot.slane %v3621, %v3648
        %v3650 = vcombine.low %v3628, %v3642
        %v3651 = vcombine.low %v3635, %v3649
        %3654 = vmatprep.subr.mxu0 0.0
        %3655 = vmatpush1.msra.mxu0 %v341
        %3656 = vmatprep.subr.mxu0 0.0
        %3657 = vmatpush1.msra.mxu0 %v342
        %3658 = vmatprep.subr.mxu0 0.0
        %3659 = vmatpush1.msra.mxu0 %v343
        %3660 = vmatprep.subr.mxu0 0.0
        %3661 = vmatpush1.msra.mxu0 %v344
        %3662 = vmatprep.subr.mxu0 0.0
        %3663 = vmatpush1.msra.mxu0 %v345
        %3664 = vmatprep.subr.mxu0 0.0
        %3665 = vmatpush1.msra.mxu0 %v346
        %3666 = vmatprep.subr.mxu0 0.0
        %3667 = vmatpush1.msra.mxu0 %v347
        %3668 = vmatprep.subr.mxu0 0.0
        %3669 = vmatpush1.msra.mxu0 %v348
        %3670 = vmatprep.subr.mxu0 0.0
        %3671 = vmatpush1.msra.mxu0 %v349
        %3672 = vmatprep.subr.mxu0 0.0
        %3673 = vmatpush1.msra.mxu0 %v350
        %3674 = vmatprep.subr.mxu0 0.0
        %3675 = vmatpush1.msra.mxu0 %v351
        %3676 = vmatprep.subr.mxu0 0.0
        %3677 = vmatpush1.msra.mxu0 %v352
        %3678 = vmatprep.subr.mxu0 0.0
        %3679 = vmatpush1.msra.mxu0 %v353
        %3680 = vmatprep.subr.mxu0 0.0
        %3681 = vmatpush1.msra.mxu0 %v354
        %3682 = vmatprep.subr.mxu0 0.0
        %3683 = vmatpush1.msra.mxu0 %v355
        %3684 = vmatprep.subr.mxu0 0.0
        %3685 = vmatpush1.msra.mxu0 %v356
        %3686 = vmatprep.subr.mxu0 0.0
        %3687 = vmatpush1.msra.mxu0 %v357
        %3688 = vmatprep.subr.mxu0 0.0
        %3689 = vmatpush1.msra.mxu0 %v358
        %3690 = vmatprep.subr.mxu0 0.0
        %3691 = vmatpush1.msra.mxu0 %v359
        %3692 = vmatprep.subr.mxu0 0.0
        %3693 = vmatpush1.msra.mxu0 %v360
        %3694 = vmatprep.subr.mxu0 0.0
        %3695 = vmatpush1.msra.mxu0 %v361
        %3696 = vmatprep.subr.mxu0 0.0
        %3697 = vmatpush1.msra.mxu0 %v362
        %3698 = vmatprep.subr.mxu0 0.0
        %3699 = vmatpush1.msra.mxu0 %v363
        %3700 = vmatprep.subr.mxu0 0.0
        %3701 = vmatpush1.msra.mxu0 %v364
        %3702 = vmatprep.subr.mxu0 0.0
        %3703 = vmatpush1.msra.mxu0 %v365
        %3704 = vmatprep.subr.mxu0 0.0
        %3705 = vmatpush1.msra.mxu0 %v366
        %3706 = vmatprep.subr.mxu0 0.0
        %3707 = vmatpush1.msra.mxu0 %v367
        %3708 = vmatprep.subr.mxu0 0.0
        %3709 = vmatpush1.msra.mxu0 %v368
        %3710 = vmatprep.subr.mxu0 0.0
        %3711 = vmatpush1.msra.mxu0 %v369
        %3712 = vmatprep.subr.mxu0 0.0
        %3713 = vmatpush1.msra.mxu0 %v370
        %3714 = vmatprep.subr.mxu0 0.0
        %3715 = vmatpush1.msra.mxu0 %v371
        %3716 = vmatprep.subr.mxu0 0.0
        %3717 = vmatpush1.msra.mxu0 %v372
        %3718 = vmatprep.mubr.f32.mxu0 %v3651
        %3719 = vmatmul.mubr.f32.gmra.mrb[0].mxu0 %v3650
        %v3720 = vpop.f32.mrb[0].mxu0
        %v3721 = vadd.f32 0.0, %v3720
        %v3722 = vpop.f32.mrb[0].mxu0
        %3723 = vdwg.mxu0
        %s3724 = scalar_lea.vmem %s330, 7
        %v3725 = vld [vmem:[%s3724] ss:$8 sm:$0x3]
        %s3726 = scalar_lea.vmem %s330, 23
        %v3727 = vld [vmem:[%s3726] ss:$8 sm:$0x3]
        %s3728 = scalar_lea.vmem %s330, 39
        %v3729 = vld [vmem:[%s3728] ss:$8 sm:$0x3]
        %s3730 = scalar_lea.vmem %s330, 55
        %v3731 = vld [vmem:[%s3730] ss:$8 sm:$0x3]
        %s3732 = scalar_lea.vmem %s330, 71
        %v3733 = vld [vmem:[%s3732] ss:$8 sm:$0x3]
        %s3734 = scalar_lea.vmem %s330, 87
        %v3735 = vld [vmem:[%s3734] ss:$8 sm:$0x3]
        %s3736 = scalar_lea.vmem %s330, 103
        %v3737 = vld [vmem:[%s3736] ss:$8 sm:$0x3]
        %s3738 = scalar_lea.vmem %s330, 119
        %v3739 = vld [vmem:[%s3738] ss:$8 sm:$0x3]
        %v3748 = vcombine.low %v3725, %v3727
        %v3749 = vcombine.low %v3729, %v3731
        %v3750 = vcombine.low %v3733, %v3735
        %v3751 = vcombine.low %v3737, %v3739
        %v3753 = vunpack.c.l.s4 1966171168
        %v3754 = vunpack.c.0.s8 %v3753
        %v3755 = vlaneseq
        %v3756 = vshrl.u32 %v3755, 7
        %v3757 = vsub.s32 %v3754, %v3756
        %v3758 = vrot.slane %v3748, %v3757
        %v3760 = vunpack.c.l.s4 1966171168
        %v3761 = vunpack.c.0.s8 %v3760
        %v3762 = vlaneseq
        %v3763 = vshrl.u32 %v3762, 7
        %v3764 = vsub.s32 %v3761, %v3763
        %v3765 = vrot.slane %v3749, %v3764
        %v3767 = vunpack.c.l.s4 1966171168
        %v3768 = vunpack.c.0.s8 %v3767
        %v3769 = vlaneseq
        %v3770 = vshrl.u32 %v3769, 7
        %v3771 = vsub.s32 %v3768, %v3770
        %v3772 = vrot.slane %v3750, %v3771
        %v3774 = vunpack.c.l.s4 1966171168
        %v3775 = vunpack.c.0.s8 %v3774
        %v3776 = vlaneseq
        %v3777 = vshrl.u32 %v3776, 7
        %v3778 = vsub.s32 %v3775, %v3777
        %v3779 = vrot.slane %v3751, %v3778
        %v3780 = vcombine.low %v3758, %v3765
        %v3781 = vcombine.high %v3758, %v3765
        %v3782 = vcombine.low %v3772, %v3779
        %v3783 = vcombine.high %v3772, %v3779
        %v3785 = vunpack.c.l.s4 1966171168
        %v3786 = vunpack.c.0.s8 %v3785
        %v3787 = vlaneseq
        %v3788 = vshrl.u32 %v3787, 7
        %v3789 = vsub.s32 %v3786, %v3788
        %v3790 = vrot.slane %v3780, %v3789
        %v3792 = vunpack.c.l.s4 1966171168
        %v3793 = vunpack.c.0.s8 %v3792
        %v3794 = vlaneseq
        %v3795 = vshrl.u32 %v3794, 7
        %v3796 = vsub.s32 %v3793, %v3795
        %v3797 = vrot.slane %v3781, %v3796
        %v3799 = vunpack.c.l.s4 1966171168
        %v3800 = vunpack.c.0.s8 %v3799
        %v3801 = vlaneseq
        %v3802 = vshrl.u32 %v3801, 7
        %v3803 = vsub.s32 %v3800, %v3802
        %v3804 = vrot.slane %v3782, %v3803
        %v3806 = vunpack.c.l.s4 1966171168
        %v3807 = vunpack.c.0.s8 %v3806
        %v3808 = vlaneseq
        %v3809 = vshrl.u32 %v3808, 7
        %v3810 = vsub.s32 %v3807, %v3809
        %v3811 = vrot.slane %v3783, %v3810
        %v3812 = vcombine.low %v3790, %v3804
        %v3813 = vcombine.low %v3797, %v3811
        %3816 = vmatprep.subr.mxu0 0.0
        %3817 = vmatpush1.msra.mxu0 %v341
        %3818 = vmatprep.subr.mxu0 0.0
        %3819 = vmatpush1.msra.mxu0 %v342
        %3820 = vmatprep.subr.mxu0 0.0
        %3821 = vmatpush1.msra.mxu0 %v343
        %3822 = vmatprep.subr.mxu0 0.0
        %3823 = vmatpush1.msra.mxu0 %v344
        %3824 = vmatprep.subr.mxu0 0.0
        %3825 = vmatpush1.msra.mxu0 %v345
        %3826 = vmatprep.subr.mxu0 0.0
        %3827 = vmatpush1.msra.mxu0 %v346
        %3828 = vmatprep.subr.mxu0 0.0
        %3829 = vmatpush1.msra.mxu0 %v347
        %3830 = vmatprep.subr.mxu0 0.0
        %3831 = vmatpush1.msra.mxu0 %v348
        %3832 = vmatprep.subr.mxu0 0.0
        %3833 = vmatpush1.msra.mxu0 %v349
        %3834 = vmatprep.subr.mxu0 0.0
        %3835 = vmatpush1.msra.mxu0 %v350
        %3836 = vmatprep.subr.mxu0 0.0
        %3837 = vmatpush1.msra.mxu0 %v351
        %3838 = vmatprep.subr.mxu0 0.0
        %3839 = vmatpush1.msra.mxu0 %v352
        %3840 = vmatprep.subr.mxu0 0.0
        %3841 = vmatpush1.msra.mxu0 %v353
        %3842 = vmatprep.subr.mxu0 0.0
        %3843 = vmatpush1.msra.mxu0 %v354
        %3844 = vmatprep.subr.mxu0 0.0
        %3845 = vmatpush1.msra.mxu0 %v355
        %3846 = vmatprep.subr.mxu0 0.0
        %3847 = vmatpush1.msra.mxu0 %v356
        %3848 = vmatprep.subr.mxu0 0.0
        %3849 = vmatpush1.msra.mxu0 %v357
        %3850 = vmatprep.subr.mxu0 0.0
        %3851 = vmatpush1.msra.mxu0 %v358
        %3852 = vmatprep.subr.mxu0 0.0
        %3853 = vmatpush1.msra.mxu0 %v359
        %3854 = vmatprep.subr.mxu0 0.0
        %3855 = vmatpush1.msra.mxu0 %v360
        %3856 = vmatprep.subr.mxu0 0.0
        %3857 = vmatpush1.msra.mxu0 %v361
        %3858 = vmatprep.subr.mxu0 0.0
        %3859 = vmatpush1.msra.mxu0 %v362
        %3860 = vmatprep.subr.mxu0 0.0
        %3861 = vmatpush1.msra.mxu0 %v363
        %3862 = vmatprep.subr.mxu0 0.0
        %3863 = vmatpush1.msra.mxu0 %v364
        %3864 = vmatprep.subr.mxu0 0.0
        %3865 = vmatpush1.msra.mxu0 %v365
        %3866 = vmatprep.subr.mxu0 0.0
        %3867 = vmatpush1.msra.mxu0 %v366
        %3868 = vmatprep.subr.mxu0 0.0
        %3869 = vmatpush1.msra.mxu0 %v367
        %3870 = vmatprep.subr.mxu0 0.0
        %3871 = vmatpush1.msra.mxu0 %v368
        %3872 = vmatprep.subr.mxu0 0.0
        %3873 = vmatpush1.msra.mxu0 %v369
        %3874 = vmatprep.subr.mxu0 0.0
        %3875 = vmatpush1.msra.mxu0 %v370
        %3876 = vmatprep.subr.mxu0 0.0
        %3877 = vmatpush1.msra.mxu0 %v371
        %3878 = vmatprep.subr.mxu0 0.0
        %3879 = vmatpush1.msra.mxu0 %v372
        %3880 = vmatprep.mubr.f32.mxu0 %v3813
        %3881 = vmatmul.mubr.f32.gmra.mrb[0].mxu0 %v3812
        %v3882 = vpop.f32.mrb[0].mxu0
        %v3883 = vadd.f32 0.0, %v3882
        %v3884 = vpop.f32.mrb[0].mxu0
        %3885 = vdwg.mxu0
        %3887 = vrot.lane.b32.xlu0 %v2911, 64
        %v3888 = vpop.permute.xlu0 %3887
        %3891 = vrot.lane.b32.xlu0 %v3235, 64
        %v3892 = vpop.permute.xlu0 %3891
        %3895 = vrot.lane.b32.xlu0 %v3559, 64
        %v3896 = vpop.permute.xlu0 %3895
        %3899 = vrot.lane.b32.xlu0 %v3883, 64
        %v3900 = vpop.permute.xlu0 %3899
        %vm3902 = vcmask 523264
        %v3903 = vsel %vm3902, %v2749, %v3888
        %v3904 = vsel %vm3902, %v3073, %v3892
        %v3905 = vsel %vm3902, %v3397, %v3896
        %v3906 = vsel %vm3902, %v3721, %v3900
        %v3911 = vcombine.low %v3903, %v3904
        %v3912 = vcombine.high %v3903, %v3904
        %v3913 = vcombine.low %v3905, %v3906
        %v3914 = vcombine.high %v3905, %v3906
        %v3916 = vunpack.c.l.s4 1966171168
        %v3917 = vunpack.c.0.s8 %v3916
        %v3918 = vlaneseq
        %v3919 = vshrl.u32 %v3918, 7
        %v3920 = vsub.s32 %v3917, %v3919
        %v3921 = vrot.slane %v3911, %v3920
        %v3923 = vunpack.c.l.s4 1966171168
        %v3924 = vunpack.c.0.s8 %v3923
        %v3925 = vlaneseq
        %v3926 = vshrl.u32 %v3925, 7
        %v3927 = vsub.s32 %v3924, %v3926
        %v3928 = vrot.slane %v3912, %v3927
        %v3930 = vunpack.c.l.s4 1966171168
        %v3931 = vunpack.c.0.s8 %v3930
        %v3932 = vlaneseq
        %v3933 = vshrl.u32 %v3932, 7
        %v3934 = vsub.s32 %v3931, %v3933
        %v3935 = vrot.slane %v3913, %v3934
        %v3937 = vunpack.c.l.s4 1966171168
        %v3938 = vunpack.c.0.s8 %v3937
        %v3939 = vlaneseq
        %v3940 = vshrl.u32 %v3939, 7
        %v3941 = vsub.s32 %v3938, %v3940
        %v3942 = vrot.slane %v3914, %v3941
        %v3943 = vcombine.low %v3921, %v3935
        %v3944 = vcombine.high %v3921, %v3935
        %v3945 = vcombine.low %v3928, %v3942
        %v3946 = vcombine.high %v3928, %v3942
        %v3948 = vunpack.c.l.s4 1966171168
        %v3949 = vunpack.c.0.s8 %v3948
        %v3950 = vlaneseq
        %v3951 = vshrl.u32 %v3950, 7
        %v3952 = vsub.s32 %v3949, %v3951
        %v3953 = vrot.slane %v3943, %v3952
        %v3955 = vunpack.c.l.s4 1966171168
        %v3956 = vunpack.c.0.s8 %v3955
        %v3957 = vlaneseq
        %v3958 = vshrl.u32 %v3957, 7
        %v3959 = vsub.s32 %v3956, %v3958
        %v3960 = vrot.slane %v3945, %v3959
        %v3962 = vunpack.c.l.s4 1966171168
        %v3963 = vunpack.c.0.s8 %v3962
        %v3964 = vlaneseq
        %v3965 = vshrl.u32 %v3964, 7
        %v3966 = vsub.s32 %v3963, %v3965
        %v3967 = vrot.slane %v3944, %v3966
        %v3969 = vunpack.c.l.s4 1966171168
        %v3970 = vunpack.c.0.s8 %v3969
        %v3971 = vlaneseq
        %v3972 = vshrl.u32 %v3971, 7
        %v3973 = vsub.s32 %v3970, %v3972
        %v3974 = vrot.slane %v3946, %v3973
        %v3975 = vcombine.high %v3953, %v3953
        %v3976 = vcombine.high %v3960, %v3960
        %v3977 = vcombine.high %v3967, %v3967
        %v3978 = vcombine.high %v3974, %v3974
        %v3987 = vlaneseq
        %vm3988 = vcmp.ge.s32.totalorder %v3987, 0
        %vm3989 = vcmp.lt.s32.totalorder %v3987, 512
        %vm3990 = vmand %vm3988, %vm3989
        %3991 = vst.msk [vmem:[%s336] sm:$0xf] %vm3990, %v3953
        %3992 = vst.msk [vmem:[%s336 + $0x4] sm:$0xf] %vm3990, %v3967
        %3993 = vst.msk [vmem:[%s336 + $0x8] sm:$0xf] %vm3990, %v3975
        %3994 = vst.msk [vmem:[%s336 + $0xc] sm:$0xf] %vm3990, %v3977
        %3995 = vst.msk [vmem:[%s336 + $0x10] sm:$0xf] %vm3990, %v3960
        %3996 = vst.msk [vmem:[%s336 + $0x14] sm:$0xf] %vm3990, %v3974
        %3997 = vst.msk [vmem:[%s336 + $0x18] sm:$0xf] %vm3990, %v3976
        %3998 = vst.msk [vmem:[%s336 + $0x1c] sm:$0xf] %vm3990, %v3978
        %v4000 = vlaneseq
        %v4001 = vshrl.u32 %v4000, 7
        %v4002 = vsub.s32 0, %v4001
        %v4003 = vrot.slane %v437, %v4002
        %4005 = vmatprep.subr.mxu0 0.0
        %4006 = vmatpush1.msra.mxu0 %v373
        %4007 = vmatprep.subr.mxu0 0.0
        %4008 = vmatpush1.msra.mxu0 %v374
        %4009 = vmatprep.subr.mxu0 0.0
        %4010 = vmatpush1.msra.mxu0 %v375
        %4011 = vmatprep.subr.mxu0 0.0
        %4012 = vmatpush1.msra.mxu0 %v376
        %4013 = vmatprep.subr.mxu0 0.0
        %4014 = vmatpush1.msra.mxu0 %v377
        %4015 = vmatprep.subr.mxu0 0.0
        %4016 = vmatpush1.msra.mxu0 %v378
        %4017 = vmatprep.subr.mxu0 0.0
        %4018 = vmatpush1.msra.mxu0 %v379
        %4019 = vmatprep.subr.mxu0 0.0
        %4020 = vmatpush1.msra.mxu0 %v380
        %4021 = vmatprep.subr.mxu0 0.0
        %4022 = vmatpush1.msra.mxu0 %v381
        %4023 = vmatprep.subr.mxu0 0.0
        %4024 = vmatpush1.msra.mxu0 %v382
        %4025 = vmatprep.subr.mxu0 0.0
        %4026 = vmatpush1.msra.mxu0 %v383
        %4027 = vmatprep.subr.mxu0 0.0
        %4028 = vmatpush1.msra.mxu0 %v384
        %4029 = vmatprep.subr.mxu0 0.0
        %4030 = vmatpush1.msra.mxu0 %v385
        %4031 = vmatprep.subr.mxu0 0.0
        %4032 = vmatpush1.msra.mxu0 %v386
        %4033 = vmatprep.subr.mxu0 0.0
        %4034 = vmatpush1.msra.mxu0 %v387
        %4035 = vmatprep.subr.mxu0 0.0
        %4036 = vmatpush1.msra.mxu0 %v388
        %4037 = vmatprep.subr.mxu0 0.0
        %4038 = vmatpush1.msra.mxu0 %v389
        %4039 = vmatprep.subr.mxu0 0.0
        %4040 = vmatpush1.msra.mxu0 %v390
        %4041 = vmatprep.subr.mxu0 0.0
        %4042 = vmatpush1.msra.mxu0 %v391
        %4043 = vmatprep.subr.mxu0 0.0
        %4044 = vmatpush1.msra.mxu0 %v392
        %4045 = vmatprep.subr.mxu0 0.0
        %4046 = vmatpush1.msra.mxu0 %v393
        %4047 = vmatprep.subr.mxu0 0.0
        %4048 = vmatpush1.msra.mxu0 %v394
        %4049 = vmatprep.subr.mxu0 0.0
        %4050 = vmatpush1.msra.mxu0 %v395
        %4051 = vmatprep.subr.mxu0 0.0
        %4052 = vmatpush1.msra.mxu0 %v396
        %4053 = vmatprep.subr.mxu0 0.0
        %4054 = vmatpush1.msra.mxu0 %v397
        %4055 = vmatprep.subr.mxu0 0.0
        %4056 = vmatpush1.msra.mxu0 %v398
        %4057 = vmatprep.subr.mxu0 0.0
        %4058 = vmatpush1.msra.mxu0 %v399
        %4059 = vmatprep.subr.mxu0 0.0
        %4060 = vmatpush1.msra.mxu0 %v400
        %4061 = vmatprep.subr.mxu0 0.0
        %4062 = vmatpush1.msra.mxu0 %v401
        %4063 = vmatprep.subr.mxu0 0.0
        %4064 = vmatpush1.msra.mxu0 %v402
        %4065 = vmatprep.subr.mxu0 0.0
        %4066 = vmatpush1.msra.mxu0 %v403
        %4067 = vmatprep.subr.mxu0 0.0
        %4068 = vmatpush1.msra.mxu0 %v404
        %4069 = vmatprep.mubr.f32.mxu0 %v3904
        %4070 = vmatmul.mubr.f32.gmra.mrb[0].mxu0 %v3903
        %v4071 = vpop.f32.mrb[0].mxu0
        %v4072 = vadd.f32 %v4003, %v4071
        %v4073 = vpop.f32.mrb[0].mxu0
        %4074 = vdwg.mxu0
        %4075 = vmatprep.subr.mxu0 0.0
        %4076 = vmatpush1.msra.mxu0 %v405
        %4077 = vmatprep.subr.mxu0 0.0
        %4078 = vmatpush1.msra.mxu0 %v406
        %4079 = vmatprep.subr.mxu0 0.0
        %4080 = vmatpush1.msra.mxu0 %v407
        %4081 = vmatprep.subr.mxu0 0.0
        %4082 = vmatpush1.msra.mxu0 %v408
        %4083 = vmatprep.subr.mxu0 0.0
        %4084 = vmatpush1.msra.mxu0 %v409
        %4085 = vmatprep.subr.mxu0 0.0
        %4086 = vmatpush1.msra.mxu0 %v410
        %4087 = vmatprep.subr.mxu0 0.0
        %4088 = vmatpush1.msra.mxu0 %v411
        %4089 = vmatprep.subr.mxu0 0.0
        %4090 = vmatpush1.msra.mxu0 %v412
        %4091 = vmatprep.subr.mxu0 0.0
        %4092 = vmatpush1.msra.mxu0 %v413
        %4093 = vmatprep.subr.mxu0 0.0
        %4094 = vmatpush1.msra.mxu0 %v414
        %4095 = vmatprep.subr.mxu0 0.0
        %4096 = vmatpush1.msra.mxu0 %v415
        %4097 = vmatprep.subr.mxu0 0.0
        %4098 = vmatpush1.msra.mxu0 %v416
        %4099 = vmatprep.subr.mxu0 0.0
        %4100 = vmatpush1.msra.mxu0 %v417
        %4101 = vmatprep.subr.mxu0 0.0
        %4102 = vmatpush1.msra.mxu0 %v418
        %4103 = vmatprep.subr.mxu0 0.0
        %4104 = vmatpush1.msra.mxu0 %v419
        %4105 = vmatprep.subr.mxu0 0.0
        %4106 = vmatpush1.msra.mxu0 %v420
        %4107 = vmatprep.subr.mxu0 0.0
        %4108 = vmatpush1.msra.mxu0 %v421
        %4109 = vmatprep.subr.mxu0 0.0
        %4110 = vmatpush1.msra.mxu0 %v422
        %4111 = vmatprep.subr.mxu0 0.0
        %4112 = vmatpush1.msra.mxu0 %v423
        %4113 = vmatprep.subr.mxu0 0.0
        %4114 = vmatpush1.msra.mxu0 %v424
        %4115 = vmatprep.subr.mxu0 0.0
        %4116 = vmatpush1.msra.mxu0 %v425
        %4117 = vmatprep.subr.mxu0 0.0
        %4118 = vmatpush1.msra.mxu0 %v426
        %4119 = vmatprep.subr.mxu0 0.0
        %4120 = vmatpush1.msra.mxu0 %v427
        %4121 = vmatprep.subr.mxu0 0.0
        %4122 = vmatpush1.msra.mxu0 %v428
        %4123 = vmatprep.subr.mxu0 0.0
        %4124 = vmatpush1.msra.mxu0 %v429
        %4125 = vmatprep.subr.mxu0 0.0
        %4126 = vmatpush1.msra.mxu0 %v430
        %4127 = vmatprep.subr.mxu0 0.0
        %4128 = vmatpush1.msra.mxu0 %v431
        %4129 = vmatprep.subr.mxu0 0.0
        %4130 = vmatpush1.msra.mxu0 %v432
        %4131 = vmatprep.subr.mxu0 0.0
        %4132 = vmatpush1.msra.mxu0 %v433
        %4133 = vmatprep.subr.mxu0 0.0
        %4134 = vmatpush1.msra.mxu0 %v434
        %4135 = vmatprep.subr.mxu0 0.0
        %4136 = vmatpush1.msra.mxu0 %v435
        %4137 = vmatprep.subr.mxu0 0.0
        %4138 = vmatpush1.msra.mxu0 %v436
        %4139 = vmatprep.mubr.f32.mxu0 %v3906
        %4140 = vmatmul.mubr.f32.gmra.mrb[0].mxu0 %v3905
        %v4141 = vpop.f32.mrb[0].mxu0
        %v4142 = vadd.f32 %v4072, %v4141
        %v4143 = vpop.f32.mrb[0].mxu0
        %4144 = vdwg.mxu0
        %v4146 = vcombine.high %v4142, %v4142
        %v4148 = vunpack.c.l.s4 1966171168
        %v4149 = vunpack.c.0.s8 %v4148
        %v4150 = vlaneseq
        %v4151 = vshrl.u32 %v4150, 7
        %v4152 = vsub.s32 %v4149, %v4151
        %v4153 = vrot.slane %v4142, %v4152
        %v4155 = vunpack.c.l.s4 1966171168
        %v4156 = vunpack.c.0.s8 %v4155
        %v4157 = vlaneseq
        %v4158 = vshrl.u32 %v4157, 7
        %v4159 = vsub.s32 %v4156, %v4158
        %v4160 = vrot.slane %v4146, %v4159
        %v4161 = vcombine.high %v4153, %v4153
        %v4162 = vcombine.high %v4160, %v4160
        %v4164 = vunpack.c.l.s4 1966171168
        %v4165 = vunpack.c.0.s8 %v4164
        %v4166 = vlaneseq
        %v4167 = vshrl.u32 %v4166, 7
        %v4168 = vsub.s32 %v4165, %v4167
        %v4169 = vrot.slane %v4153, %v4168
        %v4171 = vunpack.c.l.s4 1966171168
        %v4172 = vunpack.c.0.s8 %v4171
        %v4173 = vlaneseq
        %v4174 = vshrl.u32 %v4173, 7
        %v4175 = vsub.s32 %v4172, %v4174
        %v4176 = vrot.slane %v4160, %v4175
        %v4178 = vunpack.c.l.s4 1966171168
        %v4179 = vunpack.c.0.s8 %v4178
        %v4180 = vlaneseq
        %v4181 = vshrl.u32 %v4180, 7
        %v4182 = vsub.s32 %v4179, %v4181
        %v4183 = vrot.slane %v4161, %v4182
        %v4185 = vunpack.c.l.s4 1966171168
        %v4186 = vunpack.c.0.s8 %v4185
        %v4187 = vlaneseq
        %v4188 = vshrl.u32 %v4187, 7
        %v4189 = vsub.s32 %v4186, %v4188
        %v4190 = vrot.slane %v4162, %v4189
        %v4191 = vcombine.high %v4169, %v4169
        %v4192 = vcombine.high %v4176, %v4176
        %v4193 = vcombine.high %v4183, %v4183
        %v4194 = vcombine.high %v4190, %v4190
        %vm4203 = vcmask 73728
        %4204 = vst.msk [vmem:[%s317] sm:$0x1] %vm4203, %v4169
        %4205 = vst.msk [vmem:[%s317 + $0x1] sm:$0x1] %vm4203, %v4183
        %4206 = vst.msk [vmem:[%s317 + $0x2] sm:$0x1] %vm4203, %v4191
        %4207 = vst.msk [vmem:[%s317 + $0x3] sm:$0x1] %vm4203, %v4193
        %4208 = vst.msk [vmem:[%s317 + $0x4] sm:$0x1] %vm4203, %v4176
        %4209 = vst.msk [vmem:[%s317 + $0x5] sm:$0x1] %vm4203, %v4190
        %4210 = vst.msk [vmem:[%s317 + $0x6] sm:$0x1] %vm4203, %v4192
        %4211 = vst.msk [vmem:[%s317 + $0x7] sm:$0x1] %vm4203, %v4194
        %s4212 = smul.u32 8, %s23
        %p4213 = scmp.lt.s32.totalorder %s4212, 15
        %s4214 = scalar_select %p4213, %s4212, 15
        %s4215 = smul.addr %s4214, 2
        %s4216 = smul.addr %s4215, 8
        %s4217 = scalar_lea.vmem %s6, %s4216
        %s4218 = smul.u32 8, %s23
        %p4219 = scmp.lt.s32.totalorder %s4218, 15
        %s4220 = scalar_select %p4219, %s4218, 15
        %s4221 = smul.addr %s4220, 4
        %s4222 = scalar_lea.vmem %s7, %s4221
        %s4223 = sand.u32 %s214, 1
        %s4224 = scalar_lea.sflag [#allocation5], %s4223
        %s4225 = sand.u32 %s214, 1
        %s4226 = smul.addr %s4225, 8
        %s4227 = scalar_lea.vmem [#allocation4], %s4226
        // Predicated region
        $region45: #{early_exit_forward.1} parent=43 // pred_check
          %p4228 = pneg %p172
        $region46: #{early_exit_forward.1} parent=43 // pred_check_branch
          %4230 = sbr.rel (%p4228) target = $region48
        $region47: #{early_exit_forward.1} parent=43 // pred_region
          %s4231 = smul.u32 8, %s23
        $region48: #{early_exit_forward.1} parent=43 // pred_fallthru
          _
        // Predicated region
        $region49: #{early_exit_forward.1} parent=43 // pred_check
          %p4232 = pneg %p198
        $region50: #{early_exit_forward.1} parent=43 // pred_check_branch
          %4234 = sbr.rel (%p4232) target = $region52
        $region51: #{early_exit_forward.1} parent=43 // pred_region
          %s4235 = smul.u32 8, %s23
        $region52: #{early_exit_forward.1} parent=43 // pred_fallthru
          _
        // Predicated region
        $region53: #{early_exit_forward.1} parent=43 // pred_check
          %p4236 = pneg %p224
        $region54: #{early_exit_forward.1} parent=43 // pred_check_branch
          %4238 = sbr.rel (%p4236) target = $region56
        $region55: #{early_exit_forward.1} parent=43 // pred_region
          %s4239 = smul.u32 8, %s23
          %s4241 = ssub.s32 128, 128
          %4242 = vsyncadd %s4224, %s4241
          %s4243 = smul.addr %s4239, 16
          %s4244 = scalar_lea.hbm %s8, %s4243
          %s4245 = sshll.u32 %s4227, 4
          %s4246 = int_to_ptr.vmem [resolvable:$true] %s4245
          %4251 = dma.vmem_to_hbm [thread:$0]  %s4246, 128, %s4244, %s4224, 16, 16, 1
        $region56: #{early_exit_forward.1} parent=43 // pred_fallthru
          _
      $region44: #{early_exit_forward.1} parent=5 // pred_fallthru
        _
      %p4252 = scmp.le.s32.totalorder 2, %s18
      // Predicated region
      $region57: #{early_exit_forward.1} parent=5 // pred_check
        %p4253 = pneg %p4252
      $region58: #{early_exit_forward.1} parent=5 // pred_check_branch
        %4255 = sbr.rel (%p4253) target = $region60
      $region59: #{early_exit_forward.1} parent=5 // pred_region
        %s4256 = ssub.s32 %s18, 2
        // Predicated region
        $region61: #{early_exit_forward.1} parent=59 // pred_check
          %p4257 = pneg %p178
        $region62: #{early_exit_forward.1} parent=59 // pred_check_branch
          %4259 = sbr.rel (%p4257) target = $region64
        $region63: #{early_exit_forward.1} parent=59 // pred_region
          %s4260 = smul.u32 8, %s24
          %p4261 = scmp.lt.s32.totalorder %s4260, 15
          %s4262 = scalar_select %p4261, %s4260, 15
          %s4263 = smul.addr %s4262, 2
          %s4264 = smul.addr %s4263, 8
          %s4265 = scalar_lea.vmem %s6, %s4264
        $region64: #{early_exit_forward.1} parent=59 // pred_fallthru
          _
        // Predicated region
        $region65: #{early_exit_forward.1} parent=59 // pred_check
          %p4266 = pneg %p204
        $region66: #{early_exit_forward.1} parent=59 // pred_check_branch
          %4268 = sbr.rel (%p4266) target = $region68
        $region67: #{early_exit_forward.1} parent=59 // pred_region
          %s4269 = smul.u32 8, %s24
          %p4270 = scmp.lt.s32.totalorder %s4269, 15
          %s4271 = scalar_select %p4270, %s4269, 15
          %s4272 = smul.addr %s4271, 4
          %s4273 = scalar_lea.vmem %s7, %s4272
        $region68: #{early_exit_forward.1} parent=59 // pred_fallthru
          _
        // Predicated region
        $region69: #{early_exit_forward.1} parent=59 // pred_check
          %p4274 = pneg %p230
        $region70: #{early_exit_forward.1} parent=59 // pred_check_branch
          %4276 = sbr.rel (%p4274) target = $region72
        $region71: #{early_exit_forward.1} parent=59 // pred_region
          %s4277 = sand.u32 %s215, 1
          %s4278 = scalar_lea.sflag [#allocation5], %s4277
          %s4279 = sand.u32 %s215, 1
          %s4280 = smul.addr %s4279, 8
          %s4281 = scalar_lea.vmem [#allocation4], %s4280
          %4282 = dma.done %s4278, 128
        $region72: #{early_exit_forward.1} parent=59 // pred_fallthru
          _
      $region60: #{early_exit_forward.1} parent=5 // pred_fallthru
        _
    $region6: #{early_exit_forward.1} parent=1 // loop_footer
      %s22 = sadd.s32 1, %s18
    $region7: #{early_exit_forward.1} parent=1 // loop_footer_branch
      %17 = sbr.rel target = $region3
    $region8: #{early_exit_forward.1} parent=1 // loop_exit
      _
    %4283 = vsyncpa [#allocation5], 1
    %s4284 = scalar_lea.sflag [#allocation5], 1
    %4285 = vsyncpa %s4284, 1

</llo_original>
